<compile_context>
chip_gen: v7x
topology: tpu7x:2x2x1
jax: 0.10.0
libtpu: 0.0.40
codegen_flags: <defaults>
</compile_context>

<pallas_src>
import functools

import jax
import jax.numpy as jnp
from jax.experimental import pallas as pl
from jax.experimental.pallas import tpu as pltpu

FEAT = 128    # lane-padded hidden dimension (>= nf, n_actions + 1)
S_PAD = 16    # sublane-padded state dimension (>= state_size)


# ----------------------------- kernel ---------------------------------------

def _a2c_kernel(n_layers, nf, x_ref, w_in_ref, w_ref, v_ref, out_ref):
    """refs:
         x_ref   : (tile, S_PAD)             f32, zero-padded input tile
         w_in_ref: (S_PAD, FEAT)             bf16, block-0 first linear
         w_ref   : (2*n_layers, FEAT, FEAT)  bf16, remaining linears, last = fused head
         v_ref   : (6*n_layers+1, FEAT)      f32, bias/gamma/beta slab (last = head bias)
         out_ref : (tile, FEAT)              f32, fused lane-dense policy|value output
    """
    tile = x_ref.shape[0]
    feat = out_ref.shape[-1]
    inv_nf = 1.0 / float(nf)
    # Mask for LayerNorm statistics: only the first nf lanes are real features.
    # Hoisted once (broadcasts are not CSE'd); pad rows/cols of the weight slabs
    # and pad entries of bias/gamma/beta are exactly zero (pack_params invariant).
    feat_mask = (jax.lax.broadcasted_iota(jnp.int32, (tile, feat), 1) < nf
                 ).astype(jnp.float32)

    def matmul(h, w):
        # bf16 x bf16 MXU matmul with f32 accumulation; elementwise math stays f32.
        return jnp.dot(h.astype(w.dtype), w, preferred_element_type=jnp.float32)

    def vec(j):
        return v_ref[j:j + 1, :]          # (1, feat), broadcasts over rows

    def ln_relu(z, g, b):
        # z has exact zeros in pad lanes; statistics masked to the real nf lanes.
        mu = jnp.sum(z, axis=-1, keepdims=True) * inv_nf
        d = (z - mu) * feat_mask
        var = jnp.sum(d * d, axis=-1, keepdims=True) * inv_nf
        y = d * jax.lax.rsqrt(var + 1e-5) * g + b     # pad lanes stay exactly 0
        return jnp.maximum(y, 0.0)

    # padded input lanes give log(1e-10) but hit zero weight rows -> no contribution
    h_in = jnp.log(x_ref[...] + 1e-10)

    # block 0 (no residual)
    h = ln_relu(matmul(h_in, w_in_ref[...]) + vec(0), vec(1), vec(2))
    h = ln_relu(matmul(h, w_ref[0]) + vec(3), vec(4), vec(5))

    # blocks 1 .. n_layers-1 (residual)
    for i in range(1, n_layers):
        vb = 6 * i
        hb = ln_relu(matmul(h, w_ref[2 * i - 1]) + vec(vb), vec(vb + 1), vec(vb + 2))
        hb = ln_relu(matmul(hb, w_ref[2 * i]) + vec(vb + 3), vec(vb + 4), vec(vb + 5))
        h = hb + h

    # fused policy+value head: one matmul, one lane-dense (tile, 128) store
    out_ref[...] = (matmul(h, w_ref[2 * n_layers - 1])
                    + vec(6 * n_layers)).astype(out_ref.dtype)


# ----------------------------- wrapper ---------------------------------------

def a2c_forward(x, w_in, w_sq, v_slab, *, n_layers, nf, n_actions,
                batch_tile=256, feat=FEAT):
    """x: (B, state_size) f32; w_in: (s_pad, feat); w_sq: (2*n_layers, feat, feat);
       v_slab: (6*n_layers+1, feat) f32.  Returns (policy (B, n_actions), value (B, 1))."""
    B, S = x.shape
    s_pad = w_in.shape[0]
    assert n_layers >= 1
    assert s_pad >= S and feat >= max(nf, n_actions + 1)
    assert batch_tile % 8 == 0

    grid_b = -(-B // batch_tile)
    b_pad = grid_b * batch_tile
    # tiny (b_pad, s_pad) pad only — no 128-lane input materialization in HBM
    xp = jnp.pad(x.astype(jnp.float32), ((0, b_pad - B), (0, s_pad - S)))

    cost = pl.CostEstimate(
        flops=b_pad * (2 * s_pad * feat + 4 * n_layers * feat * feat),
        transcendentals=b_pad * (s_pad + 2 * n_layers),
        bytes_accessed=(xp.size * xp.dtype.itemsize
                        + w_in.size * w_in.dtype.itemsize      # fetched once, not per step
                        + w_sq.size * w_sq.dtype.itemsize
                        + v_slab.size * v_slab.dtype.itemsize
                        + b_pad * feat * 4))

    kernel = functools.partial(_a2c_kernel, n_layers, nf)
    out = pl.pallas_call(
        kernel,
        out_shape=jax.ShapeDtypeStruct((b_pad, feat), jnp.float32),
        grid_spec=pltpu.PrefetchScalarGridSpec(
            num_scalar_prefetch=0,
            grid=(grid_b,),
            in_specs=[
                pl.BlockSpec((batch_tile, s_pad), lambda i: (i, 0)),
                pl.BlockSpec((s_pad, feat), lambda i: (0, 0)),
                pl.BlockSpec((2 * n_layers, feat, feat), lambda i: (0, 0, 0)),
                pl.BlockSpec((6 * n_layers + 1, feat), lambda i: (0, 0)),
            ],
            out_specs=pl.BlockSpec((batch_tile, feat), lambda i: (i, 0)),
        ),
        compiler_params=pltpu.CompilerParams(
            dimension_semantics=("parallel",)),
        cost_estimate=cost,
    )(xp, w_in, w_sq, v_slab)

    policy = out[:B, :n_actions]
    value = out[:B, n_actions:n_actions + 1]
    return policy, value


# Biggest single lever from the review: jit the whole forward (pad + pallas_call +
# output slicing) so host dispatch overhead doesn't dominate this tiny kernel.
a2c_forward_jit = jax.jit(
    a2c_forward,
    static_argnames=("n_layers", "nf", "n_actions", "batch_tile", "feat"))


# ----------------------------- tiling helpers ---------------------------------

def num_tensorcores():
    """2 for dual-TensorCore chips (v4/v5p megacore, v7x), else 1 (v5e/v6e)."""
    try:
        kind = jax.devices()[0].device_kind.lower()
    except Exception:
        return 1
    return 2 if any(t in kind for t in ("v7", "7x", "v4", "v5p")) else 1


def choose_batch_tile(batch, num_cores=None, max_tile=1024):
    """Largest batch tile (<= max_tile rows, multiple of 8) such that the grid is
    a multiple of num_cores: grid=(1,) on single-core v5e/v6e, even grid on v7x."""
    if num_cores is None:
        num_cores = num_tensorcores()
    per_core = -(-batch // num_cores)
    steps_per_core = -(-per_core // max_tile)
    chunk = -(-batch // (num_cores * steps_per_core))
    return -(-chunk // 8) * 8


# ----------------------------- params: init / pack ----------------------------

def _xavier_uniform(key, in_dim, out_dim):
    bound = (6.0 / (in_dim + out_dim)) ** 0.5
    # stored (in_dim, out_dim): kernel/reference compute h @ W
    return jax.random.uniform(key, (in_dim, out_dim), jnp.float32, -bound, bound)


def init_params(key, state_size, nf, n_layers, n_actions):
    """Unpacked, PyTorch-equivalent f32 parameters."""
    blocks = []
    for i in range(n_layers):
        in_dim = state_size if i == 0 else nf
        key, k1, k2 = jax.random.split(key, 3)
        blocks.append((
            _xavier_uniform(k1, in_dim, nf), jnp.zeros((nf,), jnp.float32),
            jnp.ones((nf,), jnp.float32), jnp.zeros((nf,), jnp.float32),
            _xavier_uniform(k2, nf, nf), jnp.zeros((nf,), jnp.float32),
            jnp.ones((nf,), jnp.float32), jnp.zeros((nf,), jnp.float32),
        ))
    key, kp, kv = jax.random.split(key, 3)
    head = (_xavier_uniform(kp, nf, n_actions), jnp.zeros((n_actions,), jnp.float32),
            _xavier_uniform(kv, nf, 1), jnp.zeros((1,), jnp.float32))
    return {"blocks": blocks, "head": head}


def pack_params(params, state_size, nf, n_layers, n_actions,
                feat=FEAT, s_pad=S_PAD, weight_dtype=jnp.bfloat16):
    """Pack parameters into lane-padded slabs.

    Invariant relied on by the masked LayerNorm in the kernel: every pad row/col
    of the weight slabs and every pad entry of the bias/gamma/beta slab is 0.
    """
    w_in = jnp.zeros((s_pad, feat), jnp.float32)            # block 0, first linear
    w_sq = jnp.zeros((2 * n_layers, feat, feat), jnp.float32)
    v_slab = jnp.zeros((6 * n_layers + 1, feat), jnp.float32)
    for i, blk in enumerate(params["blocks"]):
        w1, b1, g1, be1, w2, b2, g2, be2 = blk
        if i == 0:
            w_in = w_in.at[:state_size, :nf].set(w1)
        else:
            w_sq = w_sq.at[2 * i - 1, :nf, :nf].set(w1)
        w_sq = w_sq.at[2 * i, :nf, :nf].set(w2)
        vb = 6 * i
        v_slab = v_slab.at[vb + 0, :nf].set(b1)
        v_slab = v_slab.at[vb + 1, :nf].set(g1)
        v_slab = v_slab.at[vb + 2, :nf].set(be1)
        v_slab = v_slab.at[vb + 3, :nf].set(b2)
        v_slab = v_slab.at[vb + 4, :nf].set(g2)
        v_slab = v_slab.at[vb + 5, :nf].set(be2)
    wp, bp, wv, bv = params["head"]
    hd = 2 * n_layers - 1                                   # fused policy|value head
    w_sq = w_sq.at[hd, :nf, :n_actions].set(wp)
    w_sq = w_sq.at[hd, :nf, n_actions].set(wv[:, 0])
    v_slab = v_slab.at[6 * n_layers, :n_actions].set(bp)
    v_slab = v_slab.at[6 * n_layers, n_actions].set(bv[0])
    # bf16 weight storage halves the dominant HBM->VMEM DMA; the vector slab stays
    # f32 (tiny, and it feeds f32 LayerNorm math directly).
    return w_in.astype(weight_dtype), w_sq.astype(weight_dtype), v_slab


# ----------------------------- pure-JAX reference -----------------------------

def a2c_reference(x, params, matmul_dtype=None):
    """Pure-JAX reference.  matmul_dtype=None reproduces the PyTorch f32 forward;
    matmul_dtype=jnp.bfloat16 mirrors the kernel's bf16-operand / f32-accumulate
    matmuls (LayerNorm / ReLU stay f32 in both)."""
    def dot(h, w):
        if matmul_dtype is not None:
            h, w = h.astype(matmul_dtype), w.astype(matmul_dtype)
        return jnp.dot(h, w, preferred_element_type=jnp.float32)

    def ln(h, g, b):
        mu = jnp.mean(h, -1, keepdims=True)
        d = h - mu
        var = jnp.mean(d * d, -1, keepdims=True)
        return d * jax.lax.rsqrt(var + 1e-5) * g + b

    def block(h, p):
        w1, b1, g1, be1, w2, b2, g2, be2 = p
        h = jnp.maximum(ln(dot(h, w1) + b1, g1, be1), 0.0)
        h = jnp.maximum(ln(dot(h, w2) + b2, g2, be2), 0.0)
        return h

    blocks = params["blocks"]
    out = block(jnp.log(x + 1e-10), blocks[0])
    for i in range(1, len(blocks)):
        out = block(out, blocks[i]) + out
    wp, bp, wv, bv = params["head"]
    return dot(out, wp) + bp, dot(out, wv) + bv


# ----------------------------- main -------------------------------------------

if __name__ == "__main__":
    state_size = 6       # matches the 6-entry input_normalizer (unused in forward)
    nf = 32
    n_layers = 2
    n_actions = 4
    batch = 256

    key = jax.random.PRNGKey(0)
    kx, kp = jax.random.split(key)
    # positive state values (forward takes log(x + 1e-10))
    x = jax.random.uniform(kx, (batch, state_size), jnp.float32, 0.1, 1000.0)
    params = init_params(kp, state_size, nf, n_layers, n_actions)
    w_in, w_sq, v_slab = pack_params(params, state_size, nf, n_layers, n_actions)

    # grid=(1,) on single-core v5e/v6e; grid=(2,) (both TensorCores) on v7x.
    batch_tile = choose_batch_tile(batch)

    policy, value = a2c_forward_jit(
        x, w_in, w_sq, v_slab,
        n_layers=n_layers, nf=nf, n_actions=n_actions,
        batch_tile=batch_tile, feat=FEAT)
    jax.block_until_ready((policy, value))

    assert policy.shape == (batch, n_actions) and value.shape == (batch, 1)

    # (1) check against a reference using the same bf16-operand / f32-accumulate matmuls
    pol_m, val_m = a2c_reference(x, params, matmul_dtype=jnp.bfloat16)
    assert jnp.allclose(policy, pol_m, atol=3e-2, rtol=3e-2)
    assert jnp.allclose(value, val_m, atol=3e-2, rtol=3e-2)

    # (2) semantic check against the exact f32 PyTorch-equivalent forward; tolerance
    #     reflects the bf16 weight/activation quantization (review-flagged tradeoff).
    pol_f, val_f = a2c_reference(x, params)
    assert jnp.allclose(policy, pol_f, atol=1e-1, rtol=1e-1)
    assert jnp.allclose(value, val_f, atol=1e-1, rtol=1e-1)

    print("KERNEL_OK")
</pallas_src>

<mosaic_0001>
module attributes {stable_mosaic.version = 11 : i64} {
  func.func @_a2c_kernel(%arg0: i32, %arg1: memref<256x16xf32, #tpu.memory_space<vmem>>, %arg2: memref<16x128xbf16, #tpu.memory_space<vmem>>, %arg3: memref<4x128x128xbf16, #tpu.memory_space<vmem>>, %arg4: memref<13x128xf32, #tpu.memory_space<vmem>>, %arg5: memref<256x128xf32, #tpu.memory_space<vmem>>) attributes {dimension_semantics = [#tpu.dimension_semantics<parallel>], iteration_bounds = array<i64: 1>, scalar_prefetch = 0 : i64, scratch_operands = 0 : i64, tpu.core_type = #tpu.core_type<tc>, window_params = [{transform_indices = @transform_0, window_bounds = array<i64: 256, 16>}, {pipeline_mode = #tpu.pipeline_mode<synchronous>, transform_indices = @transform_1, window_bounds = array<i64: 16, 128>}, {pipeline_mode = #tpu.pipeline_mode<synchronous>, transform_indices = @transform_2, window_bounds = array<i64: 4, 128, 128>}, {pipeline_mode = #tpu.pipeline_mode<synchronous>, transform_indices = @transform_3, window_bounds = array<i64: 13, 128>}, {transform_indices = @transform_4, window_bounds = array<i64: 256, 128>}]} {
    %0 = tpu.iota {dimensions = array<i32: 1>} : vector<256x128xi32>
    %c32_i32 = arith.constant 32 : i32
    %1 = vector.broadcast %c32_i32 : i32 to vector<256x128xi32>
    %2 = arith.cmpi slt, %0, %1 : vector<256x128xi32>
    %3 = arith.extui %2 : vector<256x128xi1> to vector<256x128xi32>
    %4 = arith.sitofp %3 : vector<256x128xi32> to vector<256x128xf32>
    %c0 = arith.constant 0 : index
    %c0_0 = arith.constant 0 : index
    %5 = vector.load %arg1[%c0, %c0_0] : memref<256x16xf32, #tpu.memory_space<vmem>>, vector<256x16xf32>
    %cst = arith.constant 1.000000e-10 : f32
    %6 = vector.broadcast %cst : f32 to vector<256x16xf32>
    %7 = arith.addf %5, %6 : vector<256x16xf32>
    %8 = math.log %7 : vector<256x16xf32>
    %c0_1 = arith.constant 0 : index
    %c0_2 = arith.constant 0 : index
    %9 = vector.load %arg2[%c0_1, %c0_2] : memref<16x128xbf16, #tpu.memory_space<vmem>>, vector<16x128xbf16>
    %10 = arith.truncf %8 : vector<256x16xf32> to vector<256x16xbf16>
    %cst_3 = arith.constant dense<0.000000e+00> : vector<256x128xf32>
    %11 = tpu.matmul %10, %9, %cst_3 {dimension_numbers = #tpu.dot_dimension_numbers<[1], [0], [0], [1], [0, 0, 1, 1], [], []>} : vector<256x16xbf16>, vector<16x128xbf16>, vector<256x128xf32> -> vector<256x128xf32>
    %c0_4 = arith.constant 0 : index
    %c0_5 = arith.constant 0 : index
    %12 = vector.load %arg4[%c0_4, %c0_5] : memref<13x128xf32, #tpu.memory_space<vmem>>, vector<1x128xf32>
    %13 = vector.broadcast %12 : vector<1x128xf32> to vector<256x128xf32>
    %14 = arith.addf %11, %13 : vector<256x128xf32>
    %c1 = arith.constant 1 : index
    %c0_6 = arith.constant 0 : index
    %15 = vector.load %arg4[%c1, %c0_6] : memref<13x128xf32, #tpu.memory_space<vmem>>, vector<1x128xf32>
    %c2 = arith.constant 2 : index
    %c0_7 = arith.constant 0 : index
    %16 = vector.load %arg4[%c2, %c0_7] : memref<13x128xf32, #tpu.memory_space<vmem>>, vector<1x128xf32>
    %cst_8 = arith.constant dense<0.000000e+00> : vector<256xf32>
    %17 = vector.multi_reduction <add>, %14, %cst_8 [1] : vector<256x128xf32> to vector<256xf32>
    %18 = vector.shape_cast %17 : vector<256xf32> to vector<256x1xf32>
    %cst_9 = arith.constant 3.125000e-02 : f32
    %19 = vector.broadcast %cst_9 : f32 to vector<256x1xf32>
    %20 = arith.mulf %18, %19 : vector<256x1xf32>
    %21 = vector.broadcast %20 : vector<256x1xf32> to vector<256x128xf32>
    %22 = arith.subf %14, %21 : vector<256x128xf32>
    %23 = arith.mulf %22, %4 : vector<256x128xf32>
    %24 = arith.mulf %23, %23 : vector<256x128xf32>
    %cst_10 = arith.constant dense<0.000000e+00> : vector<256xf32>
    %25 = vector.multi_reduction <add>, %24, %cst_10 [1] : vector<256x128xf32> to vector<256xf32>
    %26 = vector.shape_cast %25 : vector<256xf32> to vector<256x1xf32>
    %cst_11 = arith.constant 3.125000e-02 : f32
    %27 = vector.broadcast %cst_11 : f32 to vector<256x1xf32>
    %28 = arith.mulf %26, %27 : vector<256x1xf32>
    %cst_12 = arith.constant 9.99999974E-6 : f32
    %29 = vector.broadcast %cst_12 : f32 to vector<256x1xf32>
    %30 = arith.addf %28, %29 : vector<256x1xf32>
    %31 = math.rsqrt %30 : vector<256x1xf32>
    %32 = vector.broadcast %31 : vector<256x1xf32> to vector<256x128xf32>
    %33 = arith.mulf %23, %32 : vector<256x128xf32>
    %34 = vector.broadcast %15 : vector<1x128xf32> to vector<256x128xf32>
    %35 = arith.mulf %33, %34 : vector<256x128xf32>
    %36 = vector.broadcast %16 : vector<1x128xf32> to vector<256x128xf32>
    %37 = arith.addf %35, %36 : vector<256x128xf32>
    %cst_13 = arith.constant 0.000000e+00 : f32
    %38 = vector.broadcast %cst_13 : f32 to vector<256x128xf32>
    %39 = arith.maximumf %37, %38 : vector<256x128xf32>
    %c0_14 = arith.constant 0 : index
    %c0_15 = arith.constant 0 : index
    %c0_16 = arith.constant 0 : index
    %40 = vector.load %arg3[%c0_14, %c0_15, %c0_16] : memref<4x128x128xbf16, #tpu.memory_space<vmem>>, vector<1x128x128xbf16>
    %41 = vector.shape_cast %40 : vector<1x128x128xbf16> to vector<128x128xbf16>
    %42 = arith.truncf %39 : vector<256x128xf32> to vector<256x128xbf16>
    %cst_17 = arith.constant dense<0.000000e+00> : vector<256x128xf32>
    %43 = tpu.matmul %42, %41, %cst_17 {dimension_numbers = #tpu.dot_dimension_numbers<[1], [0], [0], [1], [0, 0, 1, 1], [], []>} : vector<256x128xbf16>, vector<128x128xbf16>, vector<256x128xf32> -> vector<256x128xf32>
    %c3 = arith.constant 3 : index
    %c0_18 = arith.constant 0 : index
    %44 = vector.load %arg4[%c3, %c0_18] : memref<13x128xf32, #tpu.memory_space<vmem>>, vector<1x128xf32>
    %45 = vector.broadcast %44 : vector<1x128xf32> to vector<256x128xf32>
    %46 = arith.addf %43, %45 : vector<256x128xf32>
    %c4 = arith.constant 4 : index
    %c0_19 = arith.constant 0 : index
    %47 = vector.load %arg4[%c4, %c0_19] : memref<13x128xf32, #tpu.memory_space<vmem>>, vector<1x128xf32>
    %c5 = arith.constant 5 : index
    %c0_20 = arith.constant 0 : index
    %48 = vector.load %arg4[%c5, %c0_20] : memref<13x128xf32, #tpu.memory_space<vmem>>, vector<1x128xf32>
    %cst_21 = arith.constant dense<0.000000e+00> : vector<256xf32>
    %49 = vector.multi_reduction <add>, %46, %cst_21 [1] : vector<256x128xf32> to vector<256xf32>
    %50 = vector.shape_cast %49 : vector<256xf32> to vector<256x1xf32>
    %cst_22 = arith.constant 3.125000e-02 : f32
    %51 = vector.broadcast %cst_22 : f32 to vector<256x1xf32>
    %52 = arith.mulf %50, %51 : vector<256x1xf32>
    %53 = vector.broadcast %52 : vector<256x1xf32> to vector<256x128xf32>
    %54 = arith.subf %46, %53 : vector<256x128xf32>
    %55 = arith.mulf %54, %4 : vector<256x128xf32>
    %56 = arith.mulf %55, %55 : vector<256x128xf32>
    %cst_23 = arith.constant dense<0.000000e+00> : vector<256xf32>
    %57 = vector.multi_reduction <add>, %56, %cst_23 [1] : vector<256x128xf32> to vector<256xf32>
    %58 = vector.shape_cast %57 : vector<256xf32> to vector<256x1xf32>
    %cst_24 = arith.constant 3.125000e-02 : f32
    %59 = vector.broadcast %cst_24 : f32 to vector<256x1xf32>
    %60 = arith.mulf %58, %59 : vector<256x1xf32>
    %cst_25 = arith.constant 9.99999974E-6 : f32
    %61 = vector.broadcast %cst_25 : f32 to vector<256x1xf32>
    %62 = arith.addf %60, %61 : vector<256x1xf32>
    %63 = math.rsqrt %62 : vector<256x1xf32>
    %64 = vector.broadcast %63 : vector<256x1xf32> to vector<256x128xf32>
    %65 = arith.mulf %55, %64 : vector<256x128xf32>
    %66 = vector.broadcast %47 : vector<1x128xf32> to vector<256x128xf32>
    %67 = arith.mulf %65, %66 : vector<256x128xf32>
    %68 = vector.broadcast %48 : vector<1x128xf32> to vector<256x128xf32>
    %69 = arith.addf %67, %68 : vector<256x128xf32>
    %cst_26 = arith.constant 0.000000e+00 : f32
    %70 = vector.broadcast %cst_26 : f32 to vector<256x128xf32>
    %71 = arith.maximumf %69, %70 : vector<256x128xf32>
    %c1_27 = arith.constant 1 : index
    %c0_28 = arith.constant 0 : index
    %c0_29 = arith.constant 0 : index
    %72 = vector.load %arg3[%c1_27, %c0_28, %c0_29] : memref<4x128x128xbf16, #tpu.memory_space<vmem>>, vector<1x128x128xbf16>
    %73 = vector.shape_cast %72 : vector<1x128x128xbf16> to vector<128x128xbf16>
    %74 = arith.truncf %71 : vector<256x128xf32> to vector<256x128xbf16>
    %cst_30 = arith.constant dense<0.000000e+00> : vector<256x128xf32>
    %75 = tpu.matmul %74, %73, %cst_30 {dimension_numbers = #tpu.dot_dimension_numbers<[1], [0], [0], [1], [0, 0, 1, 1], [], []>} : vector<256x128xbf16>, vector<128x128xbf16>, vector<256x128xf32> -> vector<256x128xf32>
    %c6 = arith.constant 6 : index
    %c0_31 = arith.constant 0 : index
    %76 = vector.load %arg4[%c6, %c0_31] : memref<13x128xf32, #tpu.memory_space<vmem>>, vector<1x128xf32>
    %77 = vector.broadcast %76 : vector<1x128xf32> to vector<256x128xf32>
    %78 = arith.addf %75, %77 : vector<256x128xf32>
    %c7 = arith.constant 7 : index
    %c0_32 = arith.constant 0 : index
    %79 = vector.load %arg4[%c7, %c0_32] : memref<13x128xf32, #tpu.memory_space<vmem>>, vector<1x128xf32>
    %c8 = arith.constant 8 : index
    %c0_33 = arith.constant 0 : index
    %80 = vector.load %arg4[%c8, %c0_33] : memref<13x128xf32, #tpu.memory_space<vmem>>, vector<1x128xf32>
    %cst_34 = arith.constant dense<0.000000e+00> : vector<256xf32>
    %81 = vector.multi_reduction <add>, %78, %cst_34 [1] : vector<256x128xf32> to vector<256xf32>
    %82 = vector.shape_cast %81 : vector<256xf32> to vector<256x1xf32>
    %cst_35 = arith.constant 3.125000e-02 : f32
    %83 = vector.broadcast %cst_35 : f32 to vector<256x1xf32>
    %84 = arith.mulf %82, %83 : vector<256x1xf32>
    %85 = vector.broadcast %84 : vector<256x1xf32> to vector<256x128xf32>
    %86 = arith.subf %78, %85 : vector<256x128xf32>
    %87 = arith.mulf %86, %4 : vector<256x128xf32>
    %88 = arith.mulf %87, %87 : vector<256x128xf32>
    %cst_36 = arith.constant dense<0.000000e+00> : vector<256xf32>
    %89 = vector.multi_reduction <add>, %88, %cst_36 [1] : vector<256x128xf32> to vector<256xf32>
    %90 = vector.shape_cast %89 : vector<256xf32> to vector<256x1xf32>
    %cst_37 = arith.constant 3.125000e-02 : f32
    %91 = vector.broadcast %cst_37 : f32 to vector<256x1xf32>
    %92 = arith.mulf %90, %91 : vector<256x1xf32>
    %cst_38 = arith.constant 9.99999974E-6 : f32
    %93 = vector.broadcast %cst_38 : f32 to vector<256x1xf32>
    %94 = arith.addf %92, %93 : vector<256x1xf32>
    %95 = math.rsqrt %94 : vector<256x1xf32>
    %96 = vector.broadcast %95 : vector<256x1xf32> to vector<256x128xf32>
    %97 = arith.mulf %87, %96 : vector<256x128xf32>
    %98 = vector.broadcast %79 : vector<1x128xf32> to vector<256x128xf32>
    %99 = arith.mulf %97, %98 : vector<256x128xf32>
    %100 = vector.broadcast %80 : vector<1x128xf32> to vector<256x128xf32>
    %101 = arith.addf %99, %100 : vector<256x128xf32>
    %cst_39 = arith.constant 0.000000e+00 : f32
    %102 = vector.broadcast %cst_39 : f32 to vector<256x128xf32>
    %103 = arith.maximumf %101, %102 : vector<256x128xf32>
    %c2_40 = arith.constant 2 : index
    %c0_41 = arith.constant 0 : index
    %c0_42 = arith.constant 0 : index
    %104 = vector.load %arg3[%c2_40, %c0_41, %c0_42] : memref<4x128x128xbf16, #tpu.memory_space<vmem>>, vector<1x128x128xbf16>
    %105 = vector.shape_cast %104 : vector<1x128x128xbf16> to vector<128x128xbf16>
    %106 = arith.truncf %103 : vector<256x128xf32> to vector<256x128xbf16>
    %cst_43 = arith.constant dense<0.000000e+00> : vector<256x128xf32>
    %107 = tpu.matmul %106, %105, %cst_43 {dimension_numbers = #tpu.dot_dimension_numbers<[1], [0], [0], [1], [0, 0, 1, 1], [], []>} : vector<256x128xbf16>, vector<128x128xbf16>, vector<256x128xf32> -> vector<256x128xf32>
    %c9 = arith.constant 9 : index
    %c0_44 = arith.constant 0 : index
    %108 = vector.load %arg4[%c9, %c0_44] : memref<13x128xf32, #tpu.memory_space<vmem>>, vector<1x128xf32>
    %109 = vector.broadcast %108 : vector<1x128xf32> to vector<256x128xf32>
    %110 = arith.addf %107, %109 : vector<256x128xf32>
    %c10 = arith.constant 10 : index
    %c0_45 = arith.constant 0 : index
    %111 = vector.load %arg4[%c10, %c0_45] : memref<13x128xf32, #tpu.memory_space<vmem>>, vector<1x128xf32>
    %c11 = arith.constant 11 : index
    %c0_46 = arith.constant 0 : index
    %112 = vector.load %arg4[%c11, %c0_46] : memref<13x128xf32, #tpu.memory_space<vmem>>, vector<1x128xf32>
    %cst_47 = arith.constant dense<0.000000e+00> : vector<256xf32>
    %113 = vector.multi_reduction <add>, %110, %cst_47 [1] : vector<256x128xf32> to vector<256xf32>
    %114 = vector.shape_cast %113 : vector<256xf32> to vector<256x1xf32>
    %cst_48 = arith.constant 3.125000e-02 : f32
    %115 = vector.broadcast %cst_48 : f32 to vector<256x1xf32>
    %116 = arith.mulf %114, %115 : vector<256x1xf32>
    %117 = vector.broadcast %116 : vector<256x1xf32> to vector<256x128xf32>
    %118 = arith.subf %110, %117 : vector<256x128xf32>
    %119 = arith.mulf %118, %4 : vector<256x128xf32>
    %120 = arith.mulf %119, %119 : vector<256x128xf32>
    %cst_49 = arith.constant dense<0.000000e+00> : vector<256xf32>
    %121 = vector.multi_reduction <add>, %120, %cst_49 [1] : vector<256x128xf32> to vector<256xf32>
    %122 = vector.shape_cast %121 : vector<256xf32> to vector<256x1xf32>
    %cst_50 = arith.constant 3.125000e-02 : f32
    %123 = vector.broadcast %cst_50 : f32 to vector<256x1xf32>
    %124 = arith.mulf %122, %123 : vector<256x1xf32>
    %cst_51 = arith.constant 9.99999974E-6 : f32
    %125 = vector.broadcast %cst_51 : f32 to vector<256x1xf32>
    %126 = arith.addf %124, %125 : vector<256x1xf32>
    %127 = math.rsqrt %126 : vector<256x1xf32>
    %128 = vector.broadcast %127 : vector<256x1xf32> to vector<256x128xf32>
    %129 = arith.mulf %119, %128 : vector<256x128xf32>
    %130 = vector.broadcast %111 : vector<1x128xf32> to vector<256x128xf32>
    %131 = arith.mulf %129, %130 : vector<256x128xf32>
    %132 = vector.broadcast %112 : vector<1x128xf32> to vector<256x128xf32>
    %133 = arith.addf %131, %132 : vector<256x128xf32>
    %cst_52 = arith.constant 0.000000e+00 : f32
    %134 = vector.broadcast %cst_52 : f32 to vector<256x128xf32>
    %135 = arith.maximumf %133, %134 : vector<256x128xf32>
    %136 = arith.addf %135, %71 : vector<256x128xf32>
    %c3_53 = arith.constant 3 : index
    %c0_54 = arith.constant 0 : index
    %c0_55 = arith.constant 0 : index
    %137 = vector.load %arg3[%c3_53, %c0_54, %c0_55] : memref<4x128x128xbf16, #tpu.memory_space<vmem>>, vector<1x128x128xbf16>
    %138 = vector.shape_cast %137 : vector<1x128x128xbf16> to vector<128x128xbf16>
    %139 = arith.truncf %136 : vector<256x128xf32> to vector<256x128xbf16>
    %cst_56 = arith.constant dense<0.000000e+00> : vector<256x128xf32>
    %140 = tpu.matmul %139, %138, %cst_56 {dimension_numbers = #tpu.dot_dimension_numbers<[1], [0], [0], [1], [0, 0, 1, 1], [], []>} : vector<256x128xbf16>, vector<128x128xbf16>, vector<256x128xf32> -> vector<256x128xf32>
    %c12 = arith.constant 12 : index
    %c0_57 = arith.constant 0 : index
    %141 = vector.load %arg4[%c12, %c0_57] : memref<13x128xf32, #tpu.memory_space<vmem>>, vector<1x128xf32>
    %142 = vector.broadcast %141 : vector<1x128xf32> to vector<256x128xf32>
    %143 = arith.addf %140, %142 : vector<256x128xf32>
    %c0_58 = arith.constant 0 : index
    %c0_59 = arith.constant 0 : index
    %144 = vector.load %arg5[%c0_58, %c0_59] : memref<256x128xf32, #tpu.memory_space<vmem>>, vector<256x128xf32>
    tpu.vector_store %arg5[%c0_58, %c0_59], %143 {strides = array<i32>} : memref<256x128xf32, #tpu.memory_space<vmem>>, vector<256x128xf32>,
    return
  }
  func.func @transform_0(%arg0: i32) -> (i32, i32) {
    %c0_i32 = arith.constant 0 : i32
    %c0_i32_0 = arith.constant 0 : i32
    return %arg0, %c0_i32 : i32, i32
  }
  func.func @transform_1(%arg0: i32) -> (i32, i32) {
    %c0_i32 = arith.constant 0 : i32
    %c0_i32_0 = arith.constant 0 : i32
    %c0_i32_1 = arith.constant 0 : i32
    return %c0_i32, %c0_i32_0 : i32, i32
  }
  func.func @transform_2(%arg0: i32) -> (i32, i32, i32) {
    %c0_i32 = arith.constant 0 : i32
    %c0_i32_0 = arith.constant 0 : i32
    %c0_i32_1 = arith.constant 0 : i32
    %c0_i32_2 = arith.constant 0 : i32
    return %c0_i32, %c0_i32_0, %c0_i32_1 : i32, i32, i32
  }
  func.func @transform_3(%arg0: i32) -> (i32, i32) {
    %c0_i32 = arith.constant 0 : i32
    %c0_i32_0 = arith.constant 0 : i32
    %c0_i32_1 = arith.constant 0 : i32
    return %c0_i32, %c0_i32_0 : i32, i32
  }
  func.func @transform_4(%arg0: i32) -> (i32, i32) {
    %c0_i32 = arith.constant 0 : i32
    %c0_i32_0 = arith.constant 0 : i32
    return %arg0, %c0_i32 : i32, i32
  }
}

</mosaic_0001>

<llo_original>
// kernel: a2c_forward.1
$region0: #{a2c_forward.1}
  #allocation0 [shape = 'u32[]', space=smem, size = 0x4, offset = 0x4, fixed_abs, tag = 'smem constant byte address 0x4 - core index']
  #allocation1 [shape = 'u32[144,128]{1,0:T(1,128)}', space=vmem, size = 0x12000, scoped, tag = 'internal scratch']
  %s0 = inlined_call_operand.vmem [shape: f32[256,16], index: 0, kind: input, shape index: {}]
  %s1 = inlined_call_operand.vmem [shape: bf16[16,128], index: 1, kind: input, shape index: {}]
  %s2 = inlined_call_operand.vmem [shape: bf16[4,128,128], index: 2, kind: input, shape index: {}]
  %s3 = inlined_call_operand.vmem [shape: f32[13,128], index: 3, kind: input, shape index: {}]
  %s4 = inlined_call_operand.vmem [shape: f32[256,128], index: 4, kind: output, shape index: {}]
  %s5 = sld [smem:[#allocation0]]
  $region26: #{a2c_forward.1} parent=0
    _
  %s7 = ssub.s32 1, %s5
  %s8 = scalar_select 0, %s7, %s5
  // Predicated region
  $region2: #{a2c_forward.1} parent=0 // pred_check
    _
  $region3: #{a2c_forward.1} parent=0 // pred_check_branch
    %10 = sbr.rel (0) target = $region5
  $region4: #{a2c_forward.1} parent=0 // pred_region
    _
  $region5: #{a2c_forward.1} parent=0 // pred_fallthru
    _
  // Predicated region
  $region6: #{a2c_forward.1} parent=0 // pred_check
    _
  $region7: #{a2c_forward.1} parent=0 // pred_check_branch
    %12 = sbr.rel (0) target = $region9
  $region8: #{a2c_forward.1} parent=0 // pred_region
    _
  $region9: #{a2c_forward.1} parent=0 // pred_fallthru
    _
  // Predicated region
  $region10: #{a2c_forward.1} parent=0 // pred_check
    _
  $region11: #{a2c_forward.1} parent=0 // pred_check_branch
    %14 = sbr.rel (0) target = $region13
  $region12: #{a2c_forward.1} parent=0 // pred_region
    _
  $region13: #{a2c_forward.1} parent=0 // pred_fallthru
    _
  // Predicated region
  $region14: #{a2c_forward.1} parent=0 // pred_check
    _
  $region15: #{a2c_forward.1} parent=0 // pred_check_branch
    %16 = sbr.rel (0) target = $region17
  $region16: #{a2c_forward.1} parent=0 // pred_region
    _
  $region17: #{a2c_forward.1} parent=0 // pred_fallthru
    _
  %v18 = vlaneseq
  %v19 = vand.u32 %v18, 127
  %vm20 = vcmp.lt.s32.totalorder %v19, 32
  %v21 = vsel %vm20, 1, 0
  %v22 = vcvt.s32.f32 %v21
  %v23 = vld [vmem:[%s0] sm:$0xff]
  %v24 = vld [vmem:[%s0 + $0x8] sm:$0xff]
  %v25 = vld [vmem:[%s0 + $0x10] sm:$0xff]
  %v26 = vld [vmem:[%s0 + $0x18] sm:$0xff]
  %v27 = vld [vmem:[%s0 + $0x20] sm:$0xff]
  %v28 = vld [vmem:[%s0 + $0x28] sm:$0xff]
  %v29 = vld [vmem:[%s0 + $0x30] sm:$0xff]
  %v30 = vld [vmem:[%s0 + $0x38] sm:$0xff]
  %v31 = vld [vmem:[%s0 + $0x40] sm:$0xff]
  %v32 = vld [vmem:[%s0 + $0x48] sm:$0xff]
  %v33 = vld [vmem:[%s0 + $0x50] sm:$0xff]
  %v34 = vld [vmem:[%s0 + $0x58] sm:$0xff]
  %v35 = vld [vmem:[%s0 + $0x60] sm:$0xff]
  %v36 = vld [vmem:[%s0 + $0x68] sm:$0xff]
  %v37 = vld [vmem:[%s0 + $0x70] sm:$0xff]
  %v38 = vld [vmem:[%s0 + $0x78] sm:$0xff]
  %v39 = vld [vmem:[%s0 + $0x80] sm:$0xff]
  %v40 = vld [vmem:[%s0 + $0x88] sm:$0xff]
  %v41 = vld [vmem:[%s0 + $0x90] sm:$0xff]
  %v42 = vld [vmem:[%s0 + $0x98] sm:$0xff]
  %v43 = vld [vmem:[%s0 + $0xa0] sm:$0xff]
  %v44 = vld [vmem:[%s0 + $0xa8] sm:$0xff]
  %v45 = vld [vmem:[%s0 + $0xb0] sm:$0xff]
  %v46 = vld [vmem:[%s0 + $0xb8] sm:$0xff]
  %v47 = vld [vmem:[%s0 + $0xc0] sm:$0xff]
  %v48 = vld [vmem:[%s0 + $0xc8] sm:$0xff]
  %v49 = vld [vmem:[%s0 + $0xd0] sm:$0xff]
  %v50 = vld [vmem:[%s0 + $0xd8] sm:$0xff]
  %v51 = vld [vmem:[%s0 + $0xe0] sm:$0xff]
  %v52 = vld [vmem:[%s0 + $0xe8] sm:$0xff]
  %v53 = vld [vmem:[%s0 + $0xf0] sm:$0xff]
  %v54 = vld [vmem:[%s0 + $0xf8] sm:$0xff]
  %v55 = vadd.f32 %v23, 1e-10
  %v56 = vadd.f32 %v24, 1e-10
  %v57 = vadd.f32 %v25, 1e-10
  %v58 = vadd.f32 %v26, 1e-10
  %v59 = vadd.f32 %v27, 1e-10
  %v60 = vadd.f32 %v28, 1e-10
  %v61 = vadd.f32 %v29, 1e-10
  %v62 = vadd.f32 %v30, 1e-10
  %v63 = vadd.f32 %v31, 1e-10
  %v64 = vadd.f32 %v32, 1e-10
  %v65 = vadd.f32 %v33, 1e-10
  %v66 = vadd.f32 %v34, 1e-10
  %v67 = vadd.f32 %v35, 1e-10
  %v68 = vadd.f32 %v36, 1e-10
  %v69 = vadd.f32 %v37, 1e-10
  %v70 = vadd.f32 %v38, 1e-10
  %v71 = vadd.f32 %v39, 1e-10
  %v72 = vadd.f32 %v40, 1e-10
  %v73 = vadd.f32 %v41, 1e-10
  %v74 = vadd.f32 %v42, 1e-10
  %v75 = vadd.f32 %v43, 1e-10
  %v76 = vadd.f32 %v44, 1e-10
  %v77 = vadd.f32 %v45, 1e-10
  %v78 = vadd.f32 %v46, 1e-10
  %v79 = vadd.f32 %v47, 1e-10
  %v80 = vadd.f32 %v48, 1e-10
  %v81 = vadd.f32 %v49, 1e-10
  %v82 = vadd.f32 %v50, 1e-10
  %v83 = vadd.f32 %v51, 1e-10
  %v84 = vadd.f32 %v52, 1e-10
  %v85 = vadd.f32 %v53, 1e-10
  %v86 = vadd.f32 %v54, 1e-10
  %v87 = vlog2.pop %v55
  %v88 = vmul.f32 %v87, 0.6931472
  %v89 = vlog2.pop %v56
  %v90 = vmul.f32 %v89, 0.6931472
  %v91 = vlog2.pop %v57
  %v92 = vmul.f32 %v91, 0.6931472
  %v93 = vlog2.pop %v58
  %v94 = vmul.f32 %v93, 0.6931472
  %v95 = vlog2.pop %v59
  %v96 = vmul.f32 %v95, 0.6931472
  %v97 = vlog2.pop %v60
  %v98 = vmul.f32 %v97, 0.6931472
  %v99 = vlog2.pop %v61
  %v100 = vmul.f32 %v99, 0.6931472
  %v101 = vlog2.pop %v62
  %v102 = vmul.f32 %v101, 0.6931472
  %v103 = vlog2.pop %v63
  %v104 = vmul.f32 %v103, 0.6931472
  %v105 = vlog2.pop %v64
  %v106 = vmul.f32 %v105, 0.6931472
  %v107 = vlog2.pop %v65
  %v108 = vmul.f32 %v107, 0.6931472
  %v109 = vlog2.pop %v66
  %v110 = vmul.f32 %v109, 0.6931472
  %v111 = vlog2.pop %v67
  %v112 = vmul.f32 %v111, 0.6931472
  %v113 = vlog2.pop %v68
  %v114 = vmul.f32 %v113, 0.6931472
  %v115 = vlog2.pop %v69
  %v116 = vmul.f32 %v115, 0.6931472
  %v117 = vlog2.pop %v70
  %v118 = vmul.f32 %v117, 0.6931472
  %v119 = vlog2.pop %v71
  %v120 = vmul.f32 %v119, 0.6931472
  %v121 = vlog2.pop %v72
  %v122 = vmul.f32 %v121, 0.6931472
  %v123 = vlog2.pop %v73
  %v124 = vmul.f32 %v123, 0.6931472
  %v125 = vlog2.pop %v74
  %v126 = vmul.f32 %v125, 0.6931472
  %v127 = vlog2.pop %v75
  %v128 = vmul.f32 %v127, 0.6931472
  %v129 = vlog2.pop %v76
  %v130 = vmul.f32 %v129, 0.6931472
  %v131 = vlog2.pop %v77
  %v132 = vmul.f32 %v131, 0.6931472
  %v133 = vlog2.pop %v78
  %v134 = vmul.f32 %v133, 0.6931472
  %v135 = vlog2.pop %v79
  %v136 = vmul.f32 %v135, 0.6931472
  %v137 = vlog2.pop %v80
  %v138 = vmul.f32 %v137, 0.6931472
  %v139 = vlog2.pop %v81
  %v140 = vmul.f32 %v139, 0.6931472
  %v141 = vlog2.pop %v82
  %v142 = vmul.f32 %v141, 0.6931472
  %v143 = vlog2.pop %v83
  %v144 = vmul.f32 %v143, 0.6931472
  %v145 = vlog2.pop %v84
  %v146 = vmul.f32 %v145, 0.6931472
  %v147 = vlog2.pop %v85
  %v148 = vmul.f32 %v147, 0.6931472
  %v149 = vlog2.pop %v86
  %v150 = vmul.f32 %v149, 0.6931472
  %v151 = vld [vmem:[%s1] sm:$0xf]
  %v152 = vld [vmem:[%s1 + $0x4] sm:$0xf]
  %v153 = vpack.c.bf16 %v90, %v88
  %v154 = vpack.c.bf16 %v94, %v92
  %v155 = vpack.c.bf16 %v98, %v96
  %v156 = vpack.c.bf16 %v102, %v100
  %v157 = vpack.c.bf16 %v106, %v104
  %v158 = vpack.c.bf16 %v110, %v108
  %v159 = vpack.c.bf16 %v114, %v112
  %v160 = vpack.c.bf16 %v118, %v116
  %v161 = vpack.c.bf16 %v122, %v120
  %v162 = vpack.c.bf16 %v126, %v124
  %v163 = vpack.c.bf16 %v130, %v128
  %v164 = vpack.c.bf16 %v134, %v132
  %v165 = vpack.c.bf16 %v138, %v136
  %v166 = vpack.c.bf16 %v142, %v140
  %v167 = vpack.c.bf16 %v146, %v144
  %v168 = vpack.c.bf16 %v150, %v148
  %v169 = vld [vmem:[%s3] sm:$0x1]
  %v170 = vlaneseq
  %v171 = vshrl.u32 %v170, 7
  %v172 = vsub.s32 0, %v171
  %v173 = vrot.slane %v169, %v172
  %v176 = vunpack.c.l.b16 %v151
  %v177 = vunpack.c.l.b16 %v152
  %v178 = vpack.c.b16 %v177, %v176
  %vm180 = vcmask 130048
  %v182 = vsel %vm180, %v153, 0
  %v185 = vsel %vm180, %v154, 0
  %v188 = vsel %vm180, %v155, 0
  %v191 = vsel %vm180, %v156, 0
  %v194 = vsel %vm180, %v157, 0
  %v197 = vsel %vm180, %v158, 0
  %v200 = vsel %vm180, %v159, 0
  %v203 = vsel %vm180, %v160, 0
  %v206 = vsel %vm180, %v161, 0
  %v209 = vsel %vm180, %v162, 0
  %v212 = vsel %vm180, %v163, 0
  %v215 = vsel %vm180, %v164, 0
  %v218 = vsel %vm180, %v165, 0
  %v221 = vsel %vm180, %v166, 0
  %v224 = vsel %vm180, %v167, 0
  %v227 = vsel %vm180, %v168, 0
  %229 = vmatprep.subr.bf16.mxu0 0
  %230 = vmatpush1.bf16.msra.mxu0 %v178
  %231 = vmatprep.subr.bf16.mxu0 0
  %232 = vmatpush1.bf16.msra.mxu0 0
  %233 = vmatprep.subr.bf16.mxu0 0
  %234 = vmatpush1.bf16.msra.mxu0 0
  %235 = vmatprep.subr.bf16.mxu0 0
  %236 = vmatpush1.bf16.msra.mxu0 0
  %237 = vmatprep.subr.bf16.mxu0 0
  %238 = vmatpush1.bf16.msra.mxu0 0
  %239 = vmatprep.subr.bf16.mxu0 0
  %240 = vmatpush1.bf16.msra.mxu0 0
  %241 = vmatprep.subr.bf16.mxu0 0
  %242 = vmatpush1.bf16.msra.mxu0 0
  %243 = vmatprep.subr.bf16.mxu0 0
  %244 = vmatpush1.bf16.msra.mxu0 0
  %245 = vmatprep.subr.bf16.mxu0 0
  %246 = vmatpush1.bf16.msra.mxu0 0
  %247 = vmatprep.subr.bf16.mxu0 0
  %248 = vmatpush1.bf16.msra.mxu0 0
  %249 = vmatprep.subr.bf16.mxu0 0
  %250 = vmatpush1.bf16.msra.mxu0 0
  %251 = vmatprep.subr.bf16.mxu0 0
  %252 = vmatpush1.bf16.msra.mxu0 0
  %253 = vmatprep.subr.bf16.mxu0 0
  %254 = vmatpush1.bf16.msra.mxu0 0
  %255 = vmatprep.subr.bf16.mxu0 0
  %256 = vmatpush1.bf16.msra.mxu0 0
  %257 = vmatprep.subr.bf16.mxu0 0
  %258 = vmatpush1.bf16.msra.mxu0 0
  %259 = vmatprep.subr.bf16.mxu0 0
  %260 = vmatpush1.bf16.msra.mxu0 0
  %261 = vmatprep.mubr.bf16.mxu0 0
  %262 = vmatmul.mubr.bf16.gmra.mrb[0].mxu0 %v182
  %v263 = vpop.f32.mrb[0].mxu0
  %v264 = vadd.f32 %v173, %v263
  %v265 = vpop.f32.mrb[0].mxu0
  %v266 = vpop.f32.mrb[0].mxu0
  %v267 = vadd.f32 %v173, %v266
  %v268 = vpop.f32.mrb[0].mxu0
  %269 = vmatprep.mubr.bf16.mxu0 0
  %270 = vmatmul.mubr.bf16.gmra.mrb[0].mxu0 %v185
  %v271 = vpop.f32.mrb[0].mxu0
  %v272 = vadd.f32 %v173, %v271
  %v273 = vpop.f32.mrb[0].mxu0
  %v274 = vpop.f32.mrb[0].mxu0
  %v275 = vadd.f32 %v173, %v274
  %v276 = vpop.f32.mrb[0].mxu0
  %277 = vmatprep.mubr.bf16.mxu0 0
  %278 = vmatmul.mubr.bf16.gmra.mrb[0].mxu0 %v188
  %v279 = vpop.f32.mrb[0].mxu0
  %v280 = vadd.f32 %v173, %v279
  %v281 = vpop.f32.mrb[0].mxu0
  %v282 = vpop.f32.mrb[0].mxu0
  %v283 = vadd.f32 %v173, %v282
  %v284 = vpop.f32.mrb[0].mxu0
  %285 = vmatprep.mubr.bf16.mxu0 0
  %286 = vmatmul.mubr.bf16.gmra.mrb[0].mxu0 %v191
  %v287 = vpop.f32.mrb[0].mxu0
  %v288 = vadd.f32 %v173, %v287
  %v289 = vpop.f32.mrb[0].mxu0
  %v290 = vpop.f32.mrb[0].mxu0
  %v291 = vadd.f32 %v173, %v290
  %v292 = vpop.f32.mrb[0].mxu0
  %293 = vmatprep.mubr.bf16.mxu0 0
  %294 = vmatmul.mubr.bf16.gmra.mrb[0].mxu0 %v194
  %v295 = vpop.f32.mrb[0].mxu0
  %v296 = vadd.f32 %v173, %v295
  %v297 = vpop.f32.mrb[0].mxu0
  %v298 = vpop.f32.mrb[0].mxu0
  %v299 = vadd.f32 %v173, %v298
  %v300 = vpop.f32.mrb[0].mxu0
  %301 = vmatprep.mubr.bf16.mxu0 0
  %302 = vmatmul.mubr.bf16.gmra.mrb[0].mxu0 %v197
  %v303 = vpop.f32.mrb[0].mxu0
  %v304 = vadd.f32 %v173, %v303
  %v305 = vpop.f32.mrb[0].mxu0
  %v306 = vpop.f32.mrb[0].mxu0
  %v307 = vadd.f32 %v173, %v306
  %v308 = vpop.f32.mrb[0].mxu0
  %309 = vmatprep.mubr.bf16.mxu0 0
  %310 = vmatmul.mubr.bf16.gmra.mrb[0].mxu0 %v200
  %v311 = vpop.f32.mrb[0].mxu0
  %v312 = vadd.f32 %v173, %v311
  %v313 = vpop.f32.mrb[0].mxu0
  %v314 = vpop.f32.mrb[0].mxu0
  %v315 = vadd.f32 %v173, %v314
  %v316 = vpop.f32.mrb[0].mxu0
  %317 = vmatprep.mubr.bf16.mxu0 0
  %318 = vmatmul.mubr.bf16.gmra.mrb[0].mxu0 %v203
  %v319 = vpop.f32.mrb[0].mxu0
  %v320 = vadd.f32 %v173, %v319
  %v321 = vpop.f32.mrb[0].mxu0
  %v322 = vpop.f32.mrb[0].mxu0
  %v323 = vadd.f32 %v173, %v322
  %v324 = vpop.f32.mrb[0].mxu0
  %325 = vmatprep.mubr.bf16.mxu0 0
  %326 = vmatmul.mubr.bf16.gmra.mrb[0].mxu0 %v206
  %v327 = vpop.f32.mrb[0].mxu0
  %v328 = vadd.f32 %v173, %v327
  %v329 = vpop.f32.mrb[0].mxu0
  %v330 = vpop.f32.mrb[0].mxu0
  %v331 = vadd.f32 %v173, %v330
  %v332 = vpop.f32.mrb[0].mxu0
  %333 = vmatprep.mubr.bf16.mxu0 0
  %334 = vmatmul.mubr.bf16.gmra.mrb[0].mxu0 %v209
  %v335 = vpop.f32.mrb[0].mxu0
  %v336 = vadd.f32 %v173, %v335
  %v337 = vpop.f32.mrb[0].mxu0
  %v338 = vpop.f32.mrb[0].mxu0
  %v339 = vadd.f32 %v173, %v338
  %v340 = vpop.f32.mrb[0].mxu0
  %341 = vmatprep.mubr.bf16.mxu0 0
  %342 = vmatmul.mubr.bf16.gmra.mrb[0].mxu0 %v212
  %v343 = vpop.f32.mrb[0].mxu0
  %v344 = vadd.f32 %v173, %v343
  %v345 = vpop.f32.mrb[0].mxu0
  %v346 = vpop.f32.mrb[0].mxu0
  %v347 = vadd.f32 %v173, %v346
  %v348 = vpop.f32.mrb[0].mxu0
  %349 = vmatprep.mubr.bf16.mxu0 0
  %350 = vmatmul.mubr.bf16.gmra.mrb[0].mxu0 %v215
  %v351 = vpop.f32.mrb[0].mxu0
  %v352 = vadd.f32 %v173, %v351
  %v353 = vpop.f32.mrb[0].mxu0
  %v354 = vpop.f32.mrb[0].mxu0
  %v355 = vadd.f32 %v173, %v354
  %v356 = vpop.f32.mrb[0].mxu0
  %357 = vmatprep.mubr.bf16.mxu0 0
  %358 = vmatmul.mubr.bf16.gmra.mrb[0].mxu0 %v218
  %v359 = vpop.f32.mrb[0].mxu0
  %v360 = vadd.f32 %v173, %v359
  %v361 = vpop.f32.mrb[0].mxu0
  %v362 = vpop.f32.mrb[0].mxu0
  %v363 = vadd.f32 %v173, %v362
  %v364 = vpop.f32.mrb[0].mxu0
  %365 = vmatprep.mubr.bf16.mxu0 0
  %366 = vmatmul.mubr.bf16.gmra.mrb[0].mxu0 %v221
  %v367 = vpop.f32.mrb[0].mxu0
  %v368 = vadd.f32 %v173, %v367
  %v369 = vpop.f32.mrb[0].mxu0
  %v370 = vpop.f32.mrb[0].mxu0
  %v371 = vadd.f32 %v173, %v370
  %v372 = vpop.f32.mrb[0].mxu0
  %373 = vmatprep.mubr.bf16.mxu0 0
  %374 = vmatmul.mubr.bf16.gmra.mrb[0].mxu0 %v224
  %v375 = vpop.f32.mrb[0].mxu0
  %v376 = vadd.f32 %v173, %v375
  %v377 = vpop.f32.mrb[0].mxu0
  %v378 = vpop.f32.mrb[0].mxu0
  %v379 = vadd.f32 %v173, %v378
  %v380 = vpop.f32.mrb[0].mxu0
  %381 = vmatprep.mubr.bf16.mxu0 0
  %382 = vmatmul.mubr.bf16.gmra.mrb[0].mxu0 %v227
  %v383 = vpop.f32.mrb[0].mxu0
  %v384 = vadd.f32 %v173, %v383
  %v385 = vpop.f32.mrb[0].mxu0
  %v386 = vpop.f32.mrb[0].mxu0
  %v387 = vadd.f32 %v173, %v386
  %v388 = vpop.f32.mrb[0].mxu0
  %389 = vdwg.mxu0
  %v390 = vld [vmem:[%s3 + $0x1] sm:$0x1]
  %v391 = vld [vmem:[%s3 + $0x2] sm:$0x1]
  %392 = vadd.xlane.f32.xlu0 %v264
  %v393 = vpop.xlane.xlu0 %392
  %394 = vadd.xlane.f32.xlu0 %v267
  %v395 = vpop.xlane.xlu0 %394
  %396 = vadd.xlane.f32.xlu0 %v272
  %v397 = vpop.xlane.xlu0 %396
  %398 = vadd.xlane.f32.xlu0 %v275
  %v399 = vpop.xlane.xlu0 %398
  %400 = vadd.xlane.f32.xlu0 %v280
  %v401 = vpop.xlane.xlu0 %400
  %402 = vadd.xlane.f32.xlu0 %v283
  %v403 = vpop.xlane.xlu0 %402
  %404 = vadd.xlane.f32.xlu0 %v288
  %v405 = vpop.xlane.xlu0 %404
  %406 = vadd.xlane.f32.xlu0 %v291
  %v407 = vpop.xlane.xlu0 %406
  %408 = vadd.xlane.f32.xlu0 %v296
  %v409 = vpop.xlane.xlu0 %408
  %410 = vadd.xlane.f32.xlu0 %v299
  %v411 = vpop.xlane.xlu0 %410
  %412 = vadd.xlane.f32.xlu0 %v304
  %v413 = vpop.xlane.xlu0 %412
  %414 = vadd.xlane.f32.xlu0 %v307
  %v415 = vpop.xlane.xlu0 %414
  %416 = vadd.xlane.f32.xlu0 %v312
  %v417 = vpop.xlane.xlu0 %416
  %418 = vadd.xlane.f32.xlu0 %v315
  %v419 = vpop.xlane.xlu0 %418
  %420 = vadd.xlane.f32.xlu0 %v320
  %v421 = vpop.xlane.xlu0 %420
  %422 = vadd.xlane.f32.xlu0 %v323
  %v423 = vpop.xlane.xlu0 %422
  %424 = vadd.xlane.f32.xlu0 %v328
  %v425 = vpop.xlane.xlu0 %424
  %426 = vadd.xlane.f32.xlu0 %v331
  %v427 = vpop.xlane.xlu0 %426
  %428 = vadd.xlane.f32.xlu0 %v336
  %v429 = vpop.xlane.xlu0 %428
  %430 = vadd.xlane.f32.xlu0 %v339
  %v431 = vpop.xlane.xlu0 %430
  %432 = vadd.xlane.f32.xlu0 %v344
  %v433 = vpop.xlane.xlu0 %432
  %434 = vadd.xlane.f32.xlu0 %v347
  %v435 = vpop.xlane.xlu0 %434
  %436 = vadd.xlane.f32.xlu0 %v352
  %v437 = vpop.xlane.xlu0 %436
  %438 = vadd.xlane.f32.xlu0 %v355
  %v439 = vpop.xlane.xlu0 %438
  %440 = vadd.xlane.f32.xlu0 %v360
  %v441 = vpop.xlane.xlu0 %440
  %442 = vadd.xlane.f32.xlu0 %v363
  %v443 = vpop.xlane.xlu0 %442
  %444 = vadd.xlane.f32.xlu0 %v368
  %v445 = vpop.xlane.xlu0 %444
  %446 = vadd.xlane.f32.xlu0 %v371
  %v447 = vpop.xlane.xlu0 %446
  %448 = vadd.xlane.f32.xlu0 %v376
  %v449 = vpop.xlane.xlu0 %448
  %450 = vadd.xlane.f32.xlu0 %v379
  %v451 = vpop.xlane.xlu0 %450
  %452 = vadd.xlane.f32.xlu0 %v384
  %v453 = vpop.xlane.xlu0 %452
  %454 = vadd.xlane.f32.xlu0 %v387
  %v455 = vpop.xlane.xlu0 %454
  %v456 = vmul.f32 %v393, 0.03125
  %v457 = vmul.f32 %v395, 0.03125
  %v458 = vmul.f32 %v397, 0.03125
  %v459 = vmul.f32 %v399, 0.03125
  %v460 = vmul.f32 %v401, 0.03125
  %v461 = vmul.f32 %v403, 0.03125
  %v462 = vmul.f32 %v405, 0.03125
  %v463 = vmul.f32 %v407, 0.03125
  %v464 = vmul.f32 %v409, 0.03125
  %v465 = vmul.f32 %v411, 0.03125
  %v466 = vmul.f32 %v413, 0.03125
  %v467 = vmul.f32 %v415, 0.03125
  %v468 = vmul.f32 %v417, 0.03125
  %v469 = vmul.f32 %v419, 0.03125
  %v470 = vmul.f32 %v421, 0.03125
  %v471 = vmul.f32 %v423, 0.03125
  %v472 = vmul.f32 %v425, 0.03125
  %v473 = vmul.f32 %v427, 0.03125
  %v474 = vmul.f32 %v429, 0.03125
  %v475 = vmul.f32 %v431, 0.03125
  %v476 = vmul.f32 %v433, 0.03125
  %v477 = vmul.f32 %v435, 0.03125
  %v478 = vmul.f32 %v437, 0.03125
  %v479 = vmul.f32 %v439, 0.03125
  %v480 = vmul.f32 %v441, 0.03125
  %v481 = vmul.f32 %v443, 0.03125
  %v482 = vmul.f32 %v445, 0.03125
  %v483 = vmul.f32 %v447, 0.03125
  %v484 = vmul.f32 %v449, 0.03125
  %v485 = vmul.f32 %v451, 0.03125
  %v486 = vmul.f32 %v453, 0.03125
  %v487 = vmul.f32 %v455, 0.03125
  %v488 = vsub.f32 %v264, %v456
  %v489 = vsub.f32 %v267, %v457
  %v490 = vsub.f32 %v272, %v458
  %v491 = vsub.f32 %v275, %v459
  %v492 = vsub.f32 %v280, %v460
  %v493 = vsub.f32 %v283, %v461
  %v494 = vsub.f32 %v288, %v462
  %v495 = vsub.f32 %v291, %v463
  %v496 = vsub.f32 %v296, %v464
  %v497 = vsub.f32 %v299, %v465
  %v498 = vsub.f32 %v304, %v466
  %v499 = vsub.f32 %v307, %v467
  %v500 = vsub.f32 %v312, %v468
  %v501 = vsub.f32 %v315, %v469
  %v502 = vsub.f32 %v320, %v470
  %v503 = vsub.f32 %v323, %v471
  %v504 = vsub.f32 %v328, %v472
  %v505 = vsub.f32 %v331, %v473
  %v506 = vsub.f32 %v336, %v474
  %v507 = vsub.f32 %v339, %v475
  %v508 = vsub.f32 %v344, %v476
  %v509 = vsub.f32 %v347, %v477
  %v510 = vsub.f32 %v352, %v478
  %v511 = vsub.f32 %v355, %v479
  %v512 = vsub.f32 %v360, %v480
  %v513 = vsub.f32 %v363, %v481
  %v514 = vsub.f32 %v368, %v482
  %v515 = vsub.f32 %v371, %v483
  %v516 = vsub.f32 %v376, %v484
  %v517 = vsub.f32 %v379, %v485
  %v518 = vsub.f32 %v384, %v486
  %v519 = vsub.f32 %v387, %v487
  %v520 = vmul.f32 %v488, %v22
  %v521 = vmul.f32 %v489, %v22
  %v522 = vmul.f32 %v490, %v22
  %v523 = vmul.f32 %v491, %v22
  %v524 = vmul.f32 %v492, %v22
  %v525 = vmul.f32 %v493, %v22
  %v526 = vmul.f32 %v494, %v22
  %v527 = vmul.f32 %v495, %v22
  %v528 = vmul.f32 %v496, %v22
  %v529 = vmul.f32 %v497, %v22
  %v530 = vmul.f32 %v498, %v22
  %v531 = vmul.f32 %v499, %v22
  %v532 = vmul.f32 %v500, %v22
  %v533 = vmul.f32 %v501, %v22
  %v534 = vmul.f32 %v502, %v22
  %v535 = vmul.f32 %v503, %v22
  %v536 = vmul.f32 %v504, %v22
  %v537 = vmul.f32 %v505, %v22
  %v538 = vmul.f32 %v506, %v22
  %v539 = vmul.f32 %v507, %v22
  %v540 = vmul.f32 %v508, %v22
  %v541 = vmul.f32 %v509, %v22
  %v542 = vmul.f32 %v510, %v22
  %v543 = vmul.f32 %v511, %v22
  %v544 = vmul.f32 %v512, %v22
  %v545 = vmul.f32 %v513, %v22
  %v546 = vmul.f32 %v514, %v22
  %v547 = vmul.f32 %v515, %v22
  %v548 = vmul.f32 %v516, %v22
  %v549 = vmul.f32 %v517, %v22
  %v550 = vmul.f32 %v518, %v22
  %v551 = vmul.f32 %v519, %v22
  %v552 = vmul.f32 %v520, %v520
  %v553 = vmul.f32 %v521, %v521
  %v554 = vmul.f32 %v522, %v522
  %v555 = vmul.f32 %v523, %v523
  %v556 = vmul.f32 %v524, %v524
  %v557 = vmul.f32 %v525, %v525
  %v558 = vmul.f32 %v526, %v526
  %v559 = vmul.f32 %v527, %v527
  %v560 = vmul.f32 %v528, %v528
  %v561 = vmul.f32 %v529, %v529
  %v562 = vmul.f32 %v530, %v530
  %v563 = vmul.f32 %v531, %v531
  %v564 = vmul.f32 %v532, %v532
  %v565 = vmul.f32 %v533, %v533
  %v566 = vmul.f32 %v534, %v534
  %v567 = vmul.f32 %v535, %v535
  %v568 = vmul.f32 %v536, %v536
  %v569 = vmul.f32 %v537, %v537
  %v570 = vmul.f32 %v538, %v538
  %v571 = vmul.f32 %v539, %v539
  %v572 = vmul.f32 %v540, %v540
  %v573 = vmul.f32 %v541, %v541
  %v574 = vmul.f32 %v542, %v542
  %v575 = vmul.f32 %v543, %v543
  %v576 = vmul.f32 %v544, %v544
  %v577 = vmul.f32 %v545, %v545
  %v578 = vmul.f32 %v546, %v546
  %v579 = vmul.f32 %v547, %v547
  %v580 = vmul.f32 %v548, %v548
  %v581 = vmul.f32 %v549, %v549
  %v582 = vmul.f32 %v550, %v550
  %v583 = vmul.f32 %v551, %v551
  %584 = vadd.xlane.f32.xlu0 %v552
  %v585 = vpop.xlane.xlu0 %584
  %586 = vadd.xlane.f32.xlu0 %v553
  %v587 = vpop.xlane.xlu0 %586
  %588 = vadd.xlane.f32.xlu0 %v554
  %v589 = vpop.xlane.xlu0 %588
  %590 = vadd.xlane.f32.xlu0 %v555
  %v591 = vpop.xlane.xlu0 %590
  %592 = vadd.xlane.f32.xlu0 %v556
  %v593 = vpop.xlane.xlu0 %592
  %594 = vadd.xlane.f32.xlu0 %v557
  %v595 = vpop.xlane.xlu0 %594
  %596 = vadd.xlane.f32.xlu0 %v558
  %v597 = vpop.xlane.xlu0 %596
  %598 = vadd.xlane.f32.xlu0 %v559
  %v599 = vpop.xlane.xlu0 %598
  %600 = vadd.xlane.f32.xlu0 %v560
  %v601 = vpop.xlane.xlu0 %600
  %602 = vadd.xlane.f32.xlu0 %v561
  %v603 = vpop.xlane.xlu0 %602
  %604 = vadd.xlane.f32.xlu0 %v562
  %v605 = vpop.xlane.xlu0 %604
  %606 = vadd.xlane.f32.xlu0 %v563
  %v607 = vpop.xlane.xlu0 %606
  %608 = vadd.xlane.f32.xlu0 %v564
  %v609 = vpop.xlane.xlu0 %608
  %610 = vadd.xlane.f32.xlu0 %v565
  %v611 = vpop.xlane.xlu0 %610
  %612 = vadd.xlane.f32.xlu0 %v566
  %v613 = vpop.xlane.xlu0 %612
  %614 = vadd.xlane.f32.xlu0 %v567
  %v615 = vpop.xlane.xlu0 %614
  %616 = vadd.xlane.f32.xlu0 %v568
  %v617 = vpop.xlane.xlu0 %616
  %618 = vadd.xlane.f32.xlu0 %v569
  %v619 = vpop.xlane.xlu0 %618
  %620 = vadd.xlane.f32.xlu0 %v570
  %v621 = vpop.xlane.xlu0 %620
  %622 = vadd.xlane.f32.xlu0 %v571
  %v623 = vpop.xlane.xlu0 %622
  %624 = vadd.xlane.f32.xlu0 %v572
  %v625 = vpop.xlane.xlu0 %624
  %626 = vadd.xlane.f32.xlu0 %v573
  %v627 = vpop.xlane.xlu0 %626
  %628 = vadd.xlane.f32.xlu0 %v574
  %v629 = vpop.xlane.xlu0 %628
  %630 = vadd.xlane.f32.xlu0 %v575
  %v631 = vpop.xlane.xlu0 %630
  %632 = vadd.xlane.f32.xlu0 %v576
  %v633 = vpop.xlane.xlu0 %632
  %634 = vadd.xlane.f32.xlu0 %v577
  %v635 = vpop.xlane.xlu0 %634
  %636 = vadd.xlane.f32.xlu0 %v578
  %v637 = vpop.xlane.xlu0 %636
  %638 = vadd.xlane.f32.xlu0 %v579
  %v639 = vpop.xlane.xlu0 %638
  %640 = vadd.xlane.f32.xlu0 %v580
  %v641 = vpop.xlane.xlu0 %640
  %642 = vadd.xlane.f32.xlu0 %v581
  %v643 = vpop.xlane.xlu0 %642
  %644 = vadd.xlane.f32.xlu0 %v582
  %v645 = vpop.xlane.xlu0 %644
  %646 = vadd.xlane.f32.xlu0 %v583
  %v647 = vpop.xlane.xlu0 %646
  %v648 = vmul.f32 %v585, 0.03125
  %v649 = vmul.f32 %v587, 0.03125
  %v650 = vmul.f32 %v589, 0.03125
  %v651 = vmul.f32 %v591, 0.03125
  %v652 = vmul.f32 %v593, 0.03125
  %v653 = vmul.f32 %v595, 0.03125
  %v654 = vmul.f32 %v597, 0.03125
  %v655 = vmul.f32 %v599, 0.03125
  %v656 = vmul.f32 %v601, 0.03125
  %v657 = vmul.f32 %v603, 0.03125
  %v658 = vmul.f32 %v605, 0.03125
  %v659 = vmul.f32 %v607, 0.03125
  %v660 = vmul.f32 %v609, 0.03125
  %v661 = vmul.f32 %v611, 0.03125
  %v662 = vmul.f32 %v613, 0.03125
  %v663 = vmul.f32 %v615, 0.03125
  %v664 = vmul.f32 %v617, 0.03125
  %v665 = vmul.f32 %v619, 0.03125
  %v666 = vmul.f32 %v621, 0.03125
  %v667 = vmul.f32 %v623, 0.03125
  %v668 = vmul.f32 %v625, 0.03125
  %v669 = vmul.f32 %v627, 0.03125
  %v670 = vmul.f32 %v629, 0.03125
  %v671 = vmul.f32 %v631, 0.03125
  %v672 = vmul.f32 %v633, 0.03125
  %v673 = vmul.f32 %v635, 0.03125
  %v674 = vmul.f32 %v637, 0.03125
  %v675 = vmul.f32 %v639, 0.03125
  %v676 = vmul.f32 %v641, 0.03125
  %v677 = vmul.f32 %v643, 0.03125
  %v678 = vmul.f32 %v645, 0.03125
  %v679 = vmul.f32 %v647, 0.03125
  %v680 = vadd.f32 %v648, 1e-05
  %v681 = vadd.f32 %v649, 1e-05
  %v682 = vadd.f32 %v650, 1e-05
  %v683 = vadd.f32 %v651, 1e-05
  %v684 = vadd.f32 %v652, 1e-05
  %v685 = vadd.f32 %v653, 1e-05
  %v686 = vadd.f32 %v654, 1e-05
  %v687 = vadd.f32 %v655, 1e-05
  %v688 = vadd.f32 %v656, 1e-05
  %v689 = vadd.f32 %v657, 1e-05
  %v690 = vadd.f32 %v658, 1e-05
  %v691 = vadd.f32 %v659, 1e-05
  %v692 = vadd.f32 %v660, 1e-05
  %v693 = vadd.f32 %v661, 1e-05
  %v694 = vadd.f32 %v662, 1e-05
  %v695 = vadd.f32 %v663, 1e-05
  %v696 = vadd.f32 %v664, 1e-05
  %v697 = vadd.f32 %v665, 1e-05
  %v698 = vadd.f32 %v666, 1e-05
  %v699 = vadd.f32 %v667, 1e-05
  %v700 = vadd.f32 %v668, 1e-05
  %v701 = vadd.f32 %v669, 1e-05
  %v702 = vadd.f32 %v670, 1e-05
  %v703 = vadd.f32 %v671, 1e-05
  %v704 = vadd.f32 %v672, 1e-05
  %v705 = vadd.f32 %v673, 1e-05
  %v706 = vadd.f32 %v674, 1e-05
  %v707 = vadd.f32 %v675, 1e-05
  %v708 = vadd.f32 %v676, 1e-05
  %v709 = vadd.f32 %v677, 1e-05
  %v710 = vadd.f32 %v678, 1e-05
  %v711 = vadd.f32 %v679, 1e-05
  %v712 = vrsqrt.pop %v680
  %v713 = vrsqrt.pop %v681
  %v714 = vrsqrt.pop %v682
  %v715 = vrsqrt.pop %v683
  %v716 = vrsqrt.pop %v684
  %v717 = vrsqrt.pop %v685
  %v718 = vrsqrt.pop %v686
  %v719 = vrsqrt.pop %v687
  %v720 = vrsqrt.pop %v688
  %v721 = vrsqrt.pop %v689
  %v722 = vrsqrt.pop %v690
  %v723 = vrsqrt.pop %v691
  %v724 = vrsqrt.pop %v692
  %v725 = vrsqrt.pop %v693
  %v726 = vrsqrt.pop %v694
  %v727 = vrsqrt.pop %v695
  %v728 = vrsqrt.pop %v696
  %v729 = vrsqrt.pop %v697
  %v730 = vrsqrt.pop %v698
  %v731 = vrsqrt.pop %v699
  %v732 = vrsqrt.pop %v700
  %v733 = vrsqrt.pop %v701
  %v734 = vrsqrt.pop %v702
  %v735 = vrsqrt.pop %v703
  %v736 = vrsqrt.pop %v704
  %v737 = vrsqrt.pop %v705
  %v738 = vrsqrt.pop %v706
  %v739 = vrsqrt.pop %v707
  %v740 = vrsqrt.pop %v708
  %v741 = vrsqrt.pop %v709
  %v742 = vrsqrt.pop %v710
  %v743 = vrsqrt.pop %v711
  %v744 = vmul.f32 %v520, %v712
  %v745 = vmul.f32 %v521, %v713
  %v746 = vmul.f32 %v522, %v714
  %v747 = vmul.f32 %v523, %v715
  %v748 = vmul.f32 %v524, %v716
  %v749 = vmul.f32 %v525, %v717
  %v750 = vmul.f32 %v526, %v718
  %v751 = vmul.f32 %v527, %v719
  %v752 = vmul.f32 %v528, %v720
  %v753 = vmul.f32 %v529, %v721
  %v754 = vmul.f32 %v530, %v722
  %v755 = vmul.f32 %v531, %v723
  %v756 = vmul.f32 %v532, %v724
  %v757 = vmul.f32 %v533, %v725
  %v758 = vmul.f32 %v534, %v726
  %v759 = vmul.f32 %v535, %v727
  %v760 = vmul.f32 %v536, %v728
  %v761 = vmul.f32 %v537, %v729
  %v762 = vmul.f32 %v538, %v730
  %v763 = vmul.f32 %v539, %v731
  %v764 = vmul.f32 %v540, %v732
  %v765 = vmul.f32 %v541, %v733
  %v766 = vmul.f32 %v542, %v734
  %v767 = vmul.f32 %v543, %v735
  %v768 = vmul.f32 %v544, %v736
  %v769 = vmul.f32 %v545, %v737
  %v770 = vmul.f32 %v546, %v738
  %v771 = vmul.f32 %v547, %v739
  %v772 = vmul.f32 %v548, %v740
  %v773 = vmul.f32 %v549, %v741
  %v774 = vmul.f32 %v550, %v742
  %v775 = vmul.f32 %v551, %v743
  %v776 = vlaneseq
  %v777 = vshrl.u32 %v776, 7
  %v778 = vsub.s32 0, %v777
  %v779 = vrot.slane %v390, %v778
  %v780 = vmul.f32 %v744, %v779
  %v781 = vmul.f32 %v745, %v779
  %v782 = vmul.f32 %v746, %v779
  %v783 = vmul.f32 %v747, %v779
  %v784 = vmul.f32 %v748, %v779
  %v785 = vmul.f32 %v749, %v779
  %v786 = vmul.f32 %v750, %v779
  %v787 = vmul.f32 %v751, %v779
  %v788 = vmul.f32 %v752, %v779
  %v789 = vmul.f32 %v753, %v779
  %v790 = vmul.f32 %v754, %v779
  %v791 = vmul.f32 %v755, %v779
  %v792 = vmul.f32 %v756, %v779
  %v793 = vmul.f32 %v757, %v779
  %v794 = vmul.f32 %v758, %v779
  %v795 = vmul.f32 %v759, %v779
  %v796 = vmul.f32 %v760, %v779
  %v797 = vmul.f32 %v761, %v779
  %v798 = vmul.f32 %v762, %v779
  %v799 = vmul.f32 %v763, %v779
  %v800 = vmul.f32 %v764, %v779
  %v801 = vmul.f32 %v765, %v779
  %v802 = vmul.f32 %v766, %v779
  %v803 = vmul.f32 %v767, %v779
  %v804 = vmul.f32 %v768, %v779
  %v805 = vmul.f32 %v769, %v779
  %v806 = vmul.f32 %v770, %v779
  %v807 = vmul.f32 %v771, %v779
  %v808 = vmul.f32 %v772, %v779
  %v809 = vmul.f32 %v773, %v779
  %v810 = vmul.f32 %v774, %v779
  %v811 = vmul.f32 %v775, %v779
  %v812 = vlaneseq
  %v813 = vshrl.u32 %v812, 7
  %v814 = vsub.s32 0, %v813
  %v815 = vrot.slane %v391, %v814
  %v816 = vadd.f32 %v780, %v815
  %v817 = vadd.f32 %v781, %v815
  %v818 = vadd.f32 %v782, %v815
  %v819 = vadd.f32 %v783, %v815
  %v820 = vadd.f32 %v784, %v815
  %v821 = vadd.f32 %v785, %v815
  %v822 = vadd.f32 %v786, %v815
  %v823 = vadd.f32 %v787, %v815
  %v824 = vadd.f32 %v788, %v815
  %v825 = vadd.f32 %v789, %v815
  %v826 = vadd.f32 %v790, %v815
  %v827 = vadd.f32 %v791, %v815
  %v828 = vadd.f32 %v792, %v815
  %v829 = vadd.f32 %v793, %v815
  %v830 = vadd.f32 %v794, %v815
  %v831 = vadd.f32 %v795, %v815
  %v832 = vadd.f32 %v796, %v815
  %v833 = vadd.f32 %v797, %v815
  %v834 = vadd.f32 %v798, %v815
  %v835 = vadd.f32 %v799, %v815
  %v836 = vadd.f32 %v800, %v815
  %v837 = vadd.f32 %v801, %v815
  %v838 = vadd.f32 %v802, %v815
  %v839 = vadd.f32 %v803, %v815
  %v840 = vadd.f32 %v804, %v815
  %v841 = vadd.f32 %v805, %v815
  %v842 = vadd.f32 %v806, %v815
  %v843 = vadd.f32 %v807, %v815
  %v844 = vadd.f32 %v808, %v815
  %v845 = vadd.f32 %v809, %v815
  %v846 = vadd.f32 %v810, %v815
  %v847 = vadd.f32 %v811, %v815
  %v848 = vmax.f32 %v816, 0.0
  %v849 = vmax.f32 %v817, 0.0
  %v850 = vmax.f32 %v818, 0.0
  %v851 = vmax.f32 %v819, 0.0
  %v852 = vmax.f32 %v820, 0.0
  %v853 = vmax.f32 %v821, 0.0
  %v854 = vmax.f32 %v822, 0.0
  %v855 = vmax.f32 %v823, 0.0
  %v856 = vmax.f32 %v824, 0.0
  %v857 = vmax.f32 %v825, 0.0
  %v858 = vmax.f32 %v826, 0.0
  %v859 = vmax.f32 %v827, 0.0
  %v860 = vmax.f32 %v828, 0.0
  %v861 = vmax.f32 %v829, 0.0
  %v862 = vmax.f32 %v830, 0.0
  %v863 = vmax.f32 %v831, 0.0
  %v864 = vmax.f32 %v832, 0.0
  %v865 = vmax.f32 %v833, 0.0
  %v866 = vmax.f32 %v834, 0.0
  %v867 = vmax.f32 %v835, 0.0
  %v868 = vmax.f32 %v836, 0.0
  %v869 = vmax.f32 %v837, 0.0
  %v870 = vmax.f32 %v838, 0.0
  %v871 = vmax.f32 %v839, 0.0
  %v872 = vmax.f32 %v840, 0.0
  %v873 = vmax.f32 %v841, 0.0
  %v874 = vmax.f32 %v842, 0.0
  %v875 = vmax.f32 %v843, 0.0
  %v876 = vmax.f32 %v844, 0.0
  %v877 = vmax.f32 %v845, 0.0
  %v878 = vmax.f32 %v846, 0.0
  %v879 = vmax.f32 %v847, 0.0
  %v880 = vld [vmem:[%s2] sm:$0xf]
  %v881 = vld [vmem:[%s2 + $0x4] sm:$0xf]
  %v882 = vld [vmem:[%s2 + $0x8] sm:$0xf]
  %v883 = vld [vmem:[%s2 + $0xc] sm:$0xf]
  %v884 = vld [vmem:[%s2 + $0x10] sm:$0xf]
  %v885 = vld [vmem:[%s2 + $0x14] sm:$0xf]
  %v886 = vld [vmem:[%s2 + $0x18] sm:$0xf]
  %v887 = vld [vmem:[%s2 + $0x1c] sm:$0xf]
  %v888 = vld [vmem:[%s2 + $0x20] sm:$0xf]
  %v889 = vld [vmem:[%s2 + $0x24] sm:$0xf]
  %v890 = vld [vmem:[%s2 + $0x28] sm:$0xf]
  %v891 = vld [vmem:[%s2 + $0x2c] sm:$0xf]
  %v892 = vld [vmem:[%s2 + $0x30] sm:$0xf]
  %v893 = vld [vmem:[%s2 + $0x34] sm:$0xf]
  %v894 = vld [vmem:[%s2 + $0x38] sm:$0xf]
  %v895 = vld [vmem:[%s2 + $0x3c] sm:$0xf]
  %v896 = vpack.c.bf16 %v849, %v848
  %v897 = vpack.c.bf16 %v851, %v850
  %v898 = vpack.c.bf16 %v853, %v852
  %v899 = vpack.c.bf16 %v855, %v854
  %v900 = vpack.c.bf16 %v857, %v856
  %v901 = vpack.c.bf16 %v859, %v858
  %v902 = vpack.c.bf16 %v861, %v860
  %v903 = vpack.c.bf16 %v863, %v862
  %v904 = vpack.c.bf16 %v865, %v864
  %v905 = vpack.c.bf16 %v867, %v866
  %v906 = vpack.c.bf16 %v869, %v868
  %v907 = vpack.c.bf16 %v871, %v870
  %v908 = vpack.c.bf16 %v873, %v872
  %v909 = vpack.c.bf16 %v875, %v874
  %v910 = vpack.c.bf16 %v877, %v876
  %v911 = vpack.c.bf16 %v879, %v878
  %v912 = vld [vmem:[%s3 + $0x3] sm:$0x1]
  %v913 = vlaneseq
  %v914 = vshrl.u32 %v913, 7
  %v915 = vsub.s32 0, %v914
  %v916 = vrot.slane %v912, %v915
  %v933 = vunpack.c.l.b16 %v880
  %v934 = vunpack.c.l.b16 %v881
  %v935 = vunpack.c.l.b16 %v882
  %v936 = vunpack.c.l.b16 %v883
  %v937 = vunpack.c.l.b16 %v884
  %v938 = vunpack.c.l.b16 %v885
  %v939 = vunpack.c.l.b16 %v886
  %v940 = vunpack.c.l.b16 %v887
  %v941 = vunpack.c.l.b16 %v888
  %v942 = vunpack.c.l.b16 %v889
  %v943 = vunpack.c.l.b16 %v890
  %v944 = vunpack.c.l.b16 %v891
  %v945 = vunpack.c.l.b16 %v892
  %v946 = vunpack.c.l.b16 %v893
  %v947 = vunpack.c.l.b16 %v894
  %v948 = vunpack.c.l.b16 %v895
  %v949 = vpack.c.b16 %v934, %v933
  %v950 = vpack.c.b16 %v936, %v935
  %v951 = vpack.c.b16 %v938, %v937
  %v952 = vpack.c.b16 %v940, %v939
  %v953 = vpack.c.b16 %v942, %v941
  %v954 = vpack.c.b16 %v944, %v943
  %v955 = vpack.c.b16 %v946, %v945
  %v956 = vpack.c.b16 %v948, %v947
  %965 = vmatprep.subr.bf16.mxu0 0
  %966 = vmatpush1.bf16.msra.mxu0 %v949
  %967 = vmatprep.subr.bf16.mxu0 0
  %968 = vmatpush1.bf16.msra.mxu0 %v950
  %969 = vmatprep.subr.bf16.mxu0 0
  %970 = vmatpush1.bf16.msra.mxu0 %v951
  %971 = vmatprep.subr.bf16.mxu0 0
  %972 = vmatpush1.bf16.msra.mxu0 %v952
  %973 = vmatprep.subr.bf16.mxu0 0
  %974 = vmatpush1.bf16.msra.mxu0 %v953
  %975 = vmatprep.subr.bf16.mxu0 0
  %976 = vmatpush1.bf16.msra.mxu0 %v954
  %977 = vmatprep.subr.bf16.mxu0 0
  %978 = vmatpush1.bf16.msra.mxu0 %v955
  %979 = vmatprep.subr.bf16.mxu0 0
  %980 = vmatpush1.bf16.msra.mxu0 %v956
  %981 = vmatprep.subr.bf16.mxu0 0
  %982 = vmatpush1.bf16.msra.mxu0 0
  %983 = vmatprep.subr.bf16.mxu0 0
  %984 = vmatpush1.bf16.msra.mxu0 0
  %985 = vmatprep.subr.bf16.mxu0 0
  %986 = vmatpush1.bf16.msra.mxu0 0
  %987 = vmatprep.subr.bf16.mxu0 0
  %988 = vmatpush1.bf16.msra.mxu0 0
  %989 = vmatprep.subr.bf16.mxu0 0
  %990 = vmatpush1.bf16.msra.mxu0 0
  %991 = vmatprep.subr.bf16.mxu0 0
  %992 = vmatpush1.bf16.msra.mxu0 0
  %993 = vmatprep.subr.bf16.mxu0 0
  %994 = vmatpush1.bf16.msra.mxu0 0
  %995 = vmatprep.subr.bf16.mxu0 0
  %996 = vmatpush1.bf16.msra.mxu0 0
  %997 = vmatprep.mubr.bf16.mxu0 0
  %998 = vmatmul.mubr.bf16.gmra.mrb[0].mxu0 %v896
  %v999 = vpop.f32.mrb[0].mxu0
  %v1000 = vadd.f32 %v916, %v999
  %v1001 = vpop.f32.mrb[0].mxu0
  %v1002 = vpop.f32.mrb[0].mxu0
  %v1003 = vadd.f32 %v916, %v1002
  %v1004 = vpop.f32.mrb[0].mxu0
  %1005 = vmatprep.mubr.bf16.mxu0 0
  %1006 = vmatmul.mubr.bf16.gmra.mrb[0].mxu0 %v897
  %v1007 = vpop.f32.mrb[0].mxu0
  %v1008 = vadd.f32 %v916, %v1007
  %v1009 = vpop.f32.mrb[0].mxu0
  %v1010 = vpop.f32.mrb[0].mxu0
  %v1011 = vadd.f32 %v916, %v1010
  %v1012 = vpop.f32.mrb[0].mxu0
  %1013 = vmatprep.mubr.bf16.mxu0 0
  %1014 = vmatmul.mubr.bf16.gmra.mrb[0].mxu0 %v898
  %v1015 = vpop.f32.mrb[0].mxu0
  %v1016 = vadd.f32 %v916, %v1015
  %v1017 = vpop.f32.mrb[0].mxu0
  %v1018 = vpop.f32.mrb[0].mxu0
  %v1019 = vadd.f32 %v916, %v1018
  %v1020 = vpop.f32.mrb[0].mxu0
  %1021 = vmatprep.mubr.bf16.mxu0 0
  %1022 = vmatmul.mubr.bf16.gmra.mrb[0].mxu0 %v899
  %v1023 = vpop.f32.mrb[0].mxu0
  %v1024 = vadd.f32 %v916, %v1023
  %v1025 = vpop.f32.mrb[0].mxu0
  %v1026 = vpop.f32.mrb[0].mxu0
  %v1027 = vadd.f32 %v916, %v1026
  %v1028 = vpop.f32.mrb[0].mxu0
  %1029 = vmatprep.mubr.bf16.mxu0 0
  %1030 = vmatmul.mubr.bf16.gmra.mrb[0].mxu0 %v900
  %v1031 = vpop.f32.mrb[0].mxu0
  %v1032 = vadd.f32 %v916, %v1031
  %v1033 = vpop.f32.mrb[0].mxu0
  %v1034 = vpop.f32.mrb[0].mxu0
  %v1035 = vadd.f32 %v916, %v1034
  %v1036 = vpop.f32.mrb[0].mxu0
  %1037 = vmatprep.mubr.bf16.mxu0 0
  %1038 = vmatmul.mubr.bf16.gmra.mrb[0].mxu0 %v901
  %v1039 = vpop.f32.mrb[0].mxu0
  %v1040 = vadd.f32 %v916, %v1039
  %v1041 = vpop.f32.mrb[0].mxu0
  %v1042 = vpop.f32.mrb[0].mxu0
  %v1043 = vadd.f32 %v916, %v1042
  %v1044 = vpop.f32.mrb[0].mxu0
  %1045 = vmatprep.mubr.bf16.mxu0 0
  %1046 = vmatmul.mubr.bf16.gmra.mrb[0].mxu0 %v902
  %v1047 = vpop.f32.mrb[0].mxu0
  %v1048 = vadd.f32 %v916, %v1047
  %v1049 = vpop.f32.mrb[0].mxu0
  %v1050 = vpop.f32.mrb[0].mxu0
  %v1051 = vadd.f32 %v916, %v1050
  %v1052 = vpop.f32.mrb[0].mxu0
  %1053 = vmatprep.mubr.bf16.mxu0 0
  %1054 = vmatmul.mubr.bf16.gmra.mrb[0].mxu0 %v903
  %v1055 = vpop.f32.mrb[0].mxu0
  %v1056 = vadd.f32 %v916, %v1055
  %v1057 = vpop.f32.mrb[0].mxu0
  %v1058 = vpop.f32.mrb[0].mxu0
  %v1059 = vadd.f32 %v916, %v1058
  %v1060 = vpop.f32.mrb[0].mxu0
  %1061 = vmatprep.mubr.bf16.mxu0 0
  %1062 = vmatmul.mubr.bf16.gmra.mrb[0].mxu0 %v904
  %v1063 = vpop.f32.mrb[0].mxu0
  %v1064 = vadd.f32 %v916, %v1063
  %v1065 = vpop.f32.mrb[0].mxu0
  %v1066 = vpop.f32.mrb[0].mxu0
  %v1067 = vadd.f32 %v916, %v1066
  %v1068 = vpop.f32.mrb[0].mxu0
  %1069 = vmatprep.mubr.bf16.mxu0 0
  %1070 = vmatmul.mubr.bf16.gmra.mrb[0].mxu0 %v905
  %v1071 = vpop.f32.mrb[0].mxu0
  %v1072 = vadd.f32 %v916, %v1071
  %v1073 = vpop.f32.mrb[0].mxu0
  %v1074 = vpop.f32.mrb[0].mxu0
  %v1075 = vadd.f32 %v916, %v1074
  %v1076 = vpop.f32.mrb[0].mxu0
  %1077 = vmatprep.mubr.bf16.mxu0 0
  %1078 = vmatmul.mubr.bf16.gmra.mrb[0].mxu0 %v906
  %v1079 = vpop.f32.mrb[0].mxu0
  %v1080 = vadd.f32 %v916, %v1079
  %v1081 = vpop.f32.mrb[0].mxu0
  %v1082 = vpop.f32.mrb[0].mxu0
  %v1083 = vadd.f32 %v916, %v1082
  %v1084 = vpop.f32.mrb[0].mxu0
  %1085 = vmatprep.mubr.bf16.mxu0 0
  %1086 = vmatmul.mubr.bf16.gmra.mrb[0].mxu0 %v907
  %v1087 = vpop.f32.mrb[0].mxu0
  %v1088 = vadd.f32 %v916, %v1087
  %v1089 = vpop.f32.mrb[0].mxu0
  %v1090 = vpop.f32.mrb[0].mxu0
  %v1091 = vadd.f32 %v916, %v1090
  %v1092 = vpop.f32.mrb[0].mxu0
  %1093 = vmatprep.mubr.bf16.mxu0 0
  %1094 = vmatmul.mubr.bf16.gmra.mrb[0].mxu0 %v908
  %v1095 = vpop.f32.mrb[0].mxu0
  %v1096 = vadd.f32 %v916, %v1095
  %v1097 = vpop.f32.mrb[0].mxu0
  %v1098 = vpop.f32.mrb[0].mxu0
  %v1099 = vadd.f32 %v916, %v1098
  %v1100 = vpop.f32.mrb[0].mxu0
  %1101 = vmatprep.mubr.bf16.mxu0 0
  %1102 = vmatmul.mubr.bf16.gmra.mrb[0].mxu0 %v909
  %v1103 = vpop.f32.mrb[0].mxu0
  %v1104 = vadd.f32 %v916, %v1103
  %v1105 = vpop.f32.mrb[0].mxu0
  %v1106 = vpop.f32.mrb[0].mxu0
  %v1107 = vadd.f32 %v916, %v1106
  %v1108 = vpop.f32.mrb[0].mxu0
  %1109 = vmatprep.mubr.bf16.mxu0 0
  %1110 = vmatmul.mubr.bf16.gmra.mrb[0].mxu0 %v910
  %v1111 = vpop.f32.mrb[0].mxu0
  %v1112 = vadd.f32 %v916, %v1111
  %v1113 = vpop.f32.mrb[0].mxu0
  %v1114 = vpop.f32.mrb[0].mxu0
  %v1115 = vadd.f32 %v916, %v1114
  %v1116 = vpop.f32.mrb[0].mxu0
  %1117 = vmatprep.mubr.bf16.mxu0 0
  %1118 = vmatmul.mubr.bf16.gmra.mrb[0].mxu0 %v911
  %v1119 = vpop.f32.mrb[0].mxu0
  %v1120 = vadd.f32 %v916, %v1119
  %v1121 = vpop.f32.mrb[0].mxu0
  %v1122 = vpop.f32.mrb[0].mxu0
  %v1123 = vadd.f32 %v916, %v1122
  %v1124 = vpop.f32.mrb[0].mxu0
  %1125 = vdwg.mxu0
  %v1126 = vld [vmem:[%s3 + $0x4] sm:$0x1]
  %v1127 = vld [vmem:[%s3 + $0x5] sm:$0x1]
  %1128 = vadd.xlane.f32.xlu0 %v1000
  %v1129 = vpop.xlane.xlu0 %1128
  %1130 = vadd.xlane.f32.xlu0 %v1003
  %v1131 = vpop.xlane.xlu0 %1130
  %1132 = vadd.xlane.f32.xlu0 %v1008
  %v1133 = vpop.xlane.xlu0 %1132
  %1134 = vadd.xlane.f32.xlu0 %v1011
  %v1135 = vpop.xlane.xlu0 %1134
  %1136 = vadd.xlane.f32.xlu0 %v1016
  %v1137 = vpop.xlane.xlu0 %1136
  %1138 = vadd.xlane.f32.xlu0 %v1019
  %v1139 = vpop.xlane.xlu0 %1138
  %1140 = vadd.xlane.f32.xlu0 %v1024
  %v1141 = vpop.xlane.xlu0 %1140
  %1142 = vadd.xlane.f32.xlu0 %v1027
  %v1143 = vpop.xlane.xlu0 %1142
  %1144 = vadd.xlane.f32.xlu0 %v1032
  %v1145 = vpop.xlane.xlu0 %1144
  %1146 = vadd.xlane.f32.xlu0 %v1035
  %v1147 = vpop.xlane.xlu0 %1146
  %1148 = vadd.xlane.f32.xlu0 %v1040
  %v1149 = vpop.xlane.xlu0 %1148
  %1150 = vadd.xlane.f32.xlu0 %v1043
  %v1151 = vpop.xlane.xlu0 %1150
  %1152 = vadd.xlane.f32.xlu0 %v1048
  %v1153 = vpop.xlane.xlu0 %1152
  %1154 = vadd.xlane.f32.xlu0 %v1051
  %v1155 = vpop.xlane.xlu0 %1154
  %1156 = vadd.xlane.f32.xlu0 %v1056
  %v1157 = vpop.xlane.xlu0 %1156
  %1158 = vadd.xlane.f32.xlu0 %v1059
  %v1159 = vpop.xlane.xlu0 %1158
  %1160 = vadd.xlane.f32.xlu0 %v1064
  %v1161 = vpop.xlane.xlu0 %1160
  %1162 = vadd.xlane.f32.xlu0 %v1067
  %v1163 = vpop.xlane.xlu0 %1162
  %1164 = vadd.xlane.f32.xlu0 %v1072
  %v1165 = vpop.xlane.xlu0 %1164
  %1166 = vadd.xlane.f32.xlu0 %v1075
  %v1167 = vpop.xlane.xlu0 %1166
  %1168 = vadd.xlane.f32.xlu0 %v1080
  %v1169 = vpop.xlane.xlu0 %1168
  %1170 = vadd.xlane.f32.xlu0 %v1083
  %v1171 = vpop.xlane.xlu0 %1170
  %1172 = vadd.xlane.f32.xlu0 %v1088
  %v1173 = vpop.xlane.xlu0 %1172
  %1174 = vadd.xlane.f32.xlu0 %v1091
  %v1175 = vpop.xlane.xlu0 %1174
  %1176 = vadd.xlane.f32.xlu0 %v1096
  %v1177 = vpop.xlane.xlu0 %1176
  %1178 = vadd.xlane.f32.xlu0 %v1099
  %v1179 = vpop.xlane.xlu0 %1178
  %1180 = vadd.xlane.f32.xlu0 %v1104
  %v1181 = vpop.xlane.xlu0 %1180
  %1182 = vadd.xlane.f32.xlu0 %v1107
  %v1183 = vpop.xlane.xlu0 %1182
  %1184 = vadd.xlane.f32.xlu0 %v1112
  %v1185 = vpop.xlane.xlu0 %1184
  %1186 = vadd.xlane.f32.xlu0 %v1115
  %v1187 = vpop.xlane.xlu0 %1186
  %1188 = vadd.xlane.f32.xlu0 %v1120
  %v1189 = vpop.xlane.xlu0 %1188
  %1190 = vadd.xlane.f32.xlu0 %v1123
  %v1191 = vpop.xlane.xlu0 %1190
  %v1192 = vmul.f32 %v1129, 0.03125
  %v1193 = vmul.f32 %v1131, 0.03125
  %v1194 = vmul.f32 %v1133, 0.03125
  %v1195 = vmul.f32 %v1135, 0.03125
  %v1196 = vmul.f32 %v1137, 0.03125
  %v1197 = vmul.f32 %v1139, 0.03125
  %v1198 = vmul.f32 %v1141, 0.03125
  %v1199 = vmul.f32 %v1143, 0.03125
  %v1200 = vmul.f32 %v1145, 0.03125
  %v1201 = vmul.f32 %v1147, 0.03125
  %v1202 = vmul.f32 %v1149, 0.03125
  %v1203 = vmul.f32 %v1151, 0.03125
  %v1204 = vmul.f32 %v1153, 0.03125
  %v1205 = vmul.f32 %v1155, 0.03125
  %v1206 = vmul.f32 %v1157, 0.03125
  %v1207 = vmul.f32 %v1159, 0.03125
  %v1208 = vmul.f32 %v1161, 0.03125
  %v1209 = vmul.f32 %v1163, 0.03125
  %v1210 = vmul.f32 %v1165, 0.03125
  %v1211 = vmul.f32 %v1167, 0.03125
  %v1212 = vmul.f32 %v1169, 0.03125
  %v1213 = vmul.f32 %v1171, 0.03125
  %v1214 = vmul.f32 %v1173, 0.03125
  %v1215 = vmul.f32 %v1175, 0.03125
  %v1216 = vmul.f32 %v1177, 0.03125
  %v1217 = vmul.f32 %v1179, 0.03125
  %v1218 = vmul.f32 %v1181, 0.03125
  %v1219 = vmul.f32 %v1183, 0.03125
  %v1220 = vmul.f32 %v1185, 0.03125
  %v1221 = vmul.f32 %v1187, 0.03125
  %v1222 = vmul.f32 %v1189, 0.03125
  %v1223 = vmul.f32 %v1191, 0.03125
  %v1224 = vsub.f32 %v1000, %v1192
  %v1225 = vsub.f32 %v1003, %v1193
  %v1226 = vsub.f32 %v1008, %v1194
  %v1227 = vsub.f32 %v1011, %v1195
  %v1228 = vsub.f32 %v1016, %v1196
  %v1229 = vsub.f32 %v1019, %v1197
  %v1230 = vsub.f32 %v1024, %v1198
  %v1231 = vsub.f32 %v1027, %v1199
  %v1232 = vsub.f32 %v1032, %v1200
  %v1233 = vsub.f32 %v1035, %v1201
  %v1234 = vsub.f32 %v1040, %v1202
  %v1235 = vsub.f32 %v1043, %v1203
  %v1236 = vsub.f32 %v1048, %v1204
  %v1237 = vsub.f32 %v1051, %v1205
  %v1238 = vsub.f32 %v1056, %v1206
  %v1239 = vsub.f32 %v1059, %v1207
  %v1240 = vsub.f32 %v1064, %v1208
  %v1241 = vsub.f32 %v1067, %v1209
  %v1242 = vsub.f32 %v1072, %v1210
  %v1243 = vsub.f32 %v1075, %v1211
  %v1244 = vsub.f32 %v1080, %v1212
  %v1245 = vsub.f32 %v1083, %v1213
  %v1246 = vsub.f32 %v1088, %v1214
  %v1247 = vsub.f32 %v1091, %v1215
  %v1248 = vsub.f32 %v1096, %v1216
  %v1249 = vsub.f32 %v1099, %v1217
  %v1250 = vsub.f32 %v1104, %v1218
  %v1251 = vsub.f32 %v1107, %v1219
  %v1252 = vsub.f32 %v1112, %v1220
  %v1253 = vsub.f32 %v1115, %v1221
  %v1254 = vsub.f32 %v1120, %v1222
  %v1255 = vsub.f32 %v1123, %v1223
  %v1256 = vmul.f32 %v1224, %v22
  %v1257 = vmul.f32 %v1225, %v22
  %v1258 = vmul.f32 %v1226, %v22
  %v1259 = vmul.f32 %v1227, %v22
  %v1260 = vmul.f32 %v1228, %v22
  %v1261 = vmul.f32 %v1229, %v22
  %v1262 = vmul.f32 %v1230, %v22
  %v1263 = vmul.f32 %v1231, %v22
  %v1264 = vmul.f32 %v1232, %v22
  %v1265 = vmul.f32 %v1233, %v22
  %v1266 = vmul.f32 %v1234, %v22
  %v1267 = vmul.f32 %v1235, %v22
  %v1268 = vmul.f32 %v1236, %v22
  %v1269 = vmul.f32 %v1237, %v22
  %v1270 = vmul.f32 %v1238, %v22
  %v1271 = vmul.f32 %v1239, %v22
  %v1272 = vmul.f32 %v1240, %v22
  %v1273 = vmul.f32 %v1241, %v22
  %v1274 = vmul.f32 %v1242, %v22
  %v1275 = vmul.f32 %v1243, %v22
  %v1276 = vmul.f32 %v1244, %v22
  %v1277 = vmul.f32 %v1245, %v22
  %v1278 = vmul.f32 %v1246, %v22
  %v1279 = vmul.f32 %v1247, %v22
  %v1280 = vmul.f32 %v1248, %v22
  %v1281 = vmul.f32 %v1249, %v22
  %v1282 = vmul.f32 %v1250, %v22
  %v1283 = vmul.f32 %v1251, %v22
  %v1284 = vmul.f32 %v1252, %v22
  %v1285 = vmul.f32 %v1253, %v22
  %v1286 = vmul.f32 %v1254, %v22
  %v1287 = vmul.f32 %v1255, %v22
  %v1288 = vmul.f32 %v1256, %v1256
  %v1289 = vmul.f32 %v1257, %v1257
  %v1290 = vmul.f32 %v1258, %v1258
  %v1291 = vmul.f32 %v1259, %v1259
  %v1292 = vmul.f32 %v1260, %v1260
  %v1293 = vmul.f32 %v1261, %v1261
  %v1294 = vmul.f32 %v1262, %v1262
  %v1295 = vmul.f32 %v1263, %v1263
  %v1296 = vmul.f32 %v1264, %v1264
  %v1297 = vmul.f32 %v1265, %v1265
  %v1298 = vmul.f32 %v1266, %v1266
  %v1299 = vmul.f32 %v1267, %v1267
  %v1300 = vmul.f32 %v1268, %v1268
  %v1301 = vmul.f32 %v1269, %v1269
  %v1302 = vmul.f32 %v1270, %v1270
  %v1303 = vmul.f32 %v1271, %v1271
  %v1304 = vmul.f32 %v1272, %v1272
  %v1305 = vmul.f32 %v1273, %v1273
  %v1306 = vmul.f32 %v1274, %v1274
  %v1307 = vmul.f32 %v1275, %v1275
  %v1308 = vmul.f32 %v1276, %v1276
  %v1309 = vmul.f32 %v1277, %v1277
  %v1310 = vmul.f32 %v1278, %v1278
  %v1311 = vmul.f32 %v1279, %v1279
  %v1312 = vmul.f32 %v1280, %v1280
  %v1313 = vmul.f32 %v1281, %v1281
  %v1314 = vmul.f32 %v1282, %v1282
  %v1315 = vmul.f32 %v1283, %v1283
  %v1316 = vmul.f32 %v1284, %v1284
  %v1317 = vmul.f32 %v1285, %v1285
  %v1318 = vmul.f32 %v1286, %v1286
  %v1319 = vmul.f32 %v1287, %v1287
  %1320 = vadd.xlane.f32.xlu0 %v1288
  %v1321 = vpop.xlane.xlu0 %1320
  %1322 = vadd.xlane.f32.xlu0 %v1289
  %v1323 = vpop.xlane.xlu0 %1322
  %1324 = vadd.xlane.f32.xlu0 %v1290
  %v1325 = vpop.xlane.xlu0 %1324
  %1326 = vadd.xlane.f32.xlu0 %v1291
  %v1327 = vpop.xlane.xlu0 %1326
  %1328 = vadd.xlane.f32.xlu0 %v1292
  %v1329 = vpop.xlane.xlu0 %1328
  %1330 = vadd.xlane.f32.xlu0 %v1293
  %v1331 = vpop.xlane.xlu0 %1330
  %1332 = vadd.xlane.f32.xlu0 %v1294
  %v1333 = vpop.xlane.xlu0 %1332
  %1334 = vadd.xlane.f32.xlu0 %v1295
  %v1335 = vpop.xlane.xlu0 %1334
  %1336 = vadd.xlane.f32.xlu0 %v1296
  %v1337 = vpop.xlane.xlu0 %1336
  %1338 = vadd.xlane.f32.xlu0 %v1297
  %v1339 = vpop.xlane.xlu0 %1338
  %1340 = vadd.xlane.f32.xlu0 %v1298
  %v1341 = vpop.xlane.xlu0 %1340
  %1342 = vadd.xlane.f32.xlu0 %v1299
  %v1343 = vpop.xlane.xlu0 %1342
  %1344 = vadd.xlane.f32.xlu0 %v1300
  %v1345 = vpop.xlane.xlu0 %1344
  %1346 = vadd.xlane.f32.xlu0 %v1301
  %v1347 = vpop.xlane.xlu0 %1346
  %1348 = vadd.xlane.f32.xlu0 %v1302
  %v1349 = vpop.xlane.xlu0 %1348
  %1350 = vadd.xlane.f32.xlu0 %v1303
  %v1351 = vpop.xlane.xlu0 %1350
  %1352 = vadd.xlane.f32.xlu0 %v1304
  %v1353 = vpop.xlane.xlu0 %1352
  %1354 = vadd.xlane.f32.xlu0 %v1305
  %v1355 = vpop.xlane.xlu0 %1354
  %1356 = vadd.xlane.f32.xlu0 %v1306
  %v1357 = vpop.xlane.xlu0 %1356
  %1358 = vadd.xlane.f32.xlu0 %v1307
  %v1359 = vpop.xlane.xlu0 %1358
  %1360 = vadd.xlane.f32.xlu0 %v1308
  %v1361 = vpop.xlane.xlu0 %1360
  %1362 = vadd.xlane.f32.xlu0 %v1309
  %v1363 = vpop.xlane.xlu0 %1362
  %1364 = vadd.xlane.f32.xlu0 %v1310
  %v1365 = vpop.xlane.xlu0 %1364
  %1366 = vadd.xlane.f32.xlu0 %v1311
  %v1367 = vpop.xlane.xlu0 %1366
  %1368 = vadd.xlane.f32.xlu0 %v1312
  %v1369 = vpop.xlane.xlu0 %1368
  %1370 = vadd.xlane.f32.xlu0 %v1313
  %v1371 = vpop.xlane.xlu0 %1370
  %1372 = vadd.xlane.f32.xlu0 %v1314
  %v1373 = vpop.xlane.xlu0 %1372
  %1374 = vadd.xlane.f32.xlu0 %v1315
  %v1375 = vpop.xlane.xlu0 %1374
  %1376 = vadd.xlane.f32.xlu0 %v1316
  %v1377 = vpop.xlane.xlu0 %1376
  %1378 = vadd.xlane.f32.xlu0 %v1317
  %v1379 = vpop.xlane.xlu0 %1378
  %1380 = vadd.xlane.f32.xlu0 %v1318
  %v1381 = vpop.xlane.xlu0 %1380
  %1382 = vadd.xlane.f32.xlu0 %v1319
  %v1383 = vpop.xlane.xlu0 %1382
  %v1384 = vmul.f32 %v1321, 0.03125
  %v1385 = vmul.f32 %v1323, 0.03125
  %v1386 = vmul.f32 %v1325, 0.03125
  %v1387 = vmul.f32 %v1327, 0.03125
  %v1388 = vmul.f32 %v1329, 0.03125
  %v1389 = vmul.f32 %v1331, 0.03125
  %v1390 = vmul.f32 %v1333, 0.03125
  %v1391 = vmul.f32 %v1335, 0.03125
  %v1392 = vmul.f32 %v1337, 0.03125
  %v1393 = vmul.f32 %v1339, 0.03125
  %v1394 = vmul.f32 %v1341, 0.03125
  %v1395 = vmul.f32 %v1343, 0.03125
  %v1396 = vmul.f32 %v1345, 0.03125
  %v1397 = vmul.f32 %v1347, 0.03125
  %v1398 = vmul.f32 %v1349, 0.03125
  %v1399 = vmul.f32 %v1351, 0.03125
  %v1400 = vmul.f32 %v1353, 0.03125
  %v1401 = vmul.f32 %v1355, 0.03125
  %v1402 = vmul.f32 %v1357, 0.03125
  %v1403 = vmul.f32 %v1359, 0.03125
  %v1404 = vmul.f32 %v1361, 0.03125
  %v1405 = vmul.f32 %v1363, 0.03125
  %v1406 = vmul.f32 %v1365, 0.03125
  %v1407 = vmul.f32 %v1367, 0.03125
  %v1408 = vmul.f32 %v1369, 0.03125
  %v1409 = vmul.f32 %v1371, 0.03125
  %v1410 = vmul.f32 %v1373, 0.03125
  %v1411 = vmul.f32 %v1375, 0.03125
  %v1412 = vmul.f32 %v1377, 0.03125
  %v1413 = vmul.f32 %v1379, 0.03125
  %v1414 = vmul.f32 %v1381, 0.03125
  %v1415 = vmul.f32 %v1383, 0.03125
  %v1416 = vadd.f32 %v1384, 1e-05
  %v1417 = vadd.f32 %v1385, 1e-05
  %v1418 = vadd.f32 %v1386, 1e-05
  %v1419 = vadd.f32 %v1387, 1e-05
  %v1420 = vadd.f32 %v1388, 1e-05
  %v1421 = vadd.f32 %v1389, 1e-05
  %v1422 = vadd.f32 %v1390, 1e-05
  %v1423 = vadd.f32 %v1391, 1e-05
  %v1424 = vadd.f32 %v1392, 1e-05
  %v1425 = vadd.f32 %v1393, 1e-05
  %v1426 = vadd.f32 %v1394, 1e-05
  %v1427 = vadd.f32 %v1395, 1e-05
  %v1428 = vadd.f32 %v1396, 1e-05
  %v1429 = vadd.f32 %v1397, 1e-05
  %v1430 = vadd.f32 %v1398, 1e-05
  %v1431 = vadd.f32 %v1399, 1e-05
  %v1432 = vadd.f32 %v1400, 1e-05
  %v1433 = vadd.f32 %v1401, 1e-05
  %v1434 = vadd.f32 %v1402, 1e-05
  %v1435 = vadd.f32 %v1403, 1e-05
  %v1436 = vadd.f32 %v1404, 1e-05
  %v1437 = vadd.f32 %v1405, 1e-05
  %v1438 = vadd.f32 %v1406, 1e-05
  %v1439 = vadd.f32 %v1407, 1e-05
  %v1440 = vadd.f32 %v1408, 1e-05
  %v1441 = vadd.f32 %v1409, 1e-05
  %v1442 = vadd.f32 %v1410, 1e-05
  %v1443 = vadd.f32 %v1411, 1e-05
  %v1444 = vadd.f32 %v1412, 1e-05
  %v1445 = vadd.f32 %v1413, 1e-05
  %v1446 = vadd.f32 %v1414, 1e-05
  %v1447 = vadd.f32 %v1415, 1e-05
  %v1448 = vrsqrt.pop %v1416
  %v1449 = vrsqrt.pop %v1417
  %v1450 = vrsqrt.pop %v1418
  %v1451 = vrsqrt.pop %v1419
  %v1452 = vrsqrt.pop %v1420
  %v1453 = vrsqrt.pop %v1421
  %v1454 = vrsqrt.pop %v1422
  %v1455 = vrsqrt.pop %v1423
  %v1456 = vrsqrt.pop %v1424
  %v1457 = vrsqrt.pop %v1425
  %v1458 = vrsqrt.pop %v1426
  %v1459 = vrsqrt.pop %v1427
  %v1460 = vrsqrt.pop %v1428
  %v1461 = vrsqrt.pop %v1429
  %v1462 = vrsqrt.pop %v1430
  %v1463 = vrsqrt.pop %v1431
  %v1464 = vrsqrt.pop %v1432
  %v1465 = vrsqrt.pop %v1433
  %v1466 = vrsqrt.pop %v1434
  %v1467 = vrsqrt.pop %v1435
  %v1468 = vrsqrt.pop %v1436
  %v1469 = vrsqrt.pop %v1437
  %v1470 = vrsqrt.pop %v1438
  %v1471 = vrsqrt.pop %v1439
  %v1472 = vrsqrt.pop %v1440
  %v1473 = vrsqrt.pop %v1441
  %v1474 = vrsqrt.pop %v1442
  %v1475 = vrsqrt.pop %v1443
  %v1476 = vrsqrt.pop %v1444
  %v1477 = vrsqrt.pop %v1445
  %v1478 = vrsqrt.pop %v1446
  %v1479 = vrsqrt.pop %v1447
  %v1480 = vmul.f32 %v1256, %v1448
  %v1481 = vmul.f32 %v1257, %v1449
  %v1482 = vmul.f32 %v1258, %v1450
  %v1483 = vmul.f32 %v1259, %v1451
  %v1484 = vmul.f32 %v1260, %v1452
  %v1485 = vmul.f32 %v1261, %v1453
  %v1486 = vmul.f32 %v1262, %v1454
  %v1487 = vmul.f32 %v1263, %v1455
  %v1488 = vmul.f32 %v1264, %v1456
  %v1489 = vmul.f32 %v1265, %v1457
  %v1490 = vmul.f32 %v1266, %v1458
  %v1491 = vmul.f32 %v1267, %v1459
  %v1492 = vmul.f32 %v1268, %v1460
  %v1493 = vmul.f32 %v1269, %v1461
  %v1494 = vmul.f32 %v1270, %v1462
  %v1495 = vmul.f32 %v1271, %v1463
  %v1496 = vmul.f32 %v1272, %v1464
  %v1497 = vmul.f32 %v1273, %v1465
  %v1498 = vmul.f32 %v1274, %v1466
  %v1499 = vmul.f32 %v1275, %v1467
  %v1500 = vmul.f32 %v1276, %v1468
  %v1501 = vmul.f32 %v1277, %v1469
  %v1502 = vmul.f32 %v1278, %v1470
  %v1503 = vmul.f32 %v1279, %v1471
  %v1504 = vmul.f32 %v1280, %v1472
  %v1505 = vmul.f32 %v1281, %v1473
  %v1506 = vmul.f32 %v1282, %v1474
  %v1507 = vmul.f32 %v1283, %v1475
  %v1508 = vmul.f32 %v1284, %v1476
  %v1509 = vmul.f32 %v1285, %v1477
  %v1510 = vmul.f32 %v1286, %v1478
  %v1511 = vmul.f32 %v1287, %v1479
  %v1512 = vlaneseq
  %v1513 = vshrl.u32 %v1512, 7
  %v1514 = vsub.s32 0, %v1513
  %v1515 = vrot.slane %v1126, %v1514
  %v1516 = vmul.f32 %v1480, %v1515
  %v1517 = vmul.f32 %v1481, %v1515
  %v1518 = vmul.f32 %v1482, %v1515
  %v1519 = vmul.f32 %v1483, %v1515
  %v1520 = vmul.f32 %v1484, %v1515
  %v1521 = vmul.f32 %v1485, %v1515
  %v1522 = vmul.f32 %v1486, %v1515
  %v1523 = vmul.f32 %v1487, %v1515
  %v1524 = vmul.f32 %v1488, %v1515
  %v1525 = vmul.f32 %v1489, %v1515
  %v1526 = vmul.f32 %v1490, %v1515
  %v1527 = vmul.f32 %v1491, %v1515
  %v1528 = vmul.f32 %v1492, %v1515
  %v1529 = vmul.f32 %v1493, %v1515
  %v1530 = vmul.f32 %v1494, %v1515
  %v1531 = vmul.f32 %v1495, %v1515
  %v1532 = vmul.f32 %v1496, %v1515
  %v1533 = vmul.f32 %v1497, %v1515
  %v1534 = vmul.f32 %v1498, %v1515
  %v1535 = vmul.f32 %v1499, %v1515
  %v1536 = vmul.f32 %v1500, %v1515
  %v1537 = vmul.f32 %v1501, %v1515
  %v1538 = vmul.f32 %v1502, %v1515
  %v1539 = vmul.f32 %v1503, %v1515
  %v1540 = vmul.f32 %v1504, %v1515
  %v1541 = vmul.f32 %v1505, %v1515
  %v1542 = vmul.f32 %v1506, %v1515
  %v1543 = vmul.f32 %v1507, %v1515
  %v1544 = vmul.f32 %v1508, %v1515
  %v1545 = vmul.f32 %v1509, %v1515
  %v1546 = vmul.f32 %v1510, %v1515
  %v1547 = vmul.f32 %v1511, %v1515
  %v1548 = vlaneseq
  %v1549 = vshrl.u32 %v1548, 7
  %v1550 = vsub.s32 0, %v1549
  %v1551 = vrot.slane %v1127, %v1550
  %v1552 = vadd.f32 %v1516, %v1551
  %v1553 = vadd.f32 %v1517, %v1551
  %v1554 = vadd.f32 %v1518, %v1551
  %v1555 = vadd.f32 %v1519, %v1551
  %v1556 = vadd.f32 %v1520, %v1551
  %v1557 = vadd.f32 %v1521, %v1551
  %v1558 = vadd.f32 %v1522, %v1551
  %v1559 = vadd.f32 %v1523, %v1551
  %v1560 = vadd.f32 %v1524, %v1551
  %v1561 = vadd.f32 %v1525, %v1551
  %v1562 = vadd.f32 %v1526, %v1551
  %v1563 = vadd.f32 %v1527, %v1551
  %v1564 = vadd.f32 %v1528, %v1551
  %v1565 = vadd.f32 %v1529, %v1551
  %v1566 = vadd.f32 %v1530, %v1551
  %v1567 = vadd.f32 %v1531, %v1551
  %v1568 = vadd.f32 %v1532, %v1551
  %v1569 = vadd.f32 %v1533, %v1551
  %v1570 = vadd.f32 %v1534, %v1551
  %v1571 = vadd.f32 %v1535, %v1551
  %v1572 = vadd.f32 %v1536, %v1551
  %v1573 = vadd.f32 %v1537, %v1551
  %v1574 = vadd.f32 %v1538, %v1551
  %v1575 = vadd.f32 %v1539, %v1551
  %v1576 = vadd.f32 %v1540, %v1551
  %v1577 = vadd.f32 %v1541, %v1551
  %v1578 = vadd.f32 %v1542, %v1551
  %v1579 = vadd.f32 %v1543, %v1551
  %v1580 = vadd.f32 %v1544, %v1551
  %v1581 = vadd.f32 %v1545, %v1551
  %v1582 = vadd.f32 %v1546, %v1551
  %v1583 = vadd.f32 %v1547, %v1551
  %v1584 = vmax.f32 %v1552, 0.0
  %v1585 = vmax.f32 %v1553, 0.0
  %v1586 = vmax.f32 %v1554, 0.0
  %v1587 = vmax.f32 %v1555, 0.0
  %v1588 = vmax.f32 %v1556, 0.0
  %v1589 = vmax.f32 %v1557, 0.0
  %v1590 = vmax.f32 %v1558, 0.0
  %v1591 = vmax.f32 %v1559, 0.0
  %v1592 = vmax.f32 %v1560, 0.0
  %v1593 = vmax.f32 %v1561, 0.0
  %v1594 = vmax.f32 %v1562, 0.0
  %v1595 = vmax.f32 %v1563, 0.0
  %v1596 = vmax.f32 %v1564, 0.0
  %v1597 = vmax.f32 %v1565, 0.0
  %v1598 = vmax.f32 %v1566, 0.0
  %v1599 = vmax.f32 %v1567, 0.0
  %v1600 = vmax.f32 %v1568, 0.0
  %v1601 = vmax.f32 %v1569, 0.0
  %v1602 = vmax.f32 %v1570, 0.0
  %v1603 = vmax.f32 %v1571, 0.0
  %v1604 = vmax.f32 %v1572, 0.0
  %v1605 = vmax.f32 %v1573, 0.0
  %v1606 = vmax.f32 %v1574, 0.0
  %v1607 = vmax.f32 %v1575, 0.0
  %v1608 = vmax.f32 %v1576, 0.0
  %v1609 = vmax.f32 %v1577, 0.0
  %v1610 = vmax.f32 %v1578, 0.0
  %v1611 = vmax.f32 %v1579, 0.0
  %v1612 = vmax.f32 %v1580, 0.0
  %v1613 = vmax.f32 %v1581, 0.0
  %v1614 = vmax.f32 %v1582, 0.0
  %v1615 = vmax.f32 %v1583, 0.0
  %s1616 = scalar_lea.vmem %s2, 64
  %v1617 = vld [vmem:[%s1616] sm:$0xf]
  %v1618 = vld [vmem:[%s1616 + $0x4] sm:$0xf]
  %v1619 = vld [vmem:[%s1616 + $0x8] sm:$0xf]
  %v1620 = vld [vmem:[%s1616 + $0xc] sm:$0xf]
  %v1621 = vld [vmem:[%s1616 + $0x10] sm:$0xf]
  %v1622 = vld [vmem:[%s1616 + $0x14] sm:$0xf]
  %v1623 = vld [vmem:[%s1616 + $0x18] sm:$0xf]
  %v1624 = vld [vmem:[%s1616 + $0x1c] sm:$0xf]
  %v1625 = vld [vmem:[%s1616 + $0x20] sm:$0xf]
  %v1626 = vld [vmem:[%s1616 + $0x24] sm:$0xf]
  %v1627 = vld [vmem:[%s1616 + $0x28] sm:$0xf]
  %v1628 = vld [vmem:[%s1616 + $0x2c] sm:$0xf]
  %v1629 = vld [vmem:[%s1616 + $0x30] sm:$0xf]
  %v1630 = vld [vmem:[%s1616 + $0x34] sm:$0xf]
  %v1631 = vld [vmem:[%s1616 + $0x38] sm:$0xf]
  %v1632 = vld [vmem:[%s1616 + $0x3c] sm:$0xf]
  %v1633 = vpack.c.bf16 %v1585, %v1584
  %v1634 = vpack.c.bf16 %v1587, %v1586
  %v1635 = vpack.c.bf16 %v1589, %v1588
  %v1636 = vpack.c.bf16 %v1591, %v1590
  %v1637 = vpack.c.bf16 %v1593, %v1592
  %v1638 = vpack.c.bf16 %v1595, %v1594
  %v1639 = vpack.c.bf16 %v1597, %v1596
  %v1640 = vpack.c.bf16 %v1599, %v1598
  %v1641 = vpack.c.bf16 %v1601, %v1600
  %v1642 = vpack.c.bf16 %v1603, %v1602
  %v1643 = vpack.c.bf16 %v1605, %v1604
  %v1644 = vpack.c.bf16 %v1607, %v1606
  %v1645 = vpack.c.bf16 %v1609, %v1608
  %v1646 = vpack.c.bf16 %v1611, %v1610
  %v1647 = vpack.c.bf16 %v1613, %v1612
  %v1648 = vpack.c.bf16 %v1615, %v1614
  %v1649 = vld [vmem:[%s3 + $0x6] sm:$0x1]
  %v1650 = vlaneseq
  %v1651 = vshrl.u32 %v1650, 7
  %v1652 = vsub.s32 0, %v1651
  %v1653 = vrot.slane %v1649, %v1652
  %v1670 = vunpack.c.l.b16 %v1617
  %v1671 = vunpack.c.l.b16 %v1618
  %v1672 = vunpack.c.l.b16 %v1619
  %v1673 = vunpack.c.l.b16 %v1620
  %v1674 = vunpack.c.l.b16 %v1621
  %v1675 = vunpack.c.l.b16 %v1622
  %v1676 = vunpack.c.l.b16 %v1623
  %v1677 = vunpack.c.l.b16 %v1624
  %v1678 = vunpack.c.l.b16 %v1625
  %v1679 = vunpack.c.l.b16 %v1626
  %v1680 = vunpack.c.l.b16 %v1627
  %v1681 = vunpack.c.l.b16 %v1628
  %v1682 = vunpack.c.l.b16 %v1629
  %v1683 = vunpack.c.l.b16 %v1630
  %v1684 = vunpack.c.l.b16 %v1631
  %v1685 = vunpack.c.l.b16 %v1632
  %v1686 = vpack.c.b16 %v1671, %v1670
  %v1687 = vpack.c.b16 %v1673, %v1672
  %v1688 = vpack.c.b16 %v1675, %v1674
  %v1689 = vpack.c.b16 %v1677, %v1676
  %v1690 = vpack.c.b16 %v1679, %v1678
  %v1691 = vpack.c.b16 %v1681, %v1680
  %v1692 = vpack.c.b16 %v1683, %v1682
  %v1693 = vpack.c.b16 %v1685, %v1684
  %1702 = vmatprep.subr.bf16.mxu0 0
  %1703 = vmatpush1.bf16.msra.mxu0 %v1686
  %1704 = vmatprep.subr.bf16.mxu0 0
  %1705 = vmatpush1.bf16.msra.mxu0 %v1687
  %1706 = vmatprep.subr.bf16.mxu0 0
  %1707 = vmatpush1.bf16.msra.mxu0 %v1688
  %1708 = vmatprep.subr.bf16.mxu0 0
  %1709 = vmatpush1.bf16.msra.mxu0 %v1689
  %1710 = vmatprep.subr.bf16.mxu0 0
  %1711 = vmatpush1.bf16.msra.mxu0 %v1690
  %1712 = vmatprep.subr.bf16.mxu0 0
  %1713 = vmatpush1.bf16.msra.mxu0 %v1691
  %1714 = vmatprep.subr.bf16.mxu0 0
  %1715 = vmatpush1.bf16.msra.mxu0 %v1692
  %1716 = vmatprep.subr.bf16.mxu0 0
  %1717 = vmatpush1.bf16.msra.mxu0 %v1693
  %1718 = vmatprep.subr.bf16.mxu0 0
  %1719 = vmatpush1.bf16.msra.mxu0 0
  %1720 = vmatprep.subr.bf16.mxu0 0
  %1721 = vmatpush1.bf16.msra.mxu0 0
  %1722 = vmatprep.subr.bf16.mxu0 0
  %1723 = vmatpush1.bf16.msra.mxu0 0
  %1724 = vmatprep.subr.bf16.mxu0 0
  %1725 = vmatpush1.bf16.msra.mxu0 0
  %1726 = vmatprep.subr.bf16.mxu0 0
  %1727 = vmatpush1.bf16.msra.mxu0 0
  %1728 = vmatprep.subr.bf16.mxu0 0
  %1729 = vmatpush1.bf16.msra.mxu0 0
  %1730 = vmatprep.subr.bf16.mxu0 0
  %1731 = vmatpush1.bf16.msra.mxu0 0
  %1732 = vmatprep.subr.bf16.mxu0 0
  %1733 = vmatpush1.bf16.msra.mxu0 0
  %1734 = vmatprep.mubr.bf16.mxu0 0
  %1735 = vmatmul.mubr.bf16.gmra.mrb[0].mxu0 %v1633
  %v1736 = vpop.f32.mrb[0].mxu0
  %v1737 = vadd.f32 %v1653, %v1736
  %v1738 = vpop.f32.mrb[0].mxu0
  %v1739 = vpop.f32.mrb[0].mxu0
  %v1740 = vadd.f32 %v1653, %v1739
  %v1741 = vpop.f32.mrb[0].mxu0
  %1742 = vmatprep.mubr.bf16.mxu0 0
  %1743 = vmatmul.mubr.bf16.gmra.mrb[0].mxu0 %v1634
  %v1744 = vpop.f32.mrb[0].mxu0
  %v1745 = vadd.f32 %v1653, %v1744
  %v1746 = vpop.f32.mrb[0].mxu0
  %v1747 = vpop.f32.mrb[0].mxu0
  %v1748 = vadd.f32 %v1653, %v1747
  %v1749 = vpop.f32.mrb[0].mxu0
  %1750 = vmatprep.mubr.bf16.mxu0 0
  %1751 = vmatmul.mubr.bf16.gmra.mrb[0].mxu0 %v1635
  %v1752 = vpop.f32.mrb[0].mxu0
  %v1753 = vadd.f32 %v1653, %v1752
  %v1754 = vpop.f32.mrb[0].mxu0
  %v1755 = vpop.f32.mrb[0].mxu0
  %v1756 = vadd.f32 %v1653, %v1755
  %v1757 = vpop.f32.mrb[0].mxu0
  %1758 = vmatprep.mubr.bf16.mxu0 0
  %1759 = vmatmul.mubr.bf16.gmra.mrb[0].mxu0 %v1636
  %v1760 = vpop.f32.mrb[0].mxu0
  %v1761 = vadd.f32 %v1653, %v1760
  %v1762 = vpop.f32.mrb[0].mxu0
  %v1763 = vpop.f32.mrb[0].mxu0
  %v1764 = vadd.f32 %v1653, %v1763
  %v1765 = vpop.f32.mrb[0].mxu0
  %1766 = vmatprep.mubr.bf16.mxu0 0
  %1767 = vmatmul.mubr.bf16.gmra.mrb[0].mxu0 %v1637
  %v1768 = vpop.f32.mrb[0].mxu0
  %v1769 = vadd.f32 %v1653, %v1768
  %v1770 = vpop.f32.mrb[0].mxu0
  %v1771 = vpop.f32.mrb[0].mxu0
  %v1772 = vadd.f32 %v1653, %v1771
  %v1773 = vpop.f32.mrb[0].mxu0
  %1774 = vmatprep.mubr.bf16.mxu0 0
  %1775 = vmatmul.mubr.bf16.gmra.mrb[0].mxu0 %v1638
  %v1776 = vpop.f32.mrb[0].mxu0
  %v1777 = vadd.f32 %v1653, %v1776
  %v1778 = vpop.f32.mrb[0].mxu0
  %v1779 = vpop.f32.mrb[0].mxu0
  %v1780 = vadd.f32 %v1653, %v1779
  %v1781 = vpop.f32.mrb[0].mxu0
  %1782 = vmatprep.mubr.bf16.mxu0 0
  %1783 = vmatmul.mubr.bf16.gmra.mrb[0].mxu0 %v1639
  %v1784 = vpop.f32.mrb[0].mxu0
  %v1785 = vadd.f32 %v1653, %v1784
  %v1786 = vpop.f32.mrb[0].mxu0
  %v1787 = vpop.f32.mrb[0].mxu0
  %v1788 = vadd.f32 %v1653, %v1787
  %v1789 = vpop.f32.mrb[0].mxu0
  %1790 = vmatprep.mubr.bf16.mxu0 0
  %1791 = vmatmul.mubr.bf16.gmra.mrb[0].mxu0 %v1640
  %v1792 = vpop.f32.mrb[0].mxu0
  %v1793 = vadd.f32 %v1653, %v1792
  %v1794 = vpop.f32.mrb[0].mxu0
  %v1795 = vpop.f32.mrb[0].mxu0
  %v1796 = vadd.f32 %v1653, %v1795
  %v1797 = vpop.f32.mrb[0].mxu0
  %1798 = vmatprep.mubr.bf16.mxu0 0
  %1799 = vmatmul.mubr.bf16.gmra.mrb[0].mxu0 %v1641
  %v1800 = vpop.f32.mrb[0].mxu0
  %v1801 = vadd.f32 %v1653, %v1800
  %v1802 = vpop.f32.mrb[0].mxu0
  %v1803 = vpop.f32.mrb[0].mxu0
  %v1804 = vadd.f32 %v1653, %v1803
  %v1805 = vpop.f32.mrb[0].mxu0
  %1806 = vmatprep.mubr.bf16.mxu0 0
  %1807 = vmatmul.mubr.bf16.gmra.mrb[0].mxu0 %v1642
  %v1808 = vpop.f32.mrb[0].mxu0
  %v1809 = vadd.f32 %v1653, %v1808
  %v1810 = vpop.f32.mrb[0].mxu0
  %v1811 = vpop.f32.mrb[0].mxu0
  %v1812 = vadd.f32 %v1653, %v1811
  %v1813 = vpop.f32.mrb[0].mxu0
  %1814 = vmatprep.mubr.bf16.mxu0 0
  %1815 = vmatmul.mubr.bf16.gmra.mrb[0].mxu0 %v1643
  %v1816 = vpop.f32.mrb[0].mxu0
  %v1817 = vadd.f32 %v1653, %v1816
  %v1818 = vpop.f32.mrb[0].mxu0
  %v1819 = vpop.f32.mrb[0].mxu0
  %v1820 = vadd.f32 %v1653, %v1819
  %v1821 = vpop.f32.mrb[0].mxu0
  %1822 = vmatprep.mubr.bf16.mxu0 0
  %1823 = vmatmul.mubr.bf16.gmra.mrb[0].mxu0 %v1644
  %v1824 = vpop.f32.mrb[0].mxu0
  %v1825 = vadd.f32 %v1653, %v1824
  %v1826 = vpop.f32.mrb[0].mxu0
  %v1827 = vpop.f32.mrb[0].mxu0
  %v1828 = vadd.f32 %v1653, %v1827
  %v1829 = vpop.f32.mrb[0].mxu0
  %1830 = vmatprep.mubr.bf16.mxu0 0
  %1831 = vmatmul.mubr.bf16.gmra.mrb[0].mxu0 %v1645
  %v1832 = vpop.f32.mrb[0].mxu0
  %v1833 = vadd.f32 %v1653, %v1832
  %v1834 = vpop.f32.mrb[0].mxu0
  %v1835 = vpop.f32.mrb[0].mxu0
  %v1836 = vadd.f32 %v1653, %v1835
  %v1837 = vpop.f32.mrb[0].mxu0
  %1838 = vmatprep.mubr.bf16.mxu0 0
  %1839 = vmatmul.mubr.bf16.gmra.mrb[0].mxu0 %v1646
  %v1840 = vpop.f32.mrb[0].mxu0
  %v1841 = vadd.f32 %v1653, %v1840
  %v1842 = vpop.f32.mrb[0].mxu0
  %v1843 = vpop.f32.mrb[0].mxu0
  %v1844 = vadd.f32 %v1653, %v1843
  %v1845 = vpop.f32.mrb[0].mxu0
  %1846 = vmatprep.mubr.bf16.mxu0 0
  %1847 = vmatmul.mubr.bf16.gmra.mrb[0].mxu0 %v1647
  %v1848 = vpop.f32.mrb[0].mxu0
  %v1849 = vadd.f32 %v1653, %v1848
  %v1850 = vpop.f32.mrb[0].mxu0
  %v1851 = vpop.f32.mrb[0].mxu0
  %v1852 = vadd.f32 %v1653, %v1851
  %v1853 = vpop.f32.mrb[0].mxu0
  %1854 = vmatprep.mubr.bf16.mxu0 0
  %1855 = vmatmul.mubr.bf16.gmra.mrb[0].mxu0 %v1648
  %v1856 = vpop.f32.mrb[0].mxu0
  %v1857 = vadd.f32 %v1653, %v1856
  %v1858 = vpop.f32.mrb[0].mxu0
  %v1859 = vpop.f32.mrb[0].mxu0
  %v1860 = vadd.f32 %v1653, %v1859
  %v1861 = vpop.f32.mrb[0].mxu0
  %1862 = vdwg.mxu0
  %v1863 = vld [vmem:[%s3 + $0x7] sm:$0x1]
  %v1864 = vld [vmem:[%s3 + $0x8] sm:$0x1]
  %1865 = vadd.xlane.f32.xlu0 %v1737
  %v1866 = vpop.xlane.xlu0 %1865
  %1867 = vadd.xlane.f32.xlu0 %v1740
  %v1868 = vpop.xlane.xlu0 %1867
  %1869 = vadd.xlane.f32.xlu0 %v1745
  %v1870 = vpop.xlane.xlu0 %1869
  %1871 = vadd.xlane.f32.xlu0 %v1748
  %v1872 = vpop.xlane.xlu0 %1871
  %1873 = vadd.xlane.f32.xlu0 %v1753
  %v1874 = vpop.xlane.xlu0 %1873
  %1875 = vadd.xlane.f32.xlu0 %v1756
  %v1876 = vpop.xlane.xlu0 %1875
  %1877 = vadd.xlane.f32.xlu0 %v1761
  %v1878 = vpop.xlane.xlu0 %1877
  %1879 = vadd.xlane.f32.xlu0 %v1764
  %v1880 = vpop.xlane.xlu0 %1879
  %1881 = vadd.xlane.f32.xlu0 %v1769
  %v1882 = vpop.xlane.xlu0 %1881
  %1883 = vadd.xlane.f32.xlu0 %v1772
  %v1884 = vpop.xlane.xlu0 %1883
  %1885 = vadd.xlane.f32.xlu0 %v1777
  %v1886 = vpop.xlane.xlu0 %1885
  %1887 = vadd.xlane.f32.xlu0 %v1780
  %v1888 = vpop.xlane.xlu0 %1887
  %1889 = vadd.xlane.f32.xlu0 %v1785
  %v1890 = vpop.xlane.xlu0 %1889
  %1891 = vadd.xlane.f32.xlu0 %v1788
  %v1892 = vpop.xlane.xlu0 %1891
  %1893 = vadd.xlane.f32.xlu0 %v1793
  %v1894 = vpop.xlane.xlu0 %1893
  %1895 = vadd.xlane.f32.xlu0 %v1796
  %v1896 = vpop.xlane.xlu0 %1895
  %1897 = vadd.xlane.f32.xlu0 %v1801
  %v1898 = vpop.xlane.xlu0 %1897
  %1899 = vadd.xlane.f32.xlu0 %v1804
  %v1900 = vpop.xlane.xlu0 %1899
  %1901 = vadd.xlane.f32.xlu0 %v1809
  %v1902 = vpop.xlane.xlu0 %1901
  %1903 = vadd.xlane.f32.xlu0 %v1812
  %v1904 = vpop.xlane.xlu0 %1903
  %1905 = vadd.xlane.f32.xlu0 %v1817
  %v1906 = vpop.xlane.xlu0 %1905
  %1907 = vadd.xlane.f32.xlu0 %v1820
  %v1908 = vpop.xlane.xlu0 %1907
  %1909 = vadd.xlane.f32.xlu0 %v1825
  %v1910 = vpop.xlane.xlu0 %1909
  %1911 = vadd.xlane.f32.xlu0 %v1828
  %v1912 = vpop.xlane.xlu0 %1911
  %1913 = vadd.xlane.f32.xlu0 %v1833
  %v1914 = vpop.xlane.xlu0 %1913
  %1915 = vadd.xlane.f32.xlu0 %v1836
  %v1916 = vpop.xlane.xlu0 %1915
  %1917 = vadd.xlane.f32.xlu0 %v1841
  %v1918 = vpop.xlane.xlu0 %1917
  %1919 = vadd.xlane.f32.xlu0 %v1844
  %v1920 = vpop.xlane.xlu0 %1919
  %1921 = vadd.xlane.f32.xlu0 %v1849
  %v1922 = vpop.xlane.xlu0 %1921
  %1923 = vadd.xlane.f32.xlu0 %v1852
  %v1924 = vpop.xlane.xlu0 %1923
  %1925 = vadd.xlane.f32.xlu0 %v1857
  %v1926 = vpop.xlane.xlu0 %1925
  %1927 = vadd.xlane.f32.xlu0 %v1860
  %v1928 = vpop.xlane.xlu0 %1927
  %v1929 = vmul.f32 %v1866, 0.03125
  %v1930 = vmul.f32 %v1868, 0.03125
  %v1931 = vmul.f32 %v1870, 0.03125
  %v1932 = vmul.f32 %v1872, 0.03125
  %v1933 = vmul.f32 %v1874, 0.03125
  %v1934 = vmul.f32 %v1876, 0.03125
  %v1935 = vmul.f32 %v1878, 0.03125
  %v1936 = vmul.f32 %v1880, 0.03125
  %v1937 = vmul.f32 %v1882, 0.03125
  %v1938 = vmul.f32 %v1884, 0.03125
  %v1939 = vmul.f32 %v1886, 0.03125
  %v1940 = vmul.f32 %v1888, 0.03125
  %v1941 = vmul.f32 %v1890, 0.03125
  %v1942 = vmul.f32 %v1892, 0.03125
  %v1943 = vmul.f32 %v1894, 0.03125
  %v1944 = vmul.f32 %v1896, 0.03125
  %v1945 = vmul.f32 %v1898, 0.03125
  %v1946 = vmul.f32 %v1900, 0.03125
  %v1947 = vmul.f32 %v1902, 0.03125
  %v1948 = vmul.f32 %v1904, 0.03125
  %v1949 = vmul.f32 %v1906, 0.03125
  %v1950 = vmul.f32 %v1908, 0.03125
  %v1951 = vmul.f32 %v1910, 0.03125
  %v1952 = vmul.f32 %v1912, 0.03125
  %v1953 = vmul.f32 %v1914, 0.03125
  %v1954 = vmul.f32 %v1916, 0.03125
  %v1955 = vmul.f32 %v1918, 0.03125
  %v1956 = vmul.f32 %v1920, 0.03125
  %v1957 = vmul.f32 %v1922, 0.03125
  %v1958 = vmul.f32 %v1924, 0.03125
  %v1959 = vmul.f32 %v1926, 0.03125
  %v1960 = vmul.f32 %v1928, 0.03125
  %v1961 = vsub.f32 %v1737, %v1929
  %v1962 = vsub.f32 %v1740, %v1930
  %v1963 = vsub.f32 %v1745, %v1931
  %v1964 = vsub.f32 %v1748, %v1932
  %v1965 = vsub.f32 %v1753, %v1933
  %v1966 = vsub.f32 %v1756, %v1934
  %v1967 = vsub.f32 %v1761, %v1935
  %v1968 = vsub.f32 %v1764, %v1936
  %v1969 = vsub.f32 %v1769, %v1937
  %v1970 = vsub.f32 %v1772, %v1938
  %v1971 = vsub.f32 %v1777, %v1939
  %v1972 = vsub.f32 %v1780, %v1940
  %v1973 = vsub.f32 %v1785, %v1941
  %v1974 = vsub.f32 %v1788, %v1942
  %v1975 = vsub.f32 %v1793, %v1943
  %v1976 = vsub.f32 %v1796, %v1944
  %v1977 = vsub.f32 %v1801, %v1945
  %v1978 = vsub.f32 %v1804, %v1946
  %v1979 = vsub.f32 %v1809, %v1947
  %v1980 = vsub.f32 %v1812, %v1948
  %v1981 = vsub.f32 %v1817, %v1949
  %v1982 = vsub.f32 %v1820, %v1950
  %v1983 = vsub.f32 %v1825, %v1951
  %v1984 = vsub.f32 %v1828, %v1952
  %v1985 = vsub.f32 %v1833, %v1953
  %v1986 = vsub.f32 %v1836, %v1954
  %v1987 = vsub.f32 %v1841, %v1955
  %v1988 = vsub.f32 %v1844, %v1956
  %v1989 = vsub.f32 %v1849, %v1957
  %v1990 = vsub.f32 %v1852, %v1958
  %v1991 = vsub.f32 %v1857, %v1959
  %v1992 = vsub.f32 %v1860, %v1960
  %v1993 = vmul.f32 %v1961, %v22
  %v1994 = vmul.f32 %v1962, %v22
  %v1995 = vmul.f32 %v1963, %v22
  %v1996 = vmul.f32 %v1964, %v22
  %v1997 = vmul.f32 %v1965, %v22
  %v1998 = vmul.f32 %v1966, %v22
  %v1999 = vmul.f32 %v1967, %v22
  %v2000 = vmul.f32 %v1968, %v22
  %v2001 = vmul.f32 %v1969, %v22
  %v2002 = vmul.f32 %v1970, %v22
  %v2003 = vmul.f32 %v1971, %v22
  %v2004 = vmul.f32 %v1972, %v22
  %v2005 = vmul.f32 %v1973, %v22
  %v2006 = vmul.f32 %v1974, %v22
  %v2007 = vmul.f32 %v1975, %v22
  %v2008 = vmul.f32 %v1976, %v22
  %v2009 = vmul.f32 %v1977, %v22
  %v2010 = vmul.f32 %v1978, %v22
  %v2011 = vmul.f32 %v1979, %v22
  %v2012 = vmul.f32 %v1980, %v22
  %v2013 = vmul.f32 %v1981, %v22
  %v2014 = vmul.f32 %v1982, %v22
  %v2015 = vmul.f32 %v1983, %v22
  %v2016 = vmul.f32 %v1984, %v22
  %v2017 = vmul.f32 %v1985, %v22
  %v2018 = vmul.f32 %v1986, %v22
  %v2019 = vmul.f32 %v1987, %v22
  %v2020 = vmul.f32 %v1988, %v22
  %v2021 = vmul.f32 %v1989, %v22
  %v2022 = vmul.f32 %v1990, %v22
  %v2023 = vmul.f32 %v1991, %v22
  %v2024 = vmul.f32 %v1992, %v22
  %v2025 = vmul.f32 %v1993, %v1993
  %v2026 = vmul.f32 %v1994, %v1994
  %v2027 = vmul.f32 %v1995, %v1995
  %v2028 = vmul.f32 %v1996, %v1996
  %v2029 = vmul.f32 %v1997, %v1997
  %v2030 = vmul.f32 %v1998, %v1998
  %v2031 = vmul.f32 %v1999, %v1999
  %v2032 = vmul.f32 %v2000, %v2000
  %v2033 = vmul.f32 %v2001, %v2001
  %v2034 = vmul.f32 %v2002, %v2002
  %v2035 = vmul.f32 %v2003, %v2003
  %v2036 = vmul.f32 %v2004, %v2004
  %v2037 = vmul.f32 %v2005, %v2005
  %v2038 = vmul.f32 %v2006, %v2006
  %v2039 = vmul.f32 %v2007, %v2007
  %v2040 = vmul.f32 %v2008, %v2008
  %v2041 = vmul.f32 %v2009, %v2009
  %v2042 = vmul.f32 %v2010, %v2010
  %v2043 = vmul.f32 %v2011, %v2011
  %v2044 = vmul.f32 %v2012, %v2012
  %v2045 = vmul.f32 %v2013, %v2013
  %v2046 = vmul.f32 %v2014, %v2014
  %v2047 = vmul.f32 %v2015, %v2015
  %v2048 = vmul.f32 %v2016, %v2016
  %v2049 = vmul.f32 %v2017, %v2017
  %v2050 = vmul.f32 %v2018, %v2018
  %v2051 = vmul.f32 %v2019, %v2019
  %v2052 = vmul.f32 %v2020, %v2020
  %v2053 = vmul.f32 %v2021, %v2021
  %v2054 = vmul.f32 %v2022, %v2022
  %v2055 = vmul.f32 %v2023, %v2023
  %v2056 = vmul.f32 %v2024, %v2024
  %2057 = vadd.xlane.f32.xlu0 %v2025
  %v2058 = vpop.xlane.xlu0 %2057
  %2059 = vadd.xlane.f32.xlu0 %v2026
  %v2060 = vpop.xlane.xlu0 %2059
  %2061 = vadd.xlane.f32.xlu0 %v2027
  %v2062 = vpop.xlane.xlu0 %2061
  %2063 = vadd.xlane.f32.xlu0 %v2028
  %v2064 = vpop.xlane.xlu0 %2063
  %2065 = vadd.xlane.f32.xlu0 %v2029
  %v2066 = vpop.xlane.xlu0 %2065
  %2067 = vadd.xlane.f32.xlu0 %v2030
  %v2068 = vpop.xlane.xlu0 %2067
  %2069 = vadd.xlane.f32.xlu0 %v2031
  %v2070 = vpop.xlane.xlu0 %2069
  %2071 = vadd.xlane.f32.xlu0 %v2032
  %v2072 = vpop.xlane.xlu0 %2071
  %2073 = vadd.xlane.f32.xlu0 %v2033
  %v2074 = vpop.xlane.xlu0 %2073
  %2075 = vadd.xlane.f32.xlu0 %v2034
  %v2076 = vpop.xlane.xlu0 %2075
  %2077 = vadd.xlane.f32.xlu0 %v2035
  %v2078 = vpop.xlane.xlu0 %2077
  %2079 = vadd.xlane.f32.xlu0 %v2036
  %v2080 = vpop.xlane.xlu0 %2079
  %2081 = vadd.xlane.f32.xlu0 %v2037
  %v2082 = vpop.xlane.xlu0 %2081
  %2083 = vadd.xlane.f32.xlu0 %v2038
  %v2084 = vpop.xlane.xlu0 %2083
  %2085 = vadd.xlane.f32.xlu0 %v2039
  %v2086 = vpop.xlane.xlu0 %2085
  %2087 = vadd.xlane.f32.xlu0 %v2040
  %v2088 = vpop.xlane.xlu0 %2087
  %2089 = vadd.xlane.f32.xlu0 %v2041
  %v2090 = vpop.xlane.xlu0 %2089
  %2091 = vadd.xlane.f32.xlu0 %v2042
  %v2092 = vpop.xlane.xlu0 %2091
  %2093 = vadd.xlane.f32.xlu0 %v2043
  %v2094 = vpop.xlane.xlu0 %2093
  %2095 = vadd.xlane.f32.xlu0 %v2044
  %v2096 = vpop.xlane.xlu0 %2095
  %2097 = vadd.xlane.f32.xlu0 %v2045
  %v2098 = vpop.xlane.xlu0 %2097
  %2099 = vadd.xlane.f32.xlu0 %v2046
  %v2100 = vpop.xlane.xlu0 %2099
  %2101 = vadd.xlane.f32.xlu0 %v2047
  %v2102 = vpop.xlane.xlu0 %2101
  %2103 = vadd.xlane.f32.xlu0 %v2048
  %v2104 = vpop.xlane.xlu0 %2103
  %2105 = vadd.xlane.f32.xlu0 %v2049
  %v2106 = vpop.xlane.xlu0 %2105
  %2107 = vadd.xlane.f32.xlu0 %v2050
  %v2108 = vpop.xlane.xlu0 %2107
  %2109 = vadd.xlane.f32.xlu0 %v2051
  %v2110 = vpop.xlane.xlu0 %2109
  %2111 = vadd.xlane.f32.xlu0 %v2052
  %v2112 = vpop.xlane.xlu0 %2111
  %2113 = vadd.xlane.f32.xlu0 %v2053
  %v2114 = vpop.xlane.xlu0 %2113
  %2115 = vadd.xlane.f32.xlu0 %v2054
  %v2116 = vpop.xlane.xlu0 %2115
  %2117 = vadd.xlane.f32.xlu0 %v2055
  %v2118 = vpop.xlane.xlu0 %2117
  %2119 = vadd.xlane.f32.xlu0 %v2056
  %v2120 = vpop.xlane.xlu0 %2119
  %v2121 = vmul.f32 %v2058, 0.03125
  %v2122 = vmul.f32 %v2060, 0.03125
  %v2123 = vmul.f32 %v2062, 0.03125
  %v2124 = vmul.f32 %v2064, 0.03125
  %v2125 = vmul.f32 %v2066, 0.03125
  %v2126 = vmul.f32 %v2068, 0.03125
  %v2127 = vmul.f32 %v2070, 0.03125
  %v2128 = vmul.f32 %v2072, 0.03125
  %v2129 = vmul.f32 %v2074, 0.03125
  %v2130 = vmul.f32 %v2076, 0.03125
  %v2131 = vmul.f32 %v2078, 0.03125
  %v2132 = vmul.f32 %v2080, 0.03125
  %v2133 = vmul.f32 %v2082, 0.03125
  %v2134 = vmul.f32 %v2084, 0.03125
  %v2135 = vmul.f32 %v2086, 0.03125
  %v2136 = vmul.f32 %v2088, 0.03125
  %v2137 = vmul.f32 %v2090, 0.03125
  %v2138 = vmul.f32 %v2092, 0.03125
  %v2139 = vmul.f32 %v2094, 0.03125
  %v2140 = vmul.f32 %v2096, 0.03125
  %v2141 = vmul.f32 %v2098, 0.03125
  %v2142 = vmul.f32 %v2100, 0.03125
  %v2143 = vmul.f32 %v2102, 0.03125
  %v2144 = vmul.f32 %v2104, 0.03125
  %v2145 = vmul.f32 %v2106, 0.03125
  %v2146 = vmul.f32 %v2108, 0.03125
  %v2147 = vmul.f32 %v2110, 0.03125
  %v2148 = vmul.f32 %v2112, 0.03125
  %v2149 = vmul.f32 %v2114, 0.03125
  %v2150 = vmul.f32 %v2116, 0.03125
  %v2151 = vmul.f32 %v2118, 0.03125
  %v2152 = vmul.f32 %v2120, 0.03125
  %v2153 = vadd.f32 %v2121, 1e-05
  %v2154 = vadd.f32 %v2122, 1e-05
  %v2155 = vadd.f32 %v2123, 1e-05
  %v2156 = vadd.f32 %v2124, 1e-05
  %v2157 = vadd.f32 %v2125, 1e-05
  %v2158 = vadd.f32 %v2126, 1e-05
  %v2159 = vadd.f32 %v2127, 1e-05
  %v2160 = vadd.f32 %v2128, 1e-05
  %v2161 = vadd.f32 %v2129, 1e-05
  %v2162 = vadd.f32 %v2130, 1e-05
  %v2163 = vadd.f32 %v2131, 1e-05
  %v2164 = vadd.f32 %v2132, 1e-05
  %v2165 = vadd.f32 %v2133, 1e-05
  %v2166 = vadd.f32 %v2134, 1e-05
  %v2167 = vadd.f32 %v2135, 1e-05
  %v2168 = vadd.f32 %v2136, 1e-05
  %v2169 = vadd.f32 %v2137, 1e-05
  %v2170 = vadd.f32 %v2138, 1e-05
  %v2171 = vadd.f32 %v2139, 1e-05
  %v2172 = vadd.f32 %v2140, 1e-05
  %v2173 = vadd.f32 %v2141, 1e-05
  %v2174 = vadd.f32 %v2142, 1e-05
  %v2175 = vadd.f32 %v2143, 1e-05
  %v2176 = vadd.f32 %v2144, 1e-05
  %v2177 = vadd.f32 %v2145, 1e-05
  %v2178 = vadd.f32 %v2146, 1e-05
  %v2179 = vadd.f32 %v2147, 1e-05
  %v2180 = vadd.f32 %v2148, 1e-05
  %v2181 = vadd.f32 %v2149, 1e-05
  %v2182 = vadd.f32 %v2150, 1e-05
  %v2183 = vadd.f32 %v2151, 1e-05
  %v2184 = vadd.f32 %v2152, 1e-05
  %v2185 = vrsqrt.pop %v2153
  %v2186 = vrsqrt.pop %v2154
  %v2187 = vrsqrt.pop %v2155
  %v2188 = vrsqrt.pop %v2156
  %v2189 = vrsqrt.pop %v2157
  %v2190 = vrsqrt.pop %v2158
  %v2191 = vrsqrt.pop %v2159
  %v2192 = vrsqrt.pop %v2160
  %v2193 = vrsqrt.pop %v2161
  %v2194 = vrsqrt.pop %v2162
  %v2195 = vrsqrt.pop %v2163
  %v2196 = vrsqrt.pop %v2164
  %v2197 = vrsqrt.pop %v2165
  %v2198 = vrsqrt.pop %v2166
  %v2199 = vrsqrt.pop %v2167
  %v2200 = vrsqrt.pop %v2168
  %v2201 = vrsqrt.pop %v2169
  %v2202 = vrsqrt.pop %v2170
  %v2203 = vrsqrt.pop %v2171
  %v2204 = vrsqrt.pop %v2172
  %v2205 = vrsqrt.pop %v2173
  %v2206 = vrsqrt.pop %v2174
  %v2207 = vrsqrt.pop %v2175
  %v2208 = vrsqrt.pop %v2176
  %v2209 = vrsqrt.pop %v2177
  %v2210 = vrsqrt.pop %v2178
  %v2211 = vrsqrt.pop %v2179
  %v2212 = vrsqrt.pop %v2180
  %v2213 = vrsqrt.pop %v2181
  %v2214 = vrsqrt.pop %v2182
  %v2215 = vrsqrt.pop %v2183
  %v2216 = vrsqrt.pop %v2184
  %v2217 = vmul.f32 %v1993, %v2185
  %v2218 = vmul.f32 %v1994, %v2186
  %v2219 = vmul.f32 %v1995, %v2187
  %v2220 = vmul.f32 %v1996, %v2188
  %v2221 = vmul.f32 %v1997, %v2189
  %v2222 = vmul.f32 %v1998, %v2190
  %v2223 = vmul.f32 %v1999, %v2191
  %v2224 = vmul.f32 %v2000, %v2192
  %v2225 = vmul.f32 %v2001, %v2193
  %v2226 = vmul.f32 %v2002, %v2194
  %v2227 = vmul.f32 %v2003, %v2195
  %v2228 = vmul.f32 %v2004, %v2196
  %v2229 = vmul.f32 %v2005, %v2197
  %v2230 = vmul.f32 %v2006, %v2198
  %v2231 = vmul.f32 %v2007, %v2199
  %v2232 = vmul.f32 %v2008, %v2200
  %v2233 = vmul.f32 %v2009, %v2201
  %v2234 = vmul.f32 %v2010, %v2202
  %v2235 = vmul.f32 %v2011, %v2203
  %v2236 = vmul.f32 %v2012, %v2204
  %v2237 = vmul.f32 %v2013, %v2205
  %v2238 = vmul.f32 %v2014, %v2206
  %v2239 = vmul.f32 %v2015, %v2207
  %v2240 = vmul.f32 %v2016, %v2208
  %v2241 = vmul.f32 %v2017, %v2209
  %v2242 = vmul.f32 %v2018, %v2210
  %v2243 = vmul.f32 %v2019, %v2211
  %v2244 = vmul.f32 %v2020, %v2212
  %v2245 = vmul.f32 %v2021, %v2213
  %v2246 = vmul.f32 %v2022, %v2214
  %v2247 = vmul.f32 %v2023, %v2215
  %v2248 = vmul.f32 %v2024, %v2216
  %v2249 = vlaneseq
  %v2250 = vshrl.u32 %v2249, 7
  %v2251 = vsub.s32 0, %v2250
  %v2252 = vrot.slane %v1863, %v2251
  %v2253 = vmul.f32 %v2217, %v2252
  %v2254 = vmul.f32 %v2218, %v2252
  %v2255 = vmul.f32 %v2219, %v2252
  %v2256 = vmul.f32 %v2220, %v2252
  %v2257 = vmul.f32 %v2221, %v2252
  %v2258 = vmul.f32 %v2222, %v2252
  %v2259 = vmul.f32 %v2223, %v2252
  %v2260 = vmul.f32 %v2224, %v2252
  %v2261 = vmul.f32 %v2225, %v2252
  %v2262 = vmul.f32 %v2226, %v2252
  %v2263 = vmul.f32 %v2227, %v2252
  %v2264 = vmul.f32 %v2228, %v2252
  %v2265 = vmul.f32 %v2229, %v2252
  %v2266 = vmul.f32 %v2230, %v2252
  %v2267 = vmul.f32 %v2231, %v2252
  %v2268 = vmul.f32 %v2232, %v2252
  %v2269 = vmul.f32 %v2233, %v2252
  %v2270 = vmul.f32 %v2234, %v2252
  %v2271 = vmul.f32 %v2235, %v2252
  %v2272 = vmul.f32 %v2236, %v2252
  %v2273 = vmul.f32 %v2237, %v2252
  %v2274 = vmul.f32 %v2238, %v2252
  %v2275 = vmul.f32 %v2239, %v2252
  %v2276 = vmul.f32 %v2240, %v2252
  %v2277 = vmul.f32 %v2241, %v2252
  %v2278 = vmul.f32 %v2242, %v2252
  %v2279 = vmul.f32 %v2243, %v2252
  %v2280 = vmul.f32 %v2244, %v2252
  %v2281 = vmul.f32 %v2245, %v2252
  %v2282 = vmul.f32 %v2246, %v2252
  %v2283 = vmul.f32 %v2247, %v2252
  %v2284 = vmul.f32 %v2248, %v2252
  %v2285 = vlaneseq
  %v2286 = vshrl.u32 %v2285, 7
  %v2287 = vsub.s32 0, %v2286
  %v2288 = vrot.slane %v1864, %v2287
  %v2289 = vadd.f32 %v2253, %v2288
  %v2290 = vadd.f32 %v2254, %v2288
  %v2291 = vadd.f32 %v2255, %v2288
  %v2292 = vadd.f32 %v2256, %v2288
  %v2293 = vadd.f32 %v2257, %v2288
  %v2294 = vadd.f32 %v2258, %v2288
  %v2295 = vadd.f32 %v2259, %v2288
  %v2296 = vadd.f32 %v2260, %v2288
  %v2297 = vadd.f32 %v2261, %v2288
  %v2298 = vadd.f32 %v2262, %v2288
  %v2299 = vadd.f32 %v2263, %v2288
  %v2300 = vadd.f32 %v2264, %v2288
  %v2301 = vadd.f32 %v2265, %v2288
  %v2302 = vadd.f32 %v2266, %v2288
  %v2303 = vadd.f32 %v2267, %v2288
  %v2304 = vadd.f32 %v2268, %v2288
  %v2305 = vadd.f32 %v2269, %v2288
  %v2306 = vadd.f32 %v2270, %v2288
  %v2307 = vadd.f32 %v2271, %v2288
  %v2308 = vadd.f32 %v2272, %v2288
  %v2309 = vadd.f32 %v2273, %v2288
  %v2310 = vadd.f32 %v2274, %v2288
  %v2311 = vadd.f32 %v2275, %v2288
  %v2312 = vadd.f32 %v2276, %v2288
  %v2313 = vadd.f32 %v2277, %v2288
  %v2314 = vadd.f32 %v2278, %v2288
  %v2315 = vadd.f32 %v2279, %v2288
  %v2316 = vadd.f32 %v2280, %v2288
  %v2317 = vadd.f32 %v2281, %v2288
  %v2318 = vadd.f32 %v2282, %v2288
  %v2319 = vadd.f32 %v2283, %v2288
  %v2320 = vadd.f32 %v2284, %v2288
  %v2321 = vmax.f32 %v2289, 0.0
  %v2322 = vmax.f32 %v2290, 0.0
  %v2323 = vmax.f32 %v2291, 0.0
  %v2324 = vmax.f32 %v2292, 0.0
  %v2325 = vmax.f32 %v2293, 0.0
  %v2326 = vmax.f32 %v2294, 0.0
  %v2327 = vmax.f32 %v2295, 0.0
  %v2328 = vmax.f32 %v2296, 0.0
  %v2329 = vmax.f32 %v2297, 0.0
  %v2330 = vmax.f32 %v2298, 0.0
  %v2331 = vmax.f32 %v2299, 0.0
  %v2332 = vmax.f32 %v2300, 0.0
  %v2333 = vmax.f32 %v2301, 0.0
  %v2334 = vmax.f32 %v2302, 0.0
  %v2335 = vmax.f32 %v2303, 0.0
  %v2336 = vmax.f32 %v2304, 0.0
  %v2337 = vmax.f32 %v2305, 0.0
  %v2338 = vmax.f32 %v2306, 0.0
  %v2339 = vmax.f32 %v2307, 0.0
  %v2340 = vmax.f32 %v2308, 0.0
  %v2341 = vmax.f32 %v2309, 0.0
  %v2342 = vmax.f32 %v2310, 0.0
  %v2343 = vmax.f32 %v2311, 0.0
  %v2344 = vmax.f32 %v2312, 0.0
  %v2345 = vmax.f32 %v2313, 0.0
  %v2346 = vmax.f32 %v2314, 0.0
  %v2347 = vmax.f32 %v2315, 0.0
  %v2348 = vmax.f32 %v2316, 0.0
  %v2349 = vmax.f32 %v2317, 0.0
  %v2350 = vmax.f32 %v2318, 0.0
  %v2351 = vmax.f32 %v2319, 0.0
  %v2352 = vmax.f32 %v2320, 0.0
  %s2353 = scalar_lea.vmem %s2, 128
  %v2354 = vld [vmem:[%s2353] sm:$0xf]
  %v2355 = vld [vmem:[%s2353 + $0x4] sm:$0xf]
  %v2356 = vld [vmem:[%s2353 + $0x8] sm:$0xf]
  %v2357 = vld [vmem:[%s2353 + $0xc] sm:$0xf]
  %v2358 = vld [vmem:[%s2353 + $0x10] sm:$0xf]
  %v2359 = vld [vmem:[%s2353 + $0x14] sm:$0xf]
  %v2360 = vld [vmem:[%s2353 + $0x18] sm:$0xf]
  %v2361 = vld [vmem:[%s2353 + $0x1c] sm:$0xf]
  %v2362 = vld [vmem:[%s2353 + $0x20] sm:$0xf]
  %v2363 = vld [vmem:[%s2353 + $0x24] sm:$0xf]
  %v2364 = vld [vmem:[%s2353 + $0x28] sm:$0xf]
  %v2365 = vld [vmem:[%s2353 + $0x2c] sm:$0xf]
  %v2366 = vld [vmem:[%s2353 + $0x30] sm:$0xf]
  %v2367 = vld [vmem:[%s2353 + $0x34] sm:$0xf]
  %v2368 = vld [vmem:[%s2353 + $0x38] sm:$0xf]
  %v2369 = vld [vmem:[%s2353 + $0x3c] sm:$0xf]
  %v2370 = vpack.c.bf16 %v2322, %v2321
  %v2371 = vpack.c.bf16 %v2324, %v2323
  %v2372 = vpack.c.bf16 %v2326, %v2325
  %v2373 = vpack.c.bf16 %v2328, %v2327
  %v2374 = vpack.c.bf16 %v2330, %v2329
  %v2375 = vpack.c.bf16 %v2332, %v2331
  %v2376 = vpack.c.bf16 %v2334, %v2333
  %v2377 = vpack.c.bf16 %v2336, %v2335
  %v2378 = vpack.c.bf16 %v2338, %v2337
  %v2379 = vpack.c.bf16 %v2340, %v2339
  %v2380 = vpack.c.bf16 %v2342, %v2341
  %v2381 = vpack.c.bf16 %v2344, %v2343
  %v2382 = vpack.c.bf16 %v2346, %v2345
  %v2383 = vpack.c.bf16 %v2348, %v2347
  %v2384 = vpack.c.bf16 %v2350, %v2349
  %v2385 = vpack.c.bf16 %v2352, %v2351
  %v2386 = vld [vmem:[%s3 + $0x9] sm:$0x1]
  %v2387 = vlaneseq
  %v2388 = vshrl.u32 %v2387, 7
  %v2389 = vsub.s32 0, %v2388
  %v2390 = vrot.slane %v2386, %v2389
  %v2407 = vunpack.c.l.b16 %v2354
  %v2408 = vunpack.c.l.b16 %v2355
  %v2409 = vunpack.c.l.b16 %v2356
  %v2410 = vunpack.c.l.b16 %v2357
  %v2411 = vunpack.c.l.b16 %v2358
  %v2412 = vunpack.c.l.b16 %v2359
  %v2413 = vunpack.c.l.b16 %v2360
  %v2414 = vunpack.c.l.b16 %v2361
  %v2415 = vunpack.c.l.b16 %v2362
  %v2416 = vunpack.c.l.b16 %v2363
  %v2417 = vunpack.c.l.b16 %v2364
  %v2418 = vunpack.c.l.b16 %v2365
  %v2419 = vunpack.c.l.b16 %v2366
  %v2420 = vunpack.c.l.b16 %v2367
  %v2421 = vunpack.c.l.b16 %v2368
  %v2422 = vunpack.c.l.b16 %v2369
  %v2423 = vpack.c.b16 %v2408, %v2407
  %v2424 = vpack.c.b16 %v2410, %v2409
  %v2425 = vpack.c.b16 %v2412, %v2411
  %v2426 = vpack.c.b16 %v2414, %v2413
  %v2427 = vpack.c.b16 %v2416, %v2415
  %v2428 = vpack.c.b16 %v2418, %v2417
  %v2429 = vpack.c.b16 %v2420, %v2419
  %v2430 = vpack.c.b16 %v2422, %v2421
  %2439 = vmatprep.subr.bf16.mxu0 0
  %2440 = vmatpush1.bf16.msra.mxu0 %v2423
  %2441 = vmatprep.subr.bf16.mxu0 0
  %2442 = vmatpush1.bf16.msra.mxu0 %v2424
  %2443 = vmatprep.subr.bf16.mxu0 0
  %2444 = vmatpush1.bf16.msra.mxu0 %v2425
  %2445 = vmatprep.subr.bf16.mxu0 0
  %2446 = vmatpush1.bf16.msra.mxu0 %v2426
  %2447 = vmatprep.subr.bf16.mxu0 0
  %2448 = vmatpush1.bf16.msra.mxu0 %v2427
  %2449 = vmatprep.subr.bf16.mxu0 0
  %2450 = vmatpush1.bf16.msra.mxu0 %v2428
  %2451 = vmatprep.subr.bf16.mxu0 0
  %2452 = vmatpush1.bf16.msra.mxu0 %v2429
  %2453 = vmatprep.subr.bf16.mxu0 0
  %2454 = vmatpush1.bf16.msra.mxu0 %v2430
  %2455 = vmatprep.subr.bf16.mxu0 0
  %2456 = vmatpush1.bf16.msra.mxu0 0
  %2457 = vmatprep.subr.bf16.mxu0 0
  %2458 = vmatpush1.bf16.msra.mxu0 0
  %2459 = vmatprep.subr.bf16.mxu0 0
  %2460 = vmatpush1.bf16.msra.mxu0 0
  %2461 = vmatprep.subr.bf16.mxu0 0
  %2462 = vmatpush1.bf16.msra.mxu0 0
  %2463 = vmatprep.subr.bf16.mxu0 0
  %2464 = vmatpush1.bf16.msra.mxu0 0
  %2465 = vmatprep.subr.bf16.mxu0 0
  %2466 = vmatpush1.bf16.msra.mxu0 0
  %2467 = vmatprep.subr.bf16.mxu0 0
  %2468 = vmatpush1.bf16.msra.mxu0 0
  %2469 = vmatprep.subr.bf16.mxu0 0
  %2470 = vmatpush1.bf16.msra.mxu0 0
  %2471 = vmatprep.mubr.bf16.mxu0 0
  %2472 = vmatmul.mubr.bf16.gmra.mrb[0].mxu0 %v2370
  %v2473 = vpop.f32.mrb[0].mxu0
  %v2474 = vadd.f32 %v2390, %v2473
  %v2475 = vpop.f32.mrb[0].mxu0
  %v2476 = vpop.f32.mrb[0].mxu0
  %v2477 = vadd.f32 %v2390, %v2476
  %v2478 = vpop.f32.mrb[0].mxu0
  %2479 = vmatprep.mubr.bf16.mxu0 0
  %2480 = vmatmul.mubr.bf16.gmra.mrb[0].mxu0 %v2371
  %v2481 = vpop.f32.mrb[0].mxu0
  %v2482 = vadd.f32 %v2390, %v2481
  %v2483 = vpop.f32.mrb[0].mxu0
  %v2484 = vpop.f32.mrb[0].mxu0
  %v2485 = vadd.f32 %v2390, %v2484
  %v2486 = vpop.f32.mrb[0].mxu0
  %2487 = vmatprep.mubr.bf16.mxu0 0
  %2488 = vmatmul.mubr.bf16.gmra.mrb[0].mxu0 %v2372
  %v2489 = vpop.f32.mrb[0].mxu0
  %v2490 = vadd.f32 %v2390, %v2489
  %v2491 = vpop.f32.mrb[0].mxu0
  %v2492 = vpop.f32.mrb[0].mxu0
  %v2493 = vadd.f32 %v2390, %v2492
  %v2494 = vpop.f32.mrb[0].mxu0
  %2495 = vmatprep.mubr.bf16.mxu0 0
  %2496 = vmatmul.mubr.bf16.gmra.mrb[0].mxu0 %v2373
  %v2497 = vpop.f32.mrb[0].mxu0
  %v2498 = vadd.f32 %v2390, %v2497
  %v2499 = vpop.f32.mrb[0].mxu0
  %v2500 = vpop.f32.mrb[0].mxu0
  %v2501 = vadd.f32 %v2390, %v2500
  %v2502 = vpop.f32.mrb[0].mxu0
  %2503 = vmatprep.mubr.bf16.mxu0 0
  %2504 = vmatmul.mubr.bf16.gmra.mrb[0].mxu0 %v2374
  %v2505 = vpop.f32.mrb[0].mxu0
  %v2506 = vadd.f32 %v2390, %v2505
  %v2507 = vpop.f32.mrb[0].mxu0
  %v2508 = vpop.f32.mrb[0].mxu0
  %v2509 = vadd.f32 %v2390, %v2508
  %v2510 = vpop.f32.mrb[0].mxu0
  %2511 = vmatprep.mubr.bf16.mxu0 0
  %2512 = vmatmul.mubr.bf16.gmra.mrb[0].mxu0 %v2375
  %v2513 = vpop.f32.mrb[0].mxu0
  %v2514 = vadd.f32 %v2390, %v2513
  %v2515 = vpop.f32.mrb[0].mxu0
  %v2516 = vpop.f32.mrb[0].mxu0
  %v2517 = vadd.f32 %v2390, %v2516
  %v2518 = vpop.f32.mrb[0].mxu0
  %2519 = vmatprep.mubr.bf16.mxu0 0
  %2520 = vmatmul.mubr.bf16.gmra.mrb[0].mxu0 %v2376
  %v2521 = vpop.f32.mrb[0].mxu0
  %v2522 = vadd.f32 %v2390, %v2521
  %v2523 = vpop.f32.mrb[0].mxu0
  %v2524 = vpop.f32.mrb[0].mxu0
  %v2525 = vadd.f32 %v2390, %v2524
  %v2526 = vpop.f32.mrb[0].mxu0
  %2527 = vmatprep.mubr.bf16.mxu0 0
  %2528 = vmatmul.mubr.bf16.gmra.mrb[0].mxu0 %v2377
  %v2529 = vpop.f32.mrb[0].mxu0
  %v2530 = vadd.f32 %v2390, %v2529
  %v2531 = vpop.f32.mrb[0].mxu0
  %v2532 = vpop.f32.mrb[0].mxu0
  %v2533 = vadd.f32 %v2390, %v2532
  %v2534 = vpop.f32.mrb[0].mxu0
  %2535 = vmatprep.mubr.bf16.mxu0 0
  %2536 = vmatmul.mubr.bf16.gmra.mrb[0].mxu0 %v2378
  %v2537 = vpop.f32.mrb[0].mxu0
  %v2538 = vadd.f32 %v2390, %v2537
  %v2539 = vpop.f32.mrb[0].mxu0
  %v2540 = vpop.f32.mrb[0].mxu0
  %v2541 = vadd.f32 %v2390, %v2540
  %v2542 = vpop.f32.mrb[0].mxu0
  %2543 = vmatprep.mubr.bf16.mxu0 0
  %2544 = vmatmul.mubr.bf16.gmra.mrb[0].mxu0 %v2379
  %v2545 = vpop.f32.mrb[0].mxu0
  %v2546 = vadd.f32 %v2390, %v2545
  %v2547 = vpop.f32.mrb[0].mxu0
  %v2548 = vpop.f32.mrb[0].mxu0
  %v2549 = vadd.f32 %v2390, %v2548
  %v2550 = vpop.f32.mrb[0].mxu0
  %2551 = vmatprep.mubr.bf16.mxu0 0
  %2552 = vmatmul.mubr.bf16.gmra.mrb[0].mxu0 %v2380
  %v2553 = vpop.f32.mrb[0].mxu0
  %v2554 = vadd.f32 %v2390, %v2553
  %v2555 = vpop.f32.mrb[0].mxu0
  %v2556 = vpop.f32.mrb[0].mxu0
  %v2557 = vadd.f32 %v2390, %v2556
  %v2558 = vpop.f32.mrb[0].mxu0
  %2559 = vmatprep.mubr.bf16.mxu0 0
  %2560 = vmatmul.mubr.bf16.gmra.mrb[0].mxu0 %v2381
  %v2561 = vpop.f32.mrb[0].mxu0
  %v2562 = vadd.f32 %v2390, %v2561
  %v2563 = vpop.f32.mrb[0].mxu0
  %v2564 = vpop.f32.mrb[0].mxu0
  %v2565 = vadd.f32 %v2390, %v2564
  %v2566 = vpop.f32.mrb[0].mxu0
  %2567 = vmatprep.mubr.bf16.mxu0 0
  %2568 = vmatmul.mubr.bf16.gmra.mrb[0].mxu0 %v2382
  %v2569 = vpop.f32.mrb[0].mxu0
  %v2570 = vadd.f32 %v2390, %v2569
  %v2571 = vpop.f32.mrb[0].mxu0
  %v2572 = vpop.f32.mrb[0].mxu0
  %v2573 = vadd.f32 %v2390, %v2572
  %v2574 = vpop.f32.mrb[0].mxu0
  %2575 = vmatprep.mubr.bf16.mxu0 0
  %2576 = vmatmul.mubr.bf16.gmra.mrb[0].mxu0 %v2383
  %v2577 = vpop.f32.mrb[0].mxu0
  %v2578 = vadd.f32 %v2390, %v2577
  %v2579 = vpop.f32.mrb[0].mxu0
  %v2580 = vpop.f32.mrb[0].mxu0
  %v2581 = vadd.f32 %v2390, %v2580
  %v2582 = vpop.f32.mrb[0].mxu0
  %2583 = vmatprep.mubr.bf16.mxu0 0
  %2584 = vmatmul.mubr.bf16.gmra.mrb[0].mxu0 %v2384
  %v2585 = vpop.f32.mrb[0].mxu0
  %v2586 = vadd.f32 %v2390, %v2585
  %v2587 = vpop.f32.mrb[0].mxu0
  %v2588 = vpop.f32.mrb[0].mxu0
  %v2589 = vadd.f32 %v2390, %v2588
  %v2590 = vpop.f32.mrb[0].mxu0
  %2591 = vmatprep.mubr.bf16.mxu0 0
  %2592 = vmatmul.mubr.bf16.gmra.mrb[0].mxu0 %v2385
  %v2593 = vpop.f32.mrb[0].mxu0
  %v2594 = vadd.f32 %v2390, %v2593
  %v2595 = vpop.f32.mrb[0].mxu0
  %v2596 = vpop.f32.mrb[0].mxu0
  %v2597 = vadd.f32 %v2390, %v2596
  %v2598 = vpop.f32.mrb[0].mxu0
  %2599 = vdwg.mxu0
  %v2600 = vld [vmem:[%s3 + $0xa] sm:$0x1]
  %v2601 = vld [vmem:[%s3 + $0xb] sm:$0x1]
  %2602 = vadd.xlane.f32.xlu0 %v2474
  %v2603 = vpop.xlane.xlu0 %2602
  %2604 = vadd.xlane.f32.xlu0 %v2477
  %v2605 = vpop.xlane.xlu0 %2604
  %2606 = vadd.xlane.f32.xlu0 %v2482
  %v2607 = vpop.xlane.xlu0 %2606
  %2608 = vadd.xlane.f32.xlu0 %v2485
  %v2609 = vpop.xlane.xlu0 %2608
  %2610 = vadd.xlane.f32.xlu0 %v2490
  %v2611 = vpop.xlane.xlu0 %2610
  %2612 = vadd.xlane.f32.xlu0 %v2493
  %v2613 = vpop.xlane.xlu0 %2612
  %2614 = vadd.xlane.f32.xlu0 %v2498
  %v2615 = vpop.xlane.xlu0 %2614
  %2616 = vadd.xlane.f32.xlu0 %v2501
  %v2617 = vpop.xlane.xlu0 %2616
  %2618 = vadd.xlane.f32.xlu0 %v2506
  %v2619 = vpop.xlane.xlu0 %2618
  %2620 = vadd.xlane.f32.xlu0 %v2509
  %v2621 = vpop.xlane.xlu0 %2620
  %2622 = vadd.xlane.f32.xlu0 %v2514
  %v2623 = vpop.xlane.xlu0 %2622
  %2624 = vadd.xlane.f32.xlu0 %v2517
  %v2625 = vpop.xlane.xlu0 %2624
  %2626 = vadd.xlane.f32.xlu0 %v2522
  %v2627 = vpop.xlane.xlu0 %2626
  %2628 = vadd.xlane.f32.xlu0 %v2525
  %v2629 = vpop.xlane.xlu0 %2628
  %2630 = vadd.xlane.f32.xlu0 %v2530
  %v2631 = vpop.xlane.xlu0 %2630
  %2632 = vadd.xlane.f32.xlu0 %v2533
  %v2633 = vpop.xlane.xlu0 %2632
  %2634 = vadd.xlane.f32.xlu0 %v2538
  %v2635 = vpop.xlane.xlu0 %2634
  %2636 = vadd.xlane.f32.xlu0 %v2541
  %v2637 = vpop.xlane.xlu0 %2636
  %2638 = vadd.xlane.f32.xlu0 %v2546
  %v2639 = vpop.xlane.xlu0 %2638
  %2640 = vadd.xlane.f32.xlu0 %v2549
  %v2641 = vpop.xlane.xlu0 %2640
  %2642 = vadd.xlane.f32.xlu0 %v2554
  %v2643 = vpop.xlane.xlu0 %2642
  %2644 = vadd.xlane.f32.xlu0 %v2557
  %v2645 = vpop.xlane.xlu0 %2644
  %2646 = vadd.xlane.f32.xlu0 %v2562
  %v2647 = vpop.xlane.xlu0 %2646
  %2648 = vadd.xlane.f32.xlu0 %v2565
  %v2649 = vpop.xlane.xlu0 %2648
  %2650 = vadd.xlane.f32.xlu0 %v2570
  %v2651 = vpop.xlane.xlu0 %2650
  %2652 = vadd.xlane.f32.xlu0 %v2573
  %v2653 = vpop.xlane.xlu0 %2652
  %2654 = vadd.xlane.f32.xlu0 %v2578
  %v2655 = vpop.xlane.xlu0 %2654
  %2656 = vadd.xlane.f32.xlu0 %v2581
  %v2657 = vpop.xlane.xlu0 %2656
  %2658 = vadd.xlane.f32.xlu0 %v2586
  %v2659 = vpop.xlane.xlu0 %2658
  %2660 = vadd.xlane.f32.xlu0 %v2589
  %v2661 = vpop.xlane.xlu0 %2660
  %2662 = vadd.xlane.f32.xlu0 %v2594
  %v2663 = vpop.xlane.xlu0 %2662
  %2664 = vadd.xlane.f32.xlu0 %v2597
  %v2665 = vpop.xlane.xlu0 %2664
  %v2666 = vmul.f32 %v2603, 0.03125
  %v2667 = vmul.f32 %v2605, 0.03125
  %v2668 = vmul.f32 %v2607, 0.03125
  %v2669 = vmul.f32 %v2609, 0.03125
  %v2670 = vmul.f32 %v2611, 0.03125
  %v2671 = vmul.f32 %v2613, 0.03125
  %v2672 = vmul.f32 %v2615, 0.03125
  %v2673 = vmul.f32 %v2617, 0.03125
  %v2674 = vmul.f32 %v2619, 0.03125
  %v2675 = vmul.f32 %v2621, 0.03125
  %v2676 = vmul.f32 %v2623, 0.03125
  %v2677 = vmul.f32 %v2625, 0.03125
  %v2678 = vmul.f32 %v2627, 0.03125
  %v2679 = vmul.f32 %v2629, 0.03125
  %v2680 = vmul.f32 %v2631, 0.03125
  %v2681 = vmul.f32 %v2633, 0.03125
  %v2682 = vmul.f32 %v2635, 0.03125
  %v2683 = vmul.f32 %v2637, 0.03125
  %v2684 = vmul.f32 %v2639, 0.03125
  %v2685 = vmul.f32 %v2641, 0.03125
  %v2686 = vmul.f32 %v2643, 0.03125
  %v2687 = vmul.f32 %v2645, 0.03125
  %v2688 = vmul.f32 %v2647, 0.03125
  %v2689 = vmul.f32 %v2649, 0.03125
  %v2690 = vmul.f32 %v2651, 0.03125
  %v2691 = vmul.f32 %v2653, 0.03125
  %v2692 = vmul.f32 %v2655, 0.03125
  %v2693 = vmul.f32 %v2657, 0.03125
  %v2694 = vmul.f32 %v2659, 0.03125
  %v2695 = vmul.f32 %v2661, 0.03125
  %v2696 = vmul.f32 %v2663, 0.03125
  %v2697 = vmul.f32 %v2665, 0.03125
  %v2698 = vsub.f32 %v2474, %v2666
  %v2699 = vsub.f32 %v2477, %v2667
  %v2700 = vsub.f32 %v2482, %v2668
  %v2701 = vsub.f32 %v2485, %v2669
  %v2702 = vsub.f32 %v2490, %v2670
  %v2703 = vsub.f32 %v2493, %v2671
  %v2704 = vsub.f32 %v2498, %v2672
  %v2705 = vsub.f32 %v2501, %v2673
  %v2706 = vsub.f32 %v2506, %v2674
  %v2707 = vsub.f32 %v2509, %v2675
  %v2708 = vsub.f32 %v2514, %v2676
  %v2709 = vsub.f32 %v2517, %v2677
  %v2710 = vsub.f32 %v2522, %v2678
  %v2711 = vsub.f32 %v2525, %v2679
  %v2712 = vsub.f32 %v2530, %v2680
  %v2713 = vsub.f32 %v2533, %v2681
  %v2714 = vsub.f32 %v2538, %v2682
  %v2715 = vsub.f32 %v2541, %v2683
  %v2716 = vsub.f32 %v2546, %v2684
  %v2717 = vsub.f32 %v2549, %v2685
  %v2718 = vsub.f32 %v2554, %v2686
  %v2719 = vsub.f32 %v2557, %v2687
  %v2720 = vsub.f32 %v2562, %v2688
  %v2721 = vsub.f32 %v2565, %v2689
  %v2722 = vsub.f32 %v2570, %v2690
  %v2723 = vsub.f32 %v2573, %v2691
  %v2724 = vsub.f32 %v2578, %v2692
  %v2725 = vsub.f32 %v2581, %v2693
  %v2726 = vsub.f32 %v2586, %v2694
  %v2727 = vsub.f32 %v2589, %v2695
  %v2728 = vsub.f32 %v2594, %v2696
  %v2729 = vsub.f32 %v2597, %v2697
  %v2730 = vmul.f32 %v2698, %v22
  %v2731 = vmul.f32 %v2699, %v22
  %v2732 = vmul.f32 %v2700, %v22
  %v2733 = vmul.f32 %v2701, %v22
  %v2734 = vmul.f32 %v2702, %v22
  %v2735 = vmul.f32 %v2703, %v22
  %v2736 = vmul.f32 %v2704, %v22
  %v2737 = vmul.f32 %v2705, %v22
  %v2738 = vmul.f32 %v2706, %v22
  %v2739 = vmul.f32 %v2707, %v22
  %v2740 = vmul.f32 %v2708, %v22
  %v2741 = vmul.f32 %v2709, %v22
  %v2742 = vmul.f32 %v2710, %v22
  %v2743 = vmul.f32 %v2711, %v22
  %v2744 = vmul.f32 %v2712, %v22
  %v2745 = vmul.f32 %v2713, %v22
  %v2746 = vmul.f32 %v2714, %v22
  %v2747 = vmul.f32 %v2715, %v22
  %v2748 = vmul.f32 %v2716, %v22
  %v2749 = vmul.f32 %v2717, %v22
  %v2750 = vmul.f32 %v2718, %v22
  %v2751 = vmul.f32 %v2719, %v22
  %v2752 = vmul.f32 %v2720, %v22
  %v2753 = vmul.f32 %v2721, %v22
  %v2754 = vmul.f32 %v2722, %v22
  %v2755 = vmul.f32 %v2723, %v22
  %v2756 = vmul.f32 %v2724, %v22
  %v2757 = vmul.f32 %v2725, %v22
  %v2758 = vmul.f32 %v2726, %v22
  %v2759 = vmul.f32 %v2727, %v22
  %v2760 = vmul.f32 %v2728, %v22
  %v2761 = vmul.f32 %v2729, %v22
  %v2762 = vmul.f32 %v2730, %v2730
  %v2763 = vmul.f32 %v2731, %v2731
  %v2764 = vmul.f32 %v2732, %v2732
  %v2765 = vmul.f32 %v2733, %v2733
  %v2766 = vmul.f32 %v2734, %v2734
  %v2767 = vmul.f32 %v2735, %v2735
  %v2768 = vmul.f32 %v2736, %v2736
  %v2769 = vmul.f32 %v2737, %v2737
  %v2770 = vmul.f32 %v2738, %v2738
  %v2771 = vmul.f32 %v2739, %v2739
  %v2772 = vmul.f32 %v2740, %v2740
  %v2773 = vmul.f32 %v2741, %v2741
  %v2774 = vmul.f32 %v2742, %v2742
  %v2775 = vmul.f32 %v2743, %v2743
  %v2776 = vmul.f32 %v2744, %v2744
  %v2777 = vmul.f32 %v2745, %v2745
  %v2778 = vmul.f32 %v2746, %v2746
  %v2779 = vmul.f32 %v2747, %v2747
  %v2780 = vmul.f32 %v2748, %v2748
  %v2781 = vmul.f32 %v2749, %v2749
  %v2782 = vmul.f32 %v2750, %v2750
  %v2783 = vmul.f32 %v2751, %v2751
  %v2784 = vmul.f32 %v2752, %v2752
  %v2785 = vmul.f32 %v2753, %v2753
  %v2786 = vmul.f32 %v2754, %v2754
  %v2787 = vmul.f32 %v2755, %v2755
  %v2788 = vmul.f32 %v2756, %v2756
  %v2789 = vmul.f32 %v2757, %v2757
  %v2790 = vmul.f32 %v2758, %v2758
  %v2791 = vmul.f32 %v2759, %v2759
  %v2792 = vmul.f32 %v2760, %v2760
  %v2793 = vmul.f32 %v2761, %v2761
  %2794 = vadd.xlane.f32.xlu0 %v2762
  %v2795 = vpop.xlane.xlu0 %2794
  %2796 = vadd.xlane.f32.xlu0 %v2763
  %v2797 = vpop.xlane.xlu0 %2796
  %2798 = vadd.xlane.f32.xlu0 %v2764
  %v2799 = vpop.xlane.xlu0 %2798
  %2800 = vadd.xlane.f32.xlu0 %v2765
  %v2801 = vpop.xlane.xlu0 %2800
  %2802 = vadd.xlane.f32.xlu0 %v2766
  %v2803 = vpop.xlane.xlu0 %2802
  %2804 = vadd.xlane.f32.xlu0 %v2767
  %v2805 = vpop.xlane.xlu0 %2804
  %2806 = vadd.xlane.f32.xlu0 %v2768
  %v2807 = vpop.xlane.xlu0 %2806
  %2808 = vadd.xlane.f32.xlu0 %v2769
  %v2809 = vpop.xlane.xlu0 %2808
  %2810 = vadd.xlane.f32.xlu0 %v2770
  %v2811 = vpop.xlane.xlu0 %2810
  %2812 = vadd.xlane.f32.xlu0 %v2771
  %v2813 = vpop.xlane.xlu0 %2812
  %2814 = vadd.xlane.f32.xlu0 %v2772
  %v2815 = vpop.xlane.xlu0 %2814
  %2816 = vadd.xlane.f32.xlu0 %v2773
  %v2817 = vpop.xlane.xlu0 %2816
  %2818 = vadd.xlane.f32.xlu0 %v2774
  %v2819 = vpop.xlane.xlu0 %2818
  %2820 = vadd.xlane.f32.xlu0 %v2775
  %v2821 = vpop.xlane.xlu0 %2820
  %2822 = vadd.xlane.f32.xlu0 %v2776
  %v2823 = vpop.xlane.xlu0 %2822
  %2824 = vadd.xlane.f32.xlu0 %v2777
  %v2825 = vpop.xlane.xlu0 %2824
  %2826 = vadd.xlane.f32.xlu0 %v2778
  %v2827 = vpop.xlane.xlu0 %2826
  %2828 = vadd.xlane.f32.xlu0 %v2779
  %v2829 = vpop.xlane.xlu0 %2828
  %2830 = vadd.xlane.f32.xlu0 %v2780
  %v2831 = vpop.xlane.xlu0 %2830
  %2832 = vadd.xlane.f32.xlu0 %v2781
  %v2833 = vpop.xlane.xlu0 %2832
  %2834 = vadd.xlane.f32.xlu0 %v2782
  %v2835 = vpop.xlane.xlu0 %2834
  %2836 = vadd.xlane.f32.xlu0 %v2783
  %v2837 = vpop.xlane.xlu0 %2836
  %2838 = vadd.xlane.f32.xlu0 %v2784
  %v2839 = vpop.xlane.xlu0 %2838
  %2840 = vadd.xlane.f32.xlu0 %v2785
  %v2841 = vpop.xlane.xlu0 %2840
  %2842 = vadd.xlane.f32.xlu0 %v2786
  %v2843 = vpop.xlane.xlu0 %2842
  %2844 = vadd.xlane.f32.xlu0 %v2787
  %v2845 = vpop.xlane.xlu0 %2844
  %2846 = vadd.xlane.f32.xlu0 %v2788
  %v2847 = vpop.xlane.xlu0 %2846
  %2848 = vadd.xlane.f32.xlu0 %v2789
  %v2849 = vpop.xlane.xlu0 %2848
  %2850 = vadd.xlane.f32.xlu0 %v2790
  %v2851 = vpop.xlane.xlu0 %2850
  %2852 = vadd.xlane.f32.xlu0 %v2791
  %v2853 = vpop.xlane.xlu0 %2852
  %2854 = vadd.xlane.f32.xlu0 %v2792
  %v2855 = vpop.xlane.xlu0 %2854
  %2856 = vadd.xlane.f32.xlu0 %v2793
  %v2857 = vpop.xlane.xlu0 %2856
  %v2858 = vmul.f32 %v2795, 0.03125
  %v2859 = vmul.f32 %v2797, 0.03125
  %v2860 = vmul.f32 %v2799, 0.03125
  %v2861 = vmul.f32 %v2801, 0.03125
  %v2862 = vmul.f32 %v2803, 0.03125
  %v2863 = vmul.f32 %v2805, 0.03125
  %v2864 = vmul.f32 %v2807, 0.03125
  %v2865 = vmul.f32 %v2809, 0.03125
  %v2866 = vmul.f32 %v2811, 0.03125
  %v2867 = vmul.f32 %v2813, 0.03125
  %v2868 = vmul.f32 %v2815, 0.03125
  %v2869 = vmul.f32 %v2817, 0.03125
  %v2870 = vmul.f32 %v2819, 0.03125
  %v2871 = vmul.f32 %v2821, 0.03125
  %v2872 = vmul.f32 %v2823, 0.03125
  %v2873 = vmul.f32 %v2825, 0.03125
  %v2874 = vmul.f32 %v2827, 0.03125
  %v2875 = vmul.f32 %v2829, 0.03125
  %v2876 = vmul.f32 %v2831, 0.03125
  %v2877 = vmul.f32 %v2833, 0.03125
  %v2878 = vmul.f32 %v2835, 0.03125
  %v2879 = vmul.f32 %v2837, 0.03125
  %v2880 = vmul.f32 %v2839, 0.03125
  %v2881 = vmul.f32 %v2841, 0.03125
  %v2882 = vmul.f32 %v2843, 0.03125
  %v2883 = vmul.f32 %v2845, 0.03125
  %v2884 = vmul.f32 %v2847, 0.03125
  %v2885 = vmul.f32 %v2849, 0.03125
  %v2886 = vmul.f32 %v2851, 0.03125
  %v2887 = vmul.f32 %v2853, 0.03125
  %v2888 = vmul.f32 %v2855, 0.03125
  %v2889 = vmul.f32 %v2857, 0.03125
  %v2890 = vadd.f32 %v2858, 1e-05
  %v2891 = vadd.f32 %v2859, 1e-05
  %v2892 = vadd.f32 %v2860, 1e-05
  %v2893 = vadd.f32 %v2861, 1e-05
  %v2894 = vadd.f32 %v2862, 1e-05
  %v2895 = vadd.f32 %v2863, 1e-05
  %v2896 = vadd.f32 %v2864, 1e-05
  %v2897 = vadd.f32 %v2865, 1e-05
  %v2898 = vadd.f32 %v2866, 1e-05
  %v2899 = vadd.f32 %v2867, 1e-05
  %v2900 = vadd.f32 %v2868, 1e-05
  %v2901 = vadd.f32 %v2869, 1e-05
  %v2902 = vadd.f32 %v2870, 1e-05
  %v2903 = vadd.f32 %v2871, 1e-05
  %v2904 = vadd.f32 %v2872, 1e-05
  %v2905 = vadd.f32 %v2873, 1e-05
  %v2906 = vadd.f32 %v2874, 1e-05
  %v2907 = vadd.f32 %v2875, 1e-05
  %v2908 = vadd.f32 %v2876, 1e-05
  %v2909 = vadd.f32 %v2877, 1e-05
  %v2910 = vadd.f32 %v2878, 1e-05
  %v2911 = vadd.f32 %v2879, 1e-05
  %v2912 = vadd.f32 %v2880, 1e-05
  %v2913 = vadd.f32 %v2881, 1e-05
  %v2914 = vadd.f32 %v2882, 1e-05
  %v2915 = vadd.f32 %v2883, 1e-05
  %v2916 = vadd.f32 %v2884, 1e-05
  %v2917 = vadd.f32 %v2885, 1e-05
  %v2918 = vadd.f32 %v2886, 1e-05
  %v2919 = vadd.f32 %v2887, 1e-05
  %v2920 = vadd.f32 %v2888, 1e-05
  %v2921 = vadd.f32 %v2889, 1e-05
  %v2922 = vrsqrt.pop %v2890
  %v2923 = vrsqrt.pop %v2891
  %v2924 = vrsqrt.pop %v2892
  %v2925 = vrsqrt.pop %v2893
  %v2926 = vrsqrt.pop %v2894
  %v2927 = vrsqrt.pop %v2895
  %v2928 = vrsqrt.pop %v2896
  %v2929 = vrsqrt.pop %v2897
  %v2930 = vrsqrt.pop %v2898
  %v2931 = vrsqrt.pop %v2899
  %v2932 = vrsqrt.pop %v2900
  %v2933 = vrsqrt.pop %v2901
  %v2934 = vrsqrt.pop %v2902
  %v2935 = vrsqrt.pop %v2903
  %v2936 = vrsqrt.pop %v2904
  %v2937 = vrsqrt.pop %v2905
  %v2938 = vrsqrt.pop %v2906
  %v2939 = vrsqrt.pop %v2907
  %v2940 = vrsqrt.pop %v2908
  %v2941 = vrsqrt.pop %v2909
  %v2942 = vrsqrt.pop %v2910
  %v2943 = vrsqrt.pop %v2911
  %v2944 = vrsqrt.pop %v2912
  %v2945 = vrsqrt.pop %v2913
  %v2946 = vrsqrt.pop %v2914
  %v2947 = vrsqrt.pop %v2915
  %v2948 = vrsqrt.pop %v2916
  %v2949 = vrsqrt.pop %v2917
  %v2950 = vrsqrt.pop %v2918
  %v2951 = vrsqrt.pop %v2919
  %v2952 = vrsqrt.pop %v2920
  %v2953 = vrsqrt.pop %v2921
  %v2954 = vmul.f32 %v2730, %v2922
  %v2955 = vmul.f32 %v2731, %v2923
  %v2956 = vmul.f32 %v2732, %v2924
  %v2957 = vmul.f32 %v2733, %v2925
  %v2958 = vmul.f32 %v2734, %v2926
  %v2959 = vmul.f32 %v2735, %v2927
  %v2960 = vmul.f32 %v2736, %v2928
  %v2961 = vmul.f32 %v2737, %v2929
  %v2962 = vmul.f32 %v2738, %v2930
  %v2963 = vmul.f32 %v2739, %v2931
  %v2964 = vmul.f32 %v2740, %v2932
  %v2965 = vmul.f32 %v2741, %v2933
  %v2966 = vmul.f32 %v2742, %v2934
  %v2967 = vmul.f32 %v2743, %v2935
  %v2968 = vmul.f32 %v2744, %v2936
  %v2969 = vmul.f32 %v2745, %v2937
  %v2970 = vmul.f32 %v2746, %v2938
  %v2971 = vmul.f32 %v2747, %v2939
  %v2972 = vmul.f32 %v2748, %v2940
  %v2973 = vmul.f32 %v2749, %v2941
  %v2974 = vmul.f32 %v2750, %v2942
  %v2975 = vmul.f32 %v2751, %v2943
  %v2976 = vmul.f32 %v2752, %v2944
  %v2977 = vmul.f32 %v2753, %v2945
  %v2978 = vmul.f32 %v2754, %v2946
  %v2979 = vmul.f32 %v2755, %v2947
  %v2980 = vmul.f32 %v2756, %v2948
  %v2981 = vmul.f32 %v2757, %v2949
  %v2982 = vmul.f32 %v2758, %v2950
  %v2983 = vmul.f32 %v2759, %v2951
  %v2984 = vmul.f32 %v2760, %v2952
  %v2985 = vmul.f32 %v2761, %v2953
  %v2986 = vlaneseq
  %v2987 = vshrl.u32 %v2986, 7
  %v2988 = vsub.s32 0, %v2987
  %v2989 = vrot.slane %v2600, %v2988
  %v2990 = vmul.f32 %v2954, %v2989
  %v2991 = vmul.f32 %v2955, %v2989
  %v2992 = vmul.f32 %v2956, %v2989
  %v2993 = vmul.f32 %v2957, %v2989
  %v2994 = vmul.f32 %v2958, %v2989
  %v2995 = vmul.f32 %v2959, %v2989
  %v2996 = vmul.f32 %v2960, %v2989
  %v2997 = vmul.f32 %v2961, %v2989
  %v2998 = vmul.f32 %v2962, %v2989
  %v2999 = vmul.f32 %v2963, %v2989
  %v3000 = vmul.f32 %v2964, %v2989
  %v3001 = vmul.f32 %v2965, %v2989
  %v3002 = vmul.f32 %v2966, %v2989
  %v3003 = vmul.f32 %v2967, %v2989
  %v3004 = vmul.f32 %v2968, %v2989
  %v3005 = vmul.f32 %v2969, %v2989
  %v3006 = vmul.f32 %v2970, %v2989
  %v3007 = vmul.f32 %v2971, %v2989
  %v3008 = vmul.f32 %v2972, %v2989
  %v3009 = vmul.f32 %v2973, %v2989
  %v3010 = vmul.f32 %v2974, %v2989
  %v3011 = vmul.f32 %v2975, %v2989
  %v3012 = vmul.f32 %v2976, %v2989
  %v3013 = vmul.f32 %v2977, %v2989
  %v3014 = vmul.f32 %v2978, %v2989
  %v3015 = vmul.f32 %v2979, %v2989
  %v3016 = vmul.f32 %v2980, %v2989
  %v3017 = vmul.f32 %v2981, %v2989
  %v3018 = vmul.f32 %v2982, %v2989
  %v3019 = vmul.f32 %v2983, %v2989
  %v3020 = vmul.f32 %v2984, %v2989
  %v3021 = vmul.f32 %v2985, %v2989
  %v3022 = vlaneseq
  %v3023 = vshrl.u32 %v3022, 7
  %v3024 = vsub.s32 0, %v3023
  %v3025 = vrot.slane %v2601, %v3024
  %v3026 = vadd.f32 %v2990, %v3025
  %v3027 = vadd.f32 %v2991, %v3025
  %v3028 = vadd.f32 %v2992, %v3025
  %v3029 = vadd.f32 %v2993, %v3025
  %v3030 = vadd.f32 %v2994, %v3025
  %v3031 = vadd.f32 %v2995, %v3025
  %v3032 = vadd.f32 %v2996, %v3025
  %v3033 = vadd.f32 %v2997, %v3025
  %v3034 = vadd.f32 %v2998, %v3025
  %v3035 = vadd.f32 %v2999, %v3025
  %v3036 = vadd.f32 %v3000, %v3025
  %v3037 = vadd.f32 %v3001, %v3025
  %v3038 = vadd.f32 %v3002, %v3025
  %v3039 = vadd.f32 %v3003, %v3025
  %v3040 = vadd.f32 %v3004, %v3025
  %v3041 = vadd.f32 %v3005, %v3025
  %v3042 = vadd.f32 %v3006, %v3025
  %v3043 = vadd.f32 %v3007, %v3025
  %v3044 = vadd.f32 %v3008, %v3025
  %v3045 = vadd.f32 %v3009, %v3025
  %v3046 = vadd.f32 %v3010, %v3025
  %v3047 = vadd.f32 %v3011, %v3025
  %v3048 = vadd.f32 %v3012, %v3025
  %v3049 = vadd.f32 %v3013, %v3025
  %v3050 = vadd.f32 %v3014, %v3025
  %v3051 = vadd.f32 %v3015, %v3025
  %v3052 = vadd.f32 %v3016, %v3025
  %v3053 = vadd.f32 %v3017, %v3025
  %v3054 = vadd.f32 %v3018, %v3025
  %v3055 = vadd.f32 %v3019, %v3025
  %v3056 = vadd.f32 %v3020, %v3025
  %v3057 = vadd.f32 %v3021, %v3025
  %v3058 = vmax.f32 %v3026, 0.0
  %v3059 = vmax.f32 %v3027, 0.0
  %v3060 = vmax.f32 %v3028, 0.0
  %v3061 = vmax.f32 %v3029, 0.0
  %v3062 = vmax.f32 %v3030, 0.0
  %v3063 = vmax.f32 %v3031, 0.0
  %v3064 = vmax.f32 %v3032, 0.0
  %v3065 = vmax.f32 %v3033, 0.0
  %v3066 = vmax.f32 %v3034, 0.0
  %v3067 = vmax.f32 %v3035, 0.0
  %v3068 = vmax.f32 %v3036, 0.0
  %v3069 = vmax.f32 %v3037, 0.0
  %v3070 = vmax.f32 %v3038, 0.0
  %v3071 = vmax.f32 %v3039, 0.0
  %v3072 = vmax.f32 %v3040, 0.0
  %v3073 = vmax.f32 %v3041, 0.0
  %v3074 = vmax.f32 %v3042, 0.0
  %v3075 = vmax.f32 %v3043, 0.0
  %v3076 = vmax.f32 %v3044, 0.0
  %v3077 = vmax.f32 %v3045, 0.0
  %v3078 = vmax.f32 %v3046, 0.0
  %v3079 = vmax.f32 %v3047, 0.0
  %v3080 = vmax.f32 %v3048, 0.0
  %v3081 = vmax.f32 %v3049, 0.0
  %v3082 = vmax.f32 %v3050, 0.0
  %v3083 = vmax.f32 %v3051, 0.0
  %v3084 = vmax.f32 %v3052, 0.0
  %v3085 = vmax.f32 %v3053, 0.0
  %v3086 = vmax.f32 %v3054, 0.0
  %v3087 = vmax.f32 %v3055, 0.0
  %v3088 = vmax.f32 %v3056, 0.0
  %v3089 = vmax.f32 %v3057, 0.0
  %v3090 = vadd.f32 %v3058, %v1584
  %v3091 = vadd.f32 %v3059, %v1585
  %v3092 = vadd.f32 %v3060, %v1586
  %v3093 = vadd.f32 %v3061, %v1587
  %v3094 = vadd.f32 %v3062, %v1588
  %v3095 = vadd.f32 %v3063, %v1589
  %v3096 = vadd.f32 %v3064, %v1590
  %v3097 = vadd.f32 %v3065, %v1591
  %v3098 = vadd.f32 %v3066, %v1592
  %v3099 = vadd.f32 %v3067, %v1593
  %v3100 = vadd.f32 %v3068, %v1594
  %v3101 = vadd.f32 %v3069, %v1595
  %v3102 = vadd.f32 %v3070, %v1596
  %v3103 = vadd.f32 %v3071, %v1597
  %v3104 = vadd.f32 %v3072, %v1598
  %v3105 = vadd.f32 %v3073, %v1599
  %v3106 = vadd.f32 %v3074, %v1600
  %v3107 = vadd.f32 %v3075, %v1601
  %v3108 = vadd.f32 %v3076, %v1602
  %v3109 = vadd.f32 %v3077, %v1603
  %v3110 = vadd.f32 %v3078, %v1604
  %v3111 = vadd.f32 %v3079, %v1605
  %v3112 = vadd.f32 %v3080, %v1606
  %v3113 = vadd.f32 %v3081, %v1607
  %v3114 = vadd.f32 %v3082, %v1608
  %v3115 = vadd.f32 %v3083, %v1609
  %v3116 = vadd.f32 %v3084, %v1610
  %v3117 = vadd.f32 %v3085, %v1611
  %v3118 = vadd.f32 %v3086, %v1612
  %v3119 = vadd.f32 %v3087, %v1613
  %v3120 = vadd.f32 %v3088, %v1614
  %v3121 = vadd.f32 %v3089, %v1615
  %s3122 = scalar_lea.vmem %s2, 192
  %v3123 = vld [vmem:[%s3122] sm:$0xf]
  %v3124 = vld [vmem:[%s3122 + $0x4] sm:$0xf]
  %v3125 = vld [vmem:[%s3122 + $0x8] sm:$0xf]
  %v3126 = vld [vmem:[%s3122 + $0xc] sm:$0xf]
  %v3127 = vld [vmem:[%s3122 + $0x10] sm:$0xf]
  %v3128 = vld [vmem:[%s3122 + $0x14] sm:$0xf]
  %v3129 = vld [vmem:[%s3122 + $0x18] sm:$0xf]
  %v3130 = vld [vmem:[%s3122 + $0x1c] sm:$0xf]
  %v3131 = vld [vmem:[%s3122 + $0x20] sm:$0xf]
  %v3132 = vld [vmem:[%s3122 + $0x24] sm:$0xf]
  %v3133 = vld [vmem:[%s3122 + $0x28] sm:$0xf]
  %v3134 = vld [vmem:[%s3122 + $0x2c] sm:$0xf]
  %v3135 = vld [vmem:[%s3122 + $0x30] sm:$0xf]
  %v3136 = vld [vmem:[%s3122 + $0x34] sm:$0xf]
  %v3137 = vld [vmem:[%s3122 + $0x38] sm:$0xf]
  %v3138 = vld [vmem:[%s3122 + $0x3c] sm:$0xf]
  %v3139 = vpack.c.bf16 %v3091, %v3090
  %v3140 = vpack.c.bf16 %v3093, %v3092
  %v3141 = vpack.c.bf16 %v3095, %v3094
  %v3142 = vpack.c.bf16 %v3097, %v3096
  %v3143 = vpack.c.bf16 %v3099, %v3098
  %v3144 = vpack.c.bf16 %v3101, %v3100
  %v3145 = vpack.c.bf16 %v3103, %v3102
  %v3146 = vpack.c.bf16 %v3105, %v3104
  %v3147 = vpack.c.bf16 %v3107, %v3106
  %v3148 = vpack.c.bf16 %v3109, %v3108
  %v3149 = vpack.c.bf16 %v3111, %v3110
  %v3150 = vpack.c.bf16 %v3113, %v3112
  %v3151 = vpack.c.bf16 %v3115, %v3114
  %v3152 = vpack.c.bf16 %v3117, %v3116
  %v3153 = vpack.c.bf16 %v3119, %v3118
  %v3154 = vpack.c.bf16 %v3121, %v3120
  %v3155 = vld [vmem:[%s3 + $0xc] sm:$0x1]
  %v3156 = vlaneseq
  %v3157 = vshrl.u32 %v3156, 7
  %v3158 = vsub.s32 0, %v3157
  %v3159 = vrot.slane %v3155, %v3158
  %v3176 = vunpack.c.l.b16 %v3123
  %v3177 = vunpack.c.l.b16 %v3124
  %v3178 = vunpack.c.l.b16 %v3125
  %v3179 = vunpack.c.l.b16 %v3126
  %v3180 = vunpack.c.l.b16 %v3127
  %v3181 = vunpack.c.l.b16 %v3128
  %v3182 = vunpack.c.l.b16 %v3129
  %v3183 = vunpack.c.l.b16 %v3130
  %v3184 = vunpack.c.l.b16 %v3131
  %v3185 = vunpack.c.l.b16 %v3132
  %v3186 = vunpack.c.l.b16 %v3133
  %v3187 = vunpack.c.l.b16 %v3134
  %v3188 = vunpack.c.l.b16 %v3135
  %v3189 = vunpack.c.l.b16 %v3136
  %v3190 = vunpack.c.l.b16 %v3137
  %v3191 = vunpack.c.l.b16 %v3138
  %v3192 = vpack.c.b16 %v3177, %v3176
  %v3193 = vpack.c.b16 %v3179, %v3178
  %v3194 = vpack.c.b16 %v3181, %v3180
  %v3195 = vpack.c.b16 %v3183, %v3182
  %v3196 = vpack.c.b16 %v3185, %v3184
  %v3197 = vpack.c.b16 %v3187, %v3186
  %v3198 = vpack.c.b16 %v3189, %v3188
  %v3199 = vpack.c.b16 %v3191, %v3190
  %3208 = vmatprep.subr.bf16.mxu0 0
  %3209 = vmatpush1.bf16.msra.mxu0 %v3192
  %3210 = vmatprep.subr.bf16.mxu0 0
  %3211 = vmatpush1.bf16.msra.mxu0 %v3193
  %3212 = vmatprep.subr.bf16.mxu0 0
  %3213 = vmatpush1.bf16.msra.mxu0 %v3194
  %3214 = vmatprep.subr.bf16.mxu0 0
  %3215 = vmatpush1.bf16.msra.mxu0 %v3195
  %3216 = vmatprep.subr.bf16.mxu0 0
  %3217 = vmatpush1.bf16.msra.mxu0 %v3196
  %3218 = vmatprep.subr.bf16.mxu0 0
  %3219 = vmatpush1.bf16.msra.mxu0 %v3197
  %3220 = vmatprep.subr.bf16.mxu0 0
  %3221 = vmatpush1.bf16.msra.mxu0 %v3198
  %3222 = vmatprep.subr.bf16.mxu0 0
  %3223 = vmatpush1.bf16.msra.mxu0 %v3199
  %3224 = vmatprep.subr.bf16.mxu0 0
  %3225 = vmatpush1.bf16.msra.mxu0 0
  %3226 = vmatprep.subr.bf16.mxu0 0
  %3227 = vmatpush1.bf16.msra.mxu0 0
  %3228 = vmatprep.subr.bf16.mxu0 0
  %3229 = vmatpush1.bf16.msra.mxu0 0
  %3230 = vmatprep.subr.bf16.mxu0 0
  %3231 = vmatpush1.bf16.msra.mxu0 0
  %3232 = vmatprep.subr.bf16.mxu0 0
  %3233 = vmatpush1.bf16.msra.mxu0 0
  %3234 = vmatprep.subr.bf16.mxu0 0
  %3235 = vmatpush1.bf16.msra.mxu0 0
  %3236 = vmatprep.subr.bf16.mxu0 0
  %3237 = vmatpush1.bf16.msra.mxu0 0
  %3238 = vmatprep.subr.bf16.mxu0 0
  %3239 = vmatpush1.bf16.msra.mxu0 0
  %3240 = vmatprep.mubr.bf16.mxu0 0
  %3241 = vmatmul.mubr.bf16.gmra.mrb[0].mxu0 %v3139
  %v3242 = vpop.f32.mrb[0].mxu0
  %v3243 = vadd.f32 %v3159, %v3242
  %v3244 = vpop.f32.mrb[0].mxu0
  %v3245 = vpop.f32.mrb[0].mxu0
  %v3246 = vadd.f32 %v3159, %v3245
  %v3247 = vpop.f32.mrb[0].mxu0
  %3248 = vmatprep.mubr.bf16.mxu0 0
  %3249 = vmatmul.mubr.bf16.gmra.mrb[0].mxu0 %v3140
  %v3250 = vpop.f32.mrb[0].mxu0
  %v3251 = vadd.f32 %v3159, %v3250
  %v3252 = vpop.f32.mrb[0].mxu0
  %v3253 = vpop.f32.mrb[0].mxu0
  %v3254 = vadd.f32 %v3159, %v3253
  %v3255 = vpop.f32.mrb[0].mxu0
  %3256 = vmatprep.mubr.bf16.mxu0 0
  %3257 = vmatmul.mubr.bf16.gmra.mrb[0].mxu0 %v3141
  %v3258 = vpop.f32.mrb[0].mxu0
  %v3259 = vadd.f32 %v3159, %v3258
  %v3260 = vpop.f32.mrb[0].mxu0
  %v3261 = vpop.f32.mrb[0].mxu0
  %v3262 = vadd.f32 %v3159, %v3261
  %v3263 = vpop.f32.mrb[0].mxu0
  %3264 = vmatprep.mubr.bf16.mxu0 0
  %3265 = vmatmul.mubr.bf16.gmra.mrb[0].mxu0 %v3142
  %v3266 = vpop.f32.mrb[0].mxu0
  %v3267 = vadd.f32 %v3159, %v3266
  %v3268 = vpop.f32.mrb[0].mxu0
  %v3269 = vpop.f32.mrb[0].mxu0
  %v3270 = vadd.f32 %v3159, %v3269
  %v3271 = vpop.f32.mrb[0].mxu0
  %3272 = vmatprep.mubr.bf16.mxu0 0
  %3273 = vmatmul.mubr.bf16.gmra.mrb[0].mxu0 %v3143
  %v3274 = vpop.f32.mrb[0].mxu0
  %v3275 = vadd.f32 %v3159, %v3274
  %v3276 = vpop.f32.mrb[0].mxu0
  %v3277 = vpop.f32.mrb[0].mxu0
  %v3278 = vadd.f32 %v3159, %v3277
  %v3279 = vpop.f32.mrb[0].mxu0
  %3280 = vmatprep.mubr.bf16.mxu0 0
  %3281 = vmatmul.mubr.bf16.gmra.mrb[0].mxu0 %v3144
  %v3282 = vpop.f32.mrb[0].mxu0
  %v3283 = vadd.f32 %v3159, %v3282
  %v3284 = vpop.f32.mrb[0].mxu0
  %v3285 = vpop.f32.mrb[0].mxu0
  %v3286 = vadd.f32 %v3159, %v3285
  %v3287 = vpop.f32.mrb[0].mxu0
  %3288 = vmatprep.mubr.bf16.mxu0 0
  %3289 = vmatmul.mubr.bf16.gmra.mrb[0].mxu0 %v3145
  %v3290 = vpop.f32.mrb[0].mxu0
  %v3291 = vadd.f32 %v3159, %v3290
  %v3292 = vpop.f32.mrb[0].mxu0
  %v3293 = vpop.f32.mrb[0].mxu0
  %v3294 = vadd.f32 %v3159, %v3293
  %v3295 = vpop.f32.mrb[0].mxu0
  %3296 = vmatprep.mubr.bf16.mxu0 0
  %3297 = vmatmul.mubr.bf16.gmra.mrb[0].mxu0 %v3146
  %v3298 = vpop.f32.mrb[0].mxu0
  %v3299 = vadd.f32 %v3159, %v3298
  %v3300 = vpop.f32.mrb[0].mxu0
  %v3301 = vpop.f32.mrb[0].mxu0
  %v3302 = vadd.f32 %v3159, %v3301
  %v3303 = vpop.f32.mrb[0].mxu0
  %3304 = vmatprep.mubr.bf16.mxu0 0
  %3305 = vmatmul.mubr.bf16.gmra.mrb[0].mxu0 %v3147
  %v3306 = vpop.f32.mrb[0].mxu0
  %v3307 = vadd.f32 %v3159, %v3306
  %v3308 = vpop.f32.mrb[0].mxu0
  %v3309 = vpop.f32.mrb[0].mxu0
  %v3310 = vadd.f32 %v3159, %v3309
  %v3311 = vpop.f32.mrb[0].mxu0
  %3312 = vmatprep.mubr.bf16.mxu0 0
  %3313 = vmatmul.mubr.bf16.gmra.mrb[0].mxu0 %v3148
  %v3314 = vpop.f32.mrb[0].mxu0
  %v3315 = vadd.f32 %v3159, %v3314
  %v3316 = vpop.f32.mrb[0].mxu0
  %v3317 = vpop.f32.mrb[0].mxu0
  %v3318 = vadd.f32 %v3159, %v3317
  %v3319 = vpop.f32.mrb[0].mxu0
  %3320 = vmatprep.mubr.bf16.mxu0 0
  %3321 = vmatmul.mubr.bf16.gmra.mrb[0].mxu0 %v3149
  %v3322 = vpop.f32.mrb[0].mxu0
  %v3323 = vadd.f32 %v3159, %v3322
  %v3324 = vpop.f32.mrb[0].mxu0
  %v3325 = vpop.f32.mrb[0].mxu0
  %v3326 = vadd.f32 %v3159, %v3325
  %v3327 = vpop.f32.mrb[0].mxu0
  %3328 = vmatprep.mubr.bf16.mxu0 0
  %3329 = vmatmul.mubr.bf16.gmra.mrb[0].mxu0 %v3150
  %v3330 = vpop.f32.mrb[0].mxu0
  %v3331 = vadd.f32 %v3159, %v3330
  %v3332 = vpop.f32.mrb[0].mxu0
  %v3333 = vpop.f32.mrb[0].mxu0
  %v3334 = vadd.f32 %v3159, %v3333
  %v3335 = vpop.f32.mrb[0].mxu0
  %3336 = vmatprep.mubr.bf16.mxu0 0
  %3337 = vmatmul.mubr.bf16.gmra.mrb[0].mxu0 %v3151
  %v3338 = vpop.f32.mrb[0].mxu0
  %v3339 = vadd.f32 %v3159, %v3338
  %v3340 = vpop.f32.mrb[0].mxu0
  %v3341 = vpop.f32.mrb[0].mxu0
  %v3342 = vadd.f32 %v3159, %v3341
  %v3343 = vpop.f32.mrb[0].mxu0
  %3344 = vmatprep.mubr.bf16.mxu0 0
  %3345 = vmatmul.mubr.bf16.gmra.mrb[0].mxu0 %v3152
  %v3346 = vpop.f32.mrb[0].mxu0
  %v3347 = vadd.f32 %v3159, %v3346
  %v3348 = vpop.f32.mrb[0].mxu0
  %v3349 = vpop.f32.mrb[0].mxu0
  %v3350 = vadd.f32 %v3159, %v3349
  %v3351 = vpop.f32.mrb[0].mxu0
  %3352 = vmatprep.mubr.bf16.mxu0 0
  %3353 = vmatmul.mubr.bf16.gmra.mrb[0].mxu0 %v3153
  %v3354 = vpop.f32.mrb[0].mxu0
  %v3355 = vadd.f32 %v3159, %v3354
  %v3356 = vpop.f32.mrb[0].mxu0
  %v3357 = vpop.f32.mrb[0].mxu0
  %v3358 = vadd.f32 %v3159, %v3357
  %v3359 = vpop.f32.mrb[0].mxu0
  %3360 = vmatprep.mubr.bf16.mxu0 0
  %3361 = vmatmul.mubr.bf16.gmra.mrb[0].mxu0 %v3154
  %v3362 = vpop.f32.mrb[0].mxu0
  %v3363 = vadd.f32 %v3159, %v3362
  %v3364 = vpop.f32.mrb[0].mxu0
  %v3365 = vpop.f32.mrb[0].mxu0
  %v3366 = vadd.f32 %v3159, %v3365
  %v3367 = vpop.f32.mrb[0].mxu0
  %3368 = vdwg.mxu0
  %3369 = vst [vmem:[%s4] sm:$0xff] %v3243
  %3370 = vst [vmem:[%s4 + $0x8] sm:$0xff] %v3246
  %3371 = vst [vmem:[%s4 + $0x10] sm:$0xff] %v3251
  %3372 = vst [vmem:[%s4 + $0x18] sm:$0xff] %v3254
  %3373 = vst [vmem:[%s4 + $0x20] sm:$0xff] %v3259
  %3374 = vst [vmem:[%s4 + $0x28] sm:$0xff] %v3262
  %3375 = vst [vmem:[%s4 + $0x30] sm:$0xff] %v3267
  %3376 = vst [vmem:[%s4 + $0x38] sm:$0xff] %v3270
  %3377 = vst [vmem:[%s4 + $0x40] sm:$0xff] %v3275
  %3378 = vst [vmem:[%s4 + $0x48] sm:$0xff] %v3278
  %3379 = vst [vmem:[%s4 + $0x50] sm:$0xff] %v3283
  %3380 = vst [vmem:[%s4 + $0x58] sm:$0xff] %v3286
  %3381 = vst [vmem:[%s4 + $0x60] sm:$0xff] %v3291
  %3382 = vst [vmem:[%s4 + $0x68] sm:$0xff] %v3294
  %3383 = vst [vmem:[%s4 + $0x70] sm:$0xff] %v3299
  %3384 = vst [vmem:[%s4 + $0x78] sm:$0xff] %v3302
  %3385 = vst [vmem:[%s4 + $0x80] sm:$0xff] %v3307
  %3386 = vst [vmem:[%s4 + $0x88] sm:$0xff] %v3310
  %3387 = vst [vmem:[%s4 + $0x90] sm:$0xff] %v3315
  %3388 = vst [vmem:[%s4 + $0x98] sm:$0xff] %v3318
  %3389 = vst [vmem:[%s4 + $0xa0] sm:$0xff] %v3323
  %3390 = vst [vmem:[%s4 + $0xa8] sm:$0xff] %v3326
  %3391 = vst [vmem:[%s4 + $0xb0] sm:$0xff] %v3331
  %3392 = vst [vmem:[%s4 + $0xb8] sm:$0xff] %v3334
  %3393 = vst [vmem:[%s4 + $0xc0] sm:$0xff] %v3339
  %3394 = vst [vmem:[%s4 + $0xc8] sm:$0xff] %v3342
  %3395 = vst [vmem:[%s4 + $0xd0] sm:$0xff] %v3347
  %3396 = vst [vmem:[%s4 + $0xd8] sm:$0xff] %v3350
  %3397 = vst [vmem:[%s4 + $0xe0] sm:$0xff] %v3355
  %3398 = vst [vmem:[%s4 + $0xe8] sm:$0xff] %v3358
  %3399 = vst [vmem:[%s4 + $0xf0] sm:$0xff] %v3363
  %3400 = vst [vmem:[%s4 + $0xf8] sm:$0xff] %v3366
  // Predicated region
  $region18: #{a2c_forward.1} parent=0 // pred_check
    _
  $region19: #{a2c_forward.1} parent=0 // pred_check_branch
    %3402 = sbr.rel (0) target = $region21
  $region20: #{a2c_forward.1} parent=0 // pred_region
    _
  $region21: #{a2c_forward.1} parent=0 // pred_fallthru
    _
  // Predicated region
  $region22: #{a2c_forward.1} parent=0 // pred_check
    _
  $region23: #{a2c_forward.1} parent=0 // pred_check_branch
    %3404 = sbr.rel (0) target = $region25
  $region24: #{a2c_forward.1} parent=0 // pred_region
    _
  $region25: #{a2c_forward.1} parent=0 // pred_fallthru
    _

</llo_original>
